<compile_context>
chip_gen: v7x
topology: tpu7x:2x2x1
jax: 0.10.0
libtpu: 0.0.40
codegen_flags: <defaults>
</compile_context>

<pallas_src>
import math

import jax
import jax.numpy as jnp
from jax.experimental import pallas as pl
from jax.experimental.pallas import tpu as pltpu

# ----------------------------- config ---------------------------------------
NUM_LAYERS = 2
HIDDEN = 128
N_HEADS = 4
N_KV_HEADS = 4                      # == N_HEADS (MHA)
HEAD_DIM = HIDDEN // N_HEADS        # 32
HALF = HEAD_DIM // 2                # 16
VOCAB = 256
MLP_RATIO = 4
MULTIPLE_OF = 128
# InternLM SwiGLU FFN width rule: multiple_of * ceil(hidden*ratio*2/3 / multiple_of)
MLP_HIDDEN = MULTIPLE_OF * ((int(HIDDEN * MLP_RATIO * 2 / 3) + MULTIPLE_OF - 1) // MULTIPLE_OF)  # 384
EPS = 1e-5
EMBED_GRAD_SCALE = 0.1
IMAGE_TOKEN_ID = 200000
ROPE_BASE = 10000.0
INIT_STD = 0.02
B, S = 2, 8
ATTN_SCALE = 1.0 / math.sqrt(HEAD_DIM)
NEG_BIG = -1e30                     # finite "masked" bias (avoids exp(-inf-(-inf)) NaN)


# ----------------------------- fused kernel ---------------------------------

def _rms(x, w, eps=EPS):
    """x: (T, H) f32, w: (1, H) f32."""
    var = jnp.mean(x * x, axis=-1, keepdims=True)
    return x * jax.lax.rsqrt(var + eps) * w


def _mm(x, w):
    """bf16 MXU operands, f32 accumulation."""
    return jnp.dot(x.astype(jnp.bfloat16), w, preferred_element_type=jnp.float32)


def _fused_stack_kernel(h0_ref, rope_ref, bias_ref,
                        anorm_ref, fnorm_ref,
                        wqkv_ref, wo_ref, w13_ref, w2_ref,
                        onorm_ref, wout_ref,
                        logits_ref, attn_scr):
    x = h0_ref[...]                                  # (B*S, H) f32 residual stream
    cos = rope_ref[0]                                # (B*S, H) f32
    sin_lo = rope_ref[1]
    sin_hi = rope_ref[2]
    bias = bias_ref[...]                             # (B*S, B*S) block-diag causal bias

    def _rope(t):
        # rotate-half within each head's 32-lane block, done with two global
        # lane rolls (XLU); the precomputed sin tables are zero on the lanes
        # where a roll wrapped into the neighbouring head, so no masking op.
        r_m = pltpu.roll(t, shift=HIDDEN - HALF, axis=1)   # out[i] = t[i + HALF]
        r_p = pltpu.roll(t, shift=HALF, axis=1)            # out[i] = t[i - HALF]
        return t * cos + r_m * sin_lo + r_p * sin_hi

    for l in range(NUM_LAYERS):                      # static layer loop, all weights resident
        # ---------------- attention block: norm -> qkv -> rope -> mha -> wo --
        nx = _rms(x, anorm_ref[l])
        qkv = _mm(nx, wqkv_ref[l])                   # (T, 3H) f32, order [q|k|v]
        q = (_rope(qkv[:, :HIDDEN]) * ATTN_SCALE).astype(jnp.bfloat16)   # fold 1/sqrt(Dh)
        k = _rope(qkv[:, HIDDEN:2 * HIDDEN]).astype(jnp.bfloat16)
        v = qkv[:, 2 * HIDDEN:].astype(jnp.bfloat16)

        for hh in range(N_HEADS):                    # static unrolled head loop
            c0 = hh * HEAD_DIM
            qh = q[:, c0:c0 + HEAD_DIM]
            kh = k[:, c0:c0 + HEAD_DIM]
            vh = v[:, c0:c0 + HEAD_DIM]
            s = jax.lax.dot_general(qh, kh, (((1,), (1,)), ((), ())),
                                    preferred_element_type=jnp.float32)   # (T, T)
            s = s + bias                             # block-diag causal (per batch row)
            m = jnp.max(s, axis=-1, keepdims=True)
            p = jnp.exp(s - m)
            p = p * pl.reciprocal(jnp.sum(p, axis=-1, keepdims=True), approx=True)
            attn_scr[:, c0:c0 + HEAD_DIM] = jnp.dot(
                p.astype(jnp.bfloat16), vh, preferred_element_type=jnp.float32)

        x = x + _mm(attn_scr[...], wo_ref[l])        # residual add (f32)

        # ---------------- feed-forward block: norm -> SwiGLU (fused w1|w3) ----
        nx2 = _rms(x, fnorm_ref[l])
        y = _mm(nx2, w13_ref[l])                     # single (T, 2F) up-projection
        g = y[:, :MLP_HIDDEN]
        u = y[:, MLP_HIDDEN:]
        x = x + _mm(g * jax.nn.sigmoid(g) * u, w2_ref[l])

    # ---------------- final RMSNorm + bias-free LM head -----------------------
    fx = _rms(x, onorm_ref[...])
    logits_ref[...] = _mm(fx, wout_ref[...]).astype(logits_ref.dtype)


# ----------------------------- JAX glue --------------------------------------

def _build_rope_tables(batch, seq_len):
    """Packed (3, B*S, H) f32 tables: cos, sin(x1 lanes, negated), sin(x2 lanes)."""
    inv_freq = 1.0 / (ROPE_BASE ** (jnp.arange(0, HALF, dtype=jnp.float32) / HALF))
    t = jnp.arange(seq_len, dtype=jnp.float32)
    freqs = jnp.outer(t, inv_freq)                   # (S, HALF)
    cos, sin = jnp.cos(freqs), jnp.sin(freqs)
    zero = jnp.zeros_like(sin)
    cos_h = jnp.concatenate([cos, cos], axis=-1)         # (S, Dh)
    sin_lo_h = jnp.concatenate([-sin, zero], axis=-1)    # nonzero only on x1 lanes
    sin_hi_h = jnp.concatenate([zero, sin], axis=-1)     # nonzero only on x2 lanes
    tile_heads = lambda a: jnp.tile(a, (1, N_HEADS))     # -> (S, H)
    per_seq = jnp.stack([tile_heads(cos_h), tile_heads(sin_lo_h), tile_heads(sin_hi_h)])
    return jnp.tile(per_seq, (1, batch, 1))              # (3, B*S, H)


def _build_causal_bias(batch, seq_len):
    """(B*S, B*S) additive bias: 0 where (same batch AND j<=i), else -1e30."""
    pos = jnp.arange(batch * seq_len)
    b_id = pos // seq_len
    w_id = pos % seq_len
    ok = (b_id[:, None] == b_id[None, :]) & (w_id[:, None] >= w_id[None, :])
    return jnp.where(ok, 0.0, NEG_BIG).astype(jnp.float32)


def llava_forward(params, input_ids):
    # images=None -> images=[] -> xs=[]: the vit / vision_proj branch is never
    # executed in the reference forward for this input configuration.
    # TODO(synk): build_vision_tower / build_vision_projector (CLIP ViT) are
    # external config-driven modules; not reachable on this path.
    ids = jnp.where(input_ids == IMAGE_TOKEN_ID, 0, input_ids)
    h = jnp.take(params["tok_embeddings"], ids, axis=0)          # (B, S, H) f32
    # embed_grad_scale trick (forward value unchanged; kept literally)
    h = EMBED_GRAD_SCALE * h + (1.0 - EMBED_GRAD_SCALE) * jax.lax.stop_gradient(h)

    Bh, Sh, H = h.shape
    BS = Bh * Sh
    h0 = h.reshape(BS, H)                                        # packed (B*S, H)
    F, V, L = MLP_HIDDEN, VOCAB, NUM_LAYERS

    full = lambda shape: pl.BlockSpec(shape, lambda i: (0,) * len(shape))

    logits = pl.pallas_call(
        _fused_stack_kernel,
        out_shape=jax.ShapeDtypeStruct((BS, V), jnp.float32),
        grid=(1,),                       # single step: all weights (<1 MiB) VMEM-resident
        in_specs=[
            full((BS, H)),               # packed embeddings
            full((3, BS, H)),            # packed rope tables (cos / sin_lo / sin_hi)
            full((BS, BS)),              # block-diag causal additive bias
            full((L, 1, H)),             # attention norm weights
            full((L, 1, H)),             # ffn norm weights
            full((L, H, 3 * H)),         # wqkv
            full((L, H, H)),             # wo
            full((L, H, 2 * F)),         # fused [w1 | w3]
            full((L, F, H)),             # w2
            full((1, H)),                # final norm weight
            full((H, V)),                # LM head weight
        ],
        out_specs=full((BS, V)),         # single lane-dense (16, 256) store
        scratch_shapes=[pltpu.VMEM((BS, H), jnp.float32)],   # per-head attn output slab
    )(h0, params["rope"], params["mask"],
      params["attn_norm"], params["ffn_norm"],
      params["wqkv"], params["wo"], params["w13"], params["w2"],
      params["norm"], params["output"])

    return logits.reshape(Bh, Sh, V)


def init_params(key, batch, seq_len):
    keys = jax.random.split(key, 2 + 5 * NUM_LAYERS)

    def nrm(k, shape):
        return INIT_STD * jax.random.normal(k, shape, jnp.float32)

    def stack(off, shape):
        return jnp.stack([nrm(keys[2 + 5 * i + off], shape)
                          for i in range(NUM_LAYERS)]).astype(jnp.bfloat16)

    w1 = stack(2, (HIDDEN, MLP_HIDDEN))
    w3 = stack(3, (HIDDEN, MLP_HIDDEN))
    # NOTE: wqkv assumed packed as contiguous [q|k|v]; real InternLM checkpoints
    # are per-head interleaved and would need repacking before use.
    return {
        "tok_embeddings": nrm(keys[0], (VOCAB, HIDDEN)),
        "output": nrm(keys[1], (HIDDEN, VOCAB)).astype(jnp.bfloat16),
        "norm": jnp.ones((1, HIDDEN), jnp.float32),
        "attn_norm": jnp.ones((NUM_LAYERS, 1, HIDDEN), jnp.float32),
        "ffn_norm": jnp.ones((NUM_LAYERS, 1, HIDDEN), jnp.float32),
        "wqkv": stack(0, (HIDDEN, 3 * HIDDEN)),
        "wo": stack(1, (HIDDEN, HIDDEN)),
        "w13": jnp.concatenate([w1, w3], axis=-1),       # fused (L, H, 2F)
        "w2": stack(4, (MLP_HIDDEN, HIDDEN)),
        "rope": _build_rope_tables(batch, seq_len),      # (3, B*S, H)
        "mask": _build_causal_bias(batch, seq_len),      # (B*S, B*S)
    }


if __name__ == "__main__":
    key = jax.random.PRNGKey(0)
    pkey, ikey = jax.random.split(key)
    params = init_params(pkey, B, S)
    input_ids = jax.random.randint(ikey, (B, S), 0, VOCAB, dtype=jnp.int32)

    logits = jax.jit(llava_forward)(params, input_ids)
    logits = jax.block_until_ready(logits)
    assert logits.shape == (B, S, VOCAB) and logits.dtype == jnp.float32
    assert bool(jnp.all(jnp.isfinite(logits)))
    print("KERNEL_OK")
</pallas_src>

<mosaic_0001>
module attributes {stable_mosaic.version = 11 : i64} {
  func.func @_fused_stack_kernel(%arg0: i32, %arg1: memref<16x128xf32, #tpu.memory_space<vmem>>, %arg2: memref<3x16x128xf32, #tpu.memory_space<vmem>>, %arg3: memref<16x16xf32, #tpu.memory_space<vmem>>, %arg4: memref<2x1x128xf32, #tpu.memory_space<vmem>>, %arg5: memref<2x1x128xf32, #tpu.memory_space<vmem>>, %arg6: memref<2x128x384xbf16, #tpu.memory_space<vmem>>, %arg7: memref<2x128x128xbf16, #tpu.memory_space<vmem>>, %arg8: memref<2x128x768xbf16, #tpu.memory_space<vmem>>, %arg9: memref<2x384x128xbf16, #tpu.memory_space<vmem>>, %arg10: memref<1x128xf32, #tpu.memory_space<vmem>>, %arg11: memref<128x256xbf16, #tpu.memory_space<vmem>>, %arg12: memref<16x256xf32, #tpu.memory_space<vmem>>, %arg13: memref<16x128xf32, #tpu.memory_space<vmem>>) attributes {dimension_semantics = [#tpu.dimension_semantics<arbitrary>], iteration_bounds = array<i64: 1>, scalar_prefetch = 0 : i64, scratch_operands = 1 : i64, tpu.core_type = #tpu.core_type<tc>, window_params = [{pipeline_mode = #tpu.pipeline_mode<synchronous>, transform_indices = @transform_0, window_bounds = array<i64: 16, 128>}, {pipeline_mode = #tpu.pipeline_mode<synchronous>, transform_indices = @transform_1, window_bounds = array<i64: 3, 16, 128>}, {pipeline_mode = #tpu.pipeline_mode<synchronous>, transform_indices = @transform_2, window_bounds = array<i64: 16, 16>}, {pipeline_mode = #tpu.pipeline_mode<synchronous>, transform_indices = @transform_3, window_bounds = array<i64: 2, 1, 128>}, {pipeline_mode = #tpu.pipeline_mode<synchronous>, transform_indices = @transform_4, window_bounds = array<i64: 2, 1, 128>}, {pipeline_mode = #tpu.pipeline_mode<synchronous>, transform_indices = @transform_5, window_bounds = array<i64: 2, 128, 384>}, {pipeline_mode = #tpu.pipeline_mode<synchronous>, transform_indices = @transform_6, window_bounds = array<i64: 2, 128, 128>}, {pipeline_mode = #tpu.pipeline_mode<synchronous>, transform_indices = @transform_7, window_bounds = array<i64: 2, 128, 768>}, {pipeline_mode = #tpu.pipeline_mode<synchronous>, transform_indices = @transform_8, window_bounds = array<i64: 2, 384, 128>}, {pipeline_mode = #tpu.pipeline_mode<synchronous>, transform_indices = @transform_9, window_bounds = array<i64: 1, 128>}, {pipeline_mode = #tpu.pipeline_mode<synchronous>, transform_indices = @transform_10, window_bounds = array<i64: 128, 256>}, {pipeline_mode = #tpu.pipeline_mode<synchronous>, transform_indices = @transform_11, window_bounds = array<i64: 16, 256>}]} {
    %c0 = arith.constant 0 : index
    %c0_0 = arith.constant 0 : index
    %0 = vector.load %arg1[%c0, %c0_0] : memref<16x128xf32, #tpu.memory_space<vmem>>, vector<16x128xf32>
    %c0_1 = arith.constant 0 : index
    %c0_2 = arith.constant 0 : index
    %c0_3 = arith.constant 0 : index
    %1 = vector.load %arg2[%c0_1, %c0_2, %c0_3] : memref<3x16x128xf32, #tpu.memory_space<vmem>>, vector<1x16x128xf32>
    %2 = vector.shape_cast %1 : vector<1x16x128xf32> to vector<16x128xf32>
    %c1 = arith.constant 1 : index
    %c0_4 = arith.constant 0 : index
    %c0_5 = arith.constant 0 : index
    %3 = vector.load %arg2[%c1, %c0_4, %c0_5] : memref<3x16x128xf32, #tpu.memory_space<vmem>>, vector<1x16x128xf32>
    %4 = vector.shape_cast %3 : vector<1x16x128xf32> to vector<16x128xf32>
    %c2 = arith.constant 2 : index
    %c0_6 = arith.constant 0 : index
    %c0_7 = arith.constant 0 : index
    %5 = vector.load %arg2[%c2, %c0_6, %c0_7] : memref<3x16x128xf32, #tpu.memory_space<vmem>>, vector<1x16x128xf32>
    %6 = vector.shape_cast %5 : vector<1x16x128xf32> to vector<16x128xf32>
    %c0_8 = arith.constant 0 : index
    %c0_9 = arith.constant 0 : index
    %7 = vector.load %arg3[%c0_8, %c0_9] : memref<16x16xf32, #tpu.memory_space<vmem>>, vector<16x16xf32>
    %c0_10 = arith.constant 0 : index
    %c0_11 = arith.constant 0 : index
    %c0_12 = arith.constant 0 : index
    %8 = vector.load %arg4[%c0_10, %c0_11, %c0_12] : memref<2x1x128xf32, #tpu.memory_space<vmem>>, vector<1x1x128xf32>
    %9 = vector.shape_cast %8 : vector<1x1x128xf32> to vector<1x128xf32>
    %10 = arith.mulf %0, %0 : vector<16x128xf32>
    %cst = arith.constant dense<0.000000e+00> : vector<16xf32>
    %11 = vector.multi_reduction <add>, %10, %cst [1] : vector<16x128xf32> to vector<16xf32>
    %12 = vector.shape_cast %11 : vector<16xf32> to vector<16x1xf32>
    %cst_13 = arith.constant 1.280000e+02 : f32
    %13 = vector.broadcast %cst_13 : f32 to vector<16x1xf32>
    %14 = arith.divf %12, %13 : vector<16x1xf32>
    %cst_14 = arith.constant 9.99999974E-6 : f32
    %15 = vector.broadcast %cst_14 : f32 to vector<16x1xf32>
    %16 = arith.addf %14, %15 : vector<16x1xf32>
    %17 = math.rsqrt %16 : vector<16x1xf32>
    %18 = vector.broadcast %17 : vector<16x1xf32> to vector<16x128xf32>
    %19 = arith.mulf %0, %18 : vector<16x128xf32>
    %20 = vector.broadcast %9 : vector<1x128xf32> to vector<16x128xf32>
    %21 = arith.mulf %19, %20 : vector<16x128xf32>
    %c0_15 = arith.constant 0 : index
    %c0_16 = arith.constant 0 : index
    %c0_17 = arith.constant 0 : index
    %22 = vector.load %arg6[%c0_15, %c0_16, %c0_17] : memref<2x128x384xbf16, #tpu.memory_space<vmem>>, vector<1x128x384xbf16>
    %23 = vector.shape_cast %22 : vector<1x128x384xbf16> to vector<128x384xbf16>
    %24 = arith.truncf %21 : vector<16x128xf32> to vector<16x128xbf16>
    %cst_18 = arith.constant dense<0.000000e+00> : vector<16x384xf32>
    %25 = tpu.matmul %24, %23, %cst_18 {dimension_numbers = #tpu.dot_dimension_numbers<[1], [0], [0], [1], [0, 0, 1, 1], [], []>} : vector<16x128xbf16>, vector<128x384xbf16>, vector<16x384xf32> -> vector<16x384xf32>
    %26 = vector.extract_strided_slice %25 {offsets = [0, 0], sizes = [16, 128], strides = [1, 1]} : vector<16x384xf32> to vector<16x128xf32>
    %c112_i32 = arith.constant 112 : i32
    %27 = tpu.dynamic_rotate %26 by %c112_i32 dim 1 : vector<16x128xf32>, i32 -> vector<16x128xf32>
    %c16_i32 = arith.constant 16 : i32
    %28 = tpu.dynamic_rotate %26 by %c16_i32 dim 1 : vector<16x128xf32>, i32 -> vector<16x128xf32>
    %29 = arith.mulf %26, %2 : vector<16x128xf32>
    %30 = arith.mulf %27, %4 : vector<16x128xf32>
    %31 = arith.addf %29, %30 : vector<16x128xf32>
    %32 = arith.mulf %28, %6 : vector<16x128xf32>
    %33 = arith.addf %31, %32 : vector<16x128xf32>
    %cst_19 = arith.constant 0.176776692 : f32
    %34 = vector.broadcast %cst_19 : f32 to vector<16x128xf32>
    %35 = arith.mulf %33, %34 : vector<16x128xf32>
    %36 = arith.truncf %35 : vector<16x128xf32> to vector<16x128xbf16>
    %37 = vector.extract_strided_slice %25 {offsets = [0, 128], sizes = [16, 128], strides = [1, 1]} : vector<16x384xf32> to vector<16x128xf32>
    %c112_i32_20 = arith.constant 112 : i32
    %38 = tpu.dynamic_rotate %37 by %c112_i32_20 dim 1 : vector<16x128xf32>, i32 -> vector<16x128xf32>
    %c16_i32_21 = arith.constant 16 : i32
    %39 = tpu.dynamic_rotate %37 by %c16_i32_21 dim 1 : vector<16x128xf32>, i32 -> vector<16x128xf32>
    %40 = arith.mulf %37, %2 : vector<16x128xf32>
    %41 = arith.mulf %38, %4 : vector<16x128xf32>
    %42 = arith.addf %40, %41 : vector<16x128xf32>
    %43 = arith.mulf %39, %6 : vector<16x128xf32>
    %44 = arith.addf %42, %43 : vector<16x128xf32>
    %45 = arith.truncf %44 : vector<16x128xf32> to vector<16x128xbf16>
    %46 = vector.extract_strided_slice %25 {offsets = [0, 256], sizes = [16, 128], strides = [1, 1]} : vector<16x384xf32> to vector<16x128xf32>
    %47 = arith.truncf %46 : vector<16x128xf32> to vector<16x128xbf16>
    %48 = vector.extract_strided_slice %36 {offsets = [0, 0], sizes = [16, 32], strides = [1, 1]} : vector<16x128xbf16> to vector<16x32xbf16>
    %49 = vector.extract_strided_slice %45 {offsets = [0, 0], sizes = [16, 32], strides = [1, 1]} : vector<16x128xbf16> to vector<16x32xbf16>
    %50 = vector.extract_strided_slice %47 {offsets = [0, 0], sizes = [16, 32], strides = [1, 1]} : vector<16x128xbf16> to vector<16x32xbf16>
    %cst_22 = arith.constant dense<0.000000e+00> : vector<16x16xf32>
    %51 = tpu.matmul %48, %49, %cst_22 {dimension_numbers = #tpu.dot_dimension_numbers<[1], [1], [0], [0], [0, 0, 1, 0], [], []>} : vector<16x32xbf16>, vector<16x32xbf16>, vector<16x16xf32> -> vector<16x16xf32>
    %52 = arith.addf %51, %7 : vector<16x16xf32>
    %cst_23 = arith.constant dense<0xFF800000> : vector<16xf32>
    %53 = vector.multi_reduction <maximumf>, %52, %cst_23 [1] : vector<16x16xf32> to vector<16xf32>
    %54 = vector.shape_cast %53 : vector<16xf32> to vector<16x1xf32>
    %55 = vector.broadcast %54 : vector<16x1xf32> to vector<16x16xf32>
    %56 = arith.subf %52, %55 : vector<16x16xf32>
    %57 = math.exp %56 : vector<16x16xf32>
    %cst_24 = arith.constant dense<0.000000e+00> : vector<16xf32>
    %58 = vector.multi_reduction <add>, %57, %cst_24 [1] : vector<16x16xf32> to vector<16xf32>
    %59 = vector.shape_cast %58 : vector<16xf32> to vector<16x1xf32>
    %60 = tpu.reciprocal %59 {approx = true} : vector<16x1xf32> -> vector<16x1xf32>
    %61 = vector.broadcast %60 : vector<16x1xf32> to vector<16x16xf32>
    %62 = arith.mulf %57, %61 : vector<16x16xf32>
    %63 = arith.truncf %62 : vector<16x16xf32> to vector<16x16xbf16>
    %cst_25 = arith.constant dense<0.000000e+00> : vector<16x32xf32>
    %64 = tpu.matmul %63, %50, %cst_25 {dimension_numbers = #tpu.dot_dimension_numbers<[1], [0], [0], [1], [0, 0, 1, 1], [], []>} : vector<16x16xbf16>, vector<16x32xbf16>, vector<16x32xf32> -> vector<16x32xf32>
    %c0_26 = arith.constant 0 : index
    %c0_27 = arith.constant 0 : index
    %65 = vector.load %arg13[%c0_26, %c0_27] : memref<16x128xf32, #tpu.memory_space<vmem>>, vector<16x32xf32>
    tpu.vector_store %arg13[%c0_26, %c0_27], %64 {strides = array<i32>} : memref<16x128xf32, #tpu.memory_space<vmem>>, vector<16x32xf32>,
    %66 = vector.extract_strided_slice %36 {offsets = [0, 32], sizes = [16, 32], strides = [1, 1]} : vector<16x128xbf16> to vector<16x32xbf16>
    %67 = vector.extract_strided_slice %45 {offsets = [0, 32], sizes = [16, 32], strides = [1, 1]} : vector<16x128xbf16> to vector<16x32xbf16>
    %68 = vector.extract_strided_slice %47 {offsets = [0, 32], sizes = [16, 32], strides = [1, 1]} : vector<16x128xbf16> to vector<16x32xbf16>
    %cst_28 = arith.constant dense<0.000000e+00> : vector<16x16xf32>
    %69 = tpu.matmul %66, %67, %cst_28 {dimension_numbers = #tpu.dot_dimension_numbers<[1], [1], [0], [0], [0, 0, 1, 0], [], []>} : vector<16x32xbf16>, vector<16x32xbf16>, vector<16x16xf32> -> vector<16x16xf32>
    %70 = arith.addf %69, %7 : vector<16x16xf32>
    %cst_29 = arith.constant dense<0xFF800000> : vector<16xf32>
    %71 = vector.multi_reduction <maximumf>, %70, %cst_29 [1] : vector<16x16xf32> to vector<16xf32>
    %72 = vector.shape_cast %71 : vector<16xf32> to vector<16x1xf32>
    %73 = vector.broadcast %72 : vector<16x1xf32> to vector<16x16xf32>
    %74 = arith.subf %70, %73 : vector<16x16xf32>
    %75 = math.exp %74 : vector<16x16xf32>
    %cst_30 = arith.constant dense<0.000000e+00> : vector<16xf32>
    %76 = vector.multi_reduction <add>, %75, %cst_30 [1] : vector<16x16xf32> to vector<16xf32>
    %77 = vector.shape_cast %76 : vector<16xf32> to vector<16x1xf32>
    %78 = tpu.reciprocal %77 {approx = true} : vector<16x1xf32> -> vector<16x1xf32>
    %79 = vector.broadcast %78 : vector<16x1xf32> to vector<16x16xf32>
    %80 = arith.mulf %75, %79 : vector<16x16xf32>
    %81 = arith.truncf %80 : vector<16x16xf32> to vector<16x16xbf16>
    %cst_31 = arith.constant dense<0.000000e+00> : vector<16x32xf32>
    %82 = tpu.matmul %81, %68, %cst_31 {dimension_numbers = #tpu.dot_dimension_numbers<[1], [0], [0], [1], [0, 0, 1, 1], [], []>} : vector<16x16xbf16>, vector<16x32xbf16>, vector<16x32xf32> -> vector<16x32xf32>
    %c0_32 = arith.constant 0 : index
    %c32 = arith.constant 32 : index
    %83 = vector.load %arg13[%c0_32, %c32] : memref<16x128xf32, #tpu.memory_space<vmem>>, vector<16x32xf32>
    tpu.vector_store %arg13[%c0_32, %c32], %82 {strides = array<i32>} : memref<16x128xf32, #tpu.memory_space<vmem>>, vector<16x32xf32>,
    %84 = vector.extract_strided_slice %36 {offsets = [0, 64], sizes = [16, 32], strides = [1, 1]} : vector<16x128xbf16> to vector<16x32xbf16>
    %85 = vector.extract_strided_slice %45 {offsets = [0, 64], sizes = [16, 32], strides = [1, 1]} : vector<16x128xbf16> to vector<16x32xbf16>
    %86 = vector.extract_strided_slice %47 {offsets = [0, 64], sizes = [16, 32], strides = [1, 1]} : vector<16x128xbf16> to vector<16x32xbf16>
    %cst_33 = arith.constant dense<0.000000e+00> : vector<16x16xf32>
    %87 = tpu.matmul %84, %85, %cst_33 {dimension_numbers = #tpu.dot_dimension_numbers<[1], [1], [0], [0], [0, 0, 1, 0], [], []>} : vector<16x32xbf16>, vector<16x32xbf16>, vector<16x16xf32> -> vector<16x16xf32>
    %88 = arith.addf %87, %7 : vector<16x16xf32>
    %cst_34 = arith.constant dense<0xFF800000> : vector<16xf32>
    %89 = vector.multi_reduction <maximumf>, %88, %cst_34 [1] : vector<16x16xf32> to vector<16xf32>
    %90 = vector.shape_cast %89 : vector<16xf32> to vector<16x1xf32>
    %91 = vector.broadcast %90 : vector<16x1xf32> to vector<16x16xf32>
    %92 = arith.subf %88, %91 : vector<16x16xf32>
    %93 = math.exp %92 : vector<16x16xf32>
    %cst_35 = arith.constant dense<0.000000e+00> : vector<16xf32>
    %94 = vector.multi_reduction <add>, %93, %cst_35 [1] : vector<16x16xf32> to vector<16xf32>
    %95 = vector.shape_cast %94 : vector<16xf32> to vector<16x1xf32>
    %96 = tpu.reciprocal %95 {approx = true} : vector<16x1xf32> -> vector<16x1xf32>
    %97 = vector.broadcast %96 : vector<16x1xf32> to vector<16x16xf32>
    %98 = arith.mulf %93, %97 : vector<16x16xf32>
    %99 = arith.truncf %98 : vector<16x16xf32> to vector<16x16xbf16>
    %cst_36 = arith.constant dense<0.000000e+00> : vector<16x32xf32>
    %100 = tpu.matmul %99, %86, %cst_36 {dimension_numbers = #tpu.dot_dimension_numbers<[1], [0], [0], [1], [0, 0, 1, 1], [], []>} : vector<16x16xbf16>, vector<16x32xbf16>, vector<16x32xf32> -> vector<16x32xf32>
    %c0_37 = arith.constant 0 : index
    %c64 = arith.constant 64 : index
    %101 = vector.load %arg13[%c0_37, %c64] : memref<16x128xf32, #tpu.memory_space<vmem>>, vector<16x32xf32>
    tpu.vector_store %arg13[%c0_37, %c64], %100 {strides = array<i32>} : memref<16x128xf32, #tpu.memory_space<vmem>>, vector<16x32xf32>,
    %102 = vector.extract_strided_slice %36 {offsets = [0, 96], sizes = [16, 32], strides = [1, 1]} : vector<16x128xbf16> to vector<16x32xbf16>
    %103 = vector.extract_strided_slice %45 {offsets = [0, 96], sizes = [16, 32], strides = [1, 1]} : vector<16x128xbf16> to vector<16x32xbf16>
    %104 = vector.extract_strided_slice %47 {offsets = [0, 96], sizes = [16, 32], strides = [1, 1]} : vector<16x128xbf16> to vector<16x32xbf16>
    %cst_38 = arith.constant dense<0.000000e+00> : vector<16x16xf32>
    %105 = tpu.matmul %102, %103, %cst_38 {dimension_numbers = #tpu.dot_dimension_numbers<[1], [1], [0], [0], [0, 0, 1, 0], [], []>} : vector<16x32xbf16>, vector<16x32xbf16>, vector<16x16xf32> -> vector<16x16xf32>
    %106 = arith.addf %105, %7 : vector<16x16xf32>
    %cst_39 = arith.constant dense<0xFF800000> : vector<16xf32>
    %107 = vector.multi_reduction <maximumf>, %106, %cst_39 [1] : vector<16x16xf32> to vector<16xf32>
    %108 = vector.shape_cast %107 : vector<16xf32> to vector<16x1xf32>
    %109 = vector.broadcast %108 : vector<16x1xf32> to vector<16x16xf32>
    %110 = arith.subf %106, %109 : vector<16x16xf32>
    %111 = math.exp %110 : vector<16x16xf32>
    %cst_40 = arith.constant dense<0.000000e+00> : vector<16xf32>
    %112 = vector.multi_reduction <add>, %111, %cst_40 [1] : vector<16x16xf32> to vector<16xf32>
    %113 = vector.shape_cast %112 : vector<16xf32> to vector<16x1xf32>
    %114 = tpu.reciprocal %113 {approx = true} : vector<16x1xf32> -> vector<16x1xf32>
    %115 = vector.broadcast %114 : vector<16x1xf32> to vector<16x16xf32>
    %116 = arith.mulf %111, %115 : vector<16x16xf32>
    %117 = arith.truncf %116 : vector<16x16xf32> to vector<16x16xbf16>
    %cst_41 = arith.constant dense<0.000000e+00> : vector<16x32xf32>
    %118 = tpu.matmul %117, %104, %cst_41 {dimension_numbers = #tpu.dot_dimension_numbers<[1], [0], [0], [1], [0, 0, 1, 1], [], []>} : vector<16x16xbf16>, vector<16x32xbf16>, vector<16x32xf32> -> vector<16x32xf32>
    %c0_42 = arith.constant 0 : index
    %c96 = arith.constant 96 : index
    %119 = vector.load %arg13[%c0_42, %c96] : memref<16x128xf32, #tpu.memory_space<vmem>>, vector<16x32xf32>
    tpu.vector_store %arg13[%c0_42, %c96], %118 {strides = array<i32>} : memref<16x128xf32, #tpu.memory_space<vmem>>, vector<16x32xf32>,
    %c0_43 = arith.constant 0 : index
    %c0_44 = arith.constant 0 : index
    %120 = vector.load %arg13[%c0_43, %c0_44] : memref<16x128xf32, #tpu.memory_space<vmem>>, vector<16x128xf32>
    %c0_45 = arith.constant 0 : index
    %c0_46 = arith.constant 0 : index
    %c0_47 = arith.constant 0 : index
    %121 = vector.load %arg7[%c0_45, %c0_46, %c0_47] : memref<2x128x128xbf16, #tpu.memory_space<vmem>>, vector<1x128x128xbf16>
    %122 = vector.shape_cast %121 : vector<1x128x128xbf16> to vector<128x128xbf16>
    %123 = arith.truncf %120 : vector<16x128xf32> to vector<16x128xbf16>
    %cst_48 = arith.constant dense<0.000000e+00> : vector<16x128xf32>
    %124 = tpu.matmul %123, %122, %cst_48 {dimension_numbers = #tpu.dot_dimension_numbers<[1], [0], [0], [1], [0, 0, 1, 1], [], []>} : vector<16x128xbf16>, vector<128x128xbf16>, vector<16x128xf32> -> vector<16x128xf32>
    %125 = arith.addf %0, %124 : vector<16x128xf32>
    %c0_49 = arith.constant 0 : index
    %c0_50 = arith.constant 0 : index
    %c0_51 = arith.constant 0 : index
    %126 = vector.load %arg5[%c0_49, %c0_50, %c0_51] : memref<2x1x128xf32, #tpu.memory_space<vmem>>, vector<1x1x128xf32>
    %127 = vector.shape_cast %126 : vector<1x1x128xf32> to vector<1x128xf32>
    %128 = arith.mulf %125, %125 : vector<16x128xf32>
    %cst_52 = arith.constant dense<0.000000e+00> : vector<16xf32>
    %129 = vector.multi_reduction <add>, %128, %cst_52 [1] : vector<16x128xf32> to vector<16xf32>
    %130 = vector.shape_cast %129 : vector<16xf32> to vector<16x1xf32>
    %cst_53 = arith.constant 1.280000e+02 : f32
    %131 = vector.broadcast %cst_53 : f32 to vector<16x1xf32>
    %132 = arith.divf %130, %131 : vector<16x1xf32>
    %cst_54 = arith.constant 9.99999974E-6 : f32
    %133 = vector.broadcast %cst_54 : f32 to vector<16x1xf32>
    %134 = arith.addf %132, %133 : vector<16x1xf32>
    %135 = math.rsqrt %134 : vector<16x1xf32>
    %136 = vector.broadcast %135 : vector<16x1xf32> to vector<16x128xf32>
    %137 = arith.mulf %125, %136 : vector<16x128xf32>
    %138 = vector.broadcast %127 : vector<1x128xf32> to vector<16x128xf32>
    %139 = arith.mulf %137, %138 : vector<16x128xf32>
    %c0_55 = arith.constant 0 : index
    %c0_56 = arith.constant 0 : index
    %c0_57 = arith.constant 0 : index
    %140 = vector.load %arg8[%c0_55, %c0_56, %c0_57] : memref<2x128x768xbf16, #tpu.memory_space<vmem>>, vector<1x128x768xbf16>
    %141 = vector.shape_cast %140 : vector<1x128x768xbf16> to vector<128x768xbf16>
    %142 = arith.truncf %139 : vector<16x128xf32> to vector<16x128xbf16>
    %cst_58 = arith.constant dense<0.000000e+00> : vector<16x768xf32>
    %143 = tpu.matmul %142, %141, %cst_58 {dimension_numbers = #tpu.dot_dimension_numbers<[1], [0], [0], [1], [0, 0, 1, 1], [], []>} : vector<16x128xbf16>, vector<128x768xbf16>, vector<16x768xf32> -> vector<16x768xf32>
    %144 = vector.extract_strided_slice %143 {offsets = [0, 0], sizes = [16, 384], strides = [1, 1]} : vector<16x768xf32> to vector<16x384xf32>
    %145 = vector.extract_strided_slice %143 {offsets = [0, 384], sizes = [16, 384], strides = [1, 1]} : vector<16x768xf32> to vector<16x384xf32>
    %146 = arith.negf %144 : vector<16x384xf32>
    %147 = math.exp %146 : vector<16x384xf32>
    %cst_59 = arith.constant 1.000000e+00 : f32
    %148 = vector.broadcast %cst_59 : f32 to vector<16x384xf32>
    %149 = arith.addf %148, %147 : vector<16x384xf32>
    %150 = arith.divf %148, %149 : vector<16x384xf32>
    %151 = arith.mulf %144, %150 : vector<16x384xf32>
    %152 = arith.mulf %151, %145 : vector<16x384xf32>
    %c0_60 = arith.constant 0 : index
    %c0_61 = arith.constant 0 : index
    %c0_62 = arith.constant 0 : index
    %153 = vector.load %arg9[%c0_60, %c0_61, %c0_62] : memref<2x384x128xbf16, #tpu.memory_space<vmem>>, vector<1x384x128xbf16>
    %154 = vector.shape_cast %153 : vector<1x384x128xbf16> to vector<384x128xbf16>
    %155 = arith.truncf %152 : vector<16x384xf32> to vector<16x384xbf16>
    %cst_63 = arith.constant dense<0.000000e+00> : vector<16x128xf32>
    %156 = tpu.matmul %155, %154, %cst_63 {dimension_numbers = #tpu.dot_dimension_numbers<[1], [0], [0], [1], [0, 0, 1, 1], [], []>} : vector<16x384xbf16>, vector<384x128xbf16>, vector<16x128xf32> -> vector<16x128xf32>
    %157 = arith.addf %125, %156 : vector<16x128xf32>
    %c1_64 = arith.constant 1 : index
    %c0_65 = arith.constant 0 : index
    %c0_66 = arith.constant 0 : index
    %158 = vector.load %arg4[%c1_64, %c0_65, %c0_66] : memref<2x1x128xf32, #tpu.memory_space<vmem>>, vector<1x1x128xf32>
    %159 = vector.shape_cast %158 : vector<1x1x128xf32> to vector<1x128xf32>
    %160 = arith.mulf %157, %157 : vector<16x128xf32>
    %cst_67 = arith.constant dense<0.000000e+00> : vector<16xf32>
    %161 = vector.multi_reduction <add>, %160, %cst_67 [1] : vector<16x128xf32> to vector<16xf32>
    %162 = vector.shape_cast %161 : vector<16xf32> to vector<16x1xf32>
    %cst_68 = arith.constant 1.280000e+02 : f32
    %163 = vector.broadcast %cst_68 : f32 to vector<16x1xf32>
    %164 = arith.divf %162, %163 : vector<16x1xf32>
    %cst_69 = arith.constant 9.99999974E-6 : f32
    %165 = vector.broadcast %cst_69 : f32 to vector<16x1xf32>
    %166 = arith.addf %164, %165 : vector<16x1xf32>
    %167 = math.rsqrt %166 : vector<16x1xf32>
    %168 = vector.broadcast %167 : vector<16x1xf32> to vector<16x128xf32>
    %169 = arith.mulf %157, %168 : vector<16x128xf32>
    %170 = vector.broadcast %159 : vector<1x128xf32> to vector<16x128xf32>
    %171 = arith.mulf %169, %170 : vector<16x128xf32>
    %c1_70 = arith.constant 1 : index
    %c0_71 = arith.constant 0 : index
    %c0_72 = arith.constant 0 : index
    %172 = vector.load %arg6[%c1_70, %c0_71, %c0_72] : memref<2x128x384xbf16, #tpu.memory_space<vmem>>, vector<1x128x384xbf16>
    %173 = vector.shape_cast %172 : vector<1x128x384xbf16> to vector<128x384xbf16>
    %174 = arith.truncf %171 : vector<16x128xf32> to vector<16x128xbf16>
    %cst_73 = arith.constant dense<0.000000e+00> : vector<16x384xf32>
    %175 = tpu.matmul %174, %173, %cst_73 {dimension_numbers = #tpu.dot_dimension_numbers<[1], [0], [0], [1], [0, 0, 1, 1], [], []>} : vector<16x128xbf16>, vector<128x384xbf16>, vector<16x384xf32> -> vector<16x384xf32>
    %176 = vector.extract_strided_slice %175 {offsets = [0, 0], sizes = [16, 128], strides = [1, 1]} : vector<16x384xf32> to vector<16x128xf32>
    %c112_i32_74 = arith.constant 112 : i32
    %177 = tpu.dynamic_rotate %176 by %c112_i32_74 dim 1 : vector<16x128xf32>, i32 -> vector<16x128xf32>
    %c16_i32_75 = arith.constant 16 : i32
    %178 = tpu.dynamic_rotate %176 by %c16_i32_75 dim 1 : vector<16x128xf32>, i32 -> vector<16x128xf32>
    %179 = arith.mulf %176, %2 : vector<16x128xf32>
    %180 = arith.mulf %177, %4 : vector<16x128xf32>
    %181 = arith.addf %179, %180 : vector<16x128xf32>
    %182 = arith.mulf %178, %6 : vector<16x128xf32>
    %183 = arith.addf %181, %182 : vector<16x128xf32>
    %cst_76 = arith.constant 0.176776692 : f32
    %184 = vector.broadcast %cst_76 : f32 to vector<16x128xf32>
    %185 = arith.mulf %183, %184 : vector<16x128xf32>
    %186 = arith.truncf %185 : vector<16x128xf32> to vector<16x128xbf16>
    %187 = vector.extract_strided_slice %175 {offsets = [0, 128], sizes = [16, 128], strides = [1, 1]} : vector<16x384xf32> to vector<16x128xf32>
    %c112_i32_77 = arith.constant 112 : i32
    %188 = tpu.dynamic_rotate %187 by %c112_i32_77 dim 1 : vector<16x128xf32>, i32 -> vector<16x128xf32>
    %c16_i32_78 = arith.constant 16 : i32
    %189 = tpu.dynamic_rotate %187 by %c16_i32_78 dim 1 : vector<16x128xf32>, i32 -> vector<16x128xf32>
    %190 = arith.mulf %187, %2 : vector<16x128xf32>
    %191 = arith.mulf %188, %4 : vector<16x128xf32>
    %192 = arith.addf %190, %191 : vector<16x128xf32>
    %193 = arith.mulf %189, %6 : vector<16x128xf32>
    %194 = arith.addf %192, %193 : vector<16x128xf32>
    %195 = arith.truncf %194 : vector<16x128xf32> to vector<16x128xbf16>
    %196 = vector.extract_strided_slice %175 {offsets = [0, 256], sizes = [16, 128], strides = [1, 1]} : vector<16x384xf32> to vector<16x128xf32>
    %197 = arith.truncf %196 : vector<16x128xf32> to vector<16x128xbf16>
    %198 = vector.extract_strided_slice %186 {offsets = [0, 0], sizes = [16, 32], strides = [1, 1]} : vector<16x128xbf16> to vector<16x32xbf16>
    %199 = vector.extract_strided_slice %195 {offsets = [0, 0], sizes = [16, 32], strides = [1, 1]} : vector<16x128xbf16> to vector<16x32xbf16>
    %200 = vector.extract_strided_slice %197 {offsets = [0, 0], sizes = [16, 32], strides = [1, 1]} : vector<16x128xbf16> to vector<16x32xbf16>
    %cst_79 = arith.constant dense<0.000000e+00> : vector<16x16xf32>
    %201 = tpu.matmul %198, %199, %cst_79 {dimension_numbers = #tpu.dot_dimension_numbers<[1], [1], [0], [0], [0, 0, 1, 0], [], []>} : vector<16x32xbf16>, vector<16x32xbf16>, vector<16x16xf32> -> vector<16x16xf32>
    %202 = arith.addf %201, %7 : vector<16x16xf32>
    %cst_80 = arith.constant dense<0xFF800000> : vector<16xf32>
    %203 = vector.multi_reduction <maximumf>, %202, %cst_80 [1] : vector<16x16xf32> to vector<16xf32>
    %204 = vector.shape_cast %203 : vector<16xf32> to vector<16x1xf32>
    %205 = vector.broadcast %204 : vector<16x1xf32> to vector<16x16xf32>
    %206 = arith.subf %202, %205 : vector<16x16xf32>
    %207 = math.exp %206 : vector<16x16xf32>
    %cst_81 = arith.constant dense<0.000000e+00> : vector<16xf32>
    %208 = vector.multi_reduction <add>, %207, %cst_81 [1] : vector<16x16xf32> to vector<16xf32>
    %209 = vector.shape_cast %208 : vector<16xf32> to vector<16x1xf32>
    %210 = tpu.reciprocal %209 {approx = true} : vector<16x1xf32> -> vector<16x1xf32>
    %211 = vector.broadcast %210 : vector<16x1xf32> to vector<16x16xf32>
    %212 = arith.mulf %207, %211 : vector<16x16xf32>
    %213 = arith.truncf %212 : vector<16x16xf32> to vector<16x16xbf16>
    %cst_82 = arith.constant dense<0.000000e+00> : vector<16x32xf32>
    %214 = tpu.matmul %213, %200, %cst_82 {dimension_numbers = #tpu.dot_dimension_numbers<[1], [0], [0], [1], [0, 0, 1, 1], [], []>} : vector<16x16xbf16>, vector<16x32xbf16>, vector<16x32xf32> -> vector<16x32xf32>
    %c0_83 = arith.constant 0 : index
    %c0_84 = arith.constant 0 : index
    %215 = vector.load %arg13[%c0_83, %c0_84] : memref<16x128xf32, #tpu.memory_space<vmem>>, vector<16x32xf32>
    tpu.vector_store %arg13[%c0_83, %c0_84], %214 {strides = array<i32>} : memref<16x128xf32, #tpu.memory_space<vmem>>, vector<16x32xf32>,
    %216 = vector.extract_strided_slice %186 {offsets = [0, 32], sizes = [16, 32], strides = [1, 1]} : vector<16x128xbf16> to vector<16x32xbf16>
    %217 = vector.extract_strided_slice %195 {offsets = [0, 32], sizes = [16, 32], strides = [1, 1]} : vector<16x128xbf16> to vector<16x32xbf16>
    %218 = vector.extract_strided_slice %197 {offsets = [0, 32], sizes = [16, 32], strides = [1, 1]} : vector<16x128xbf16> to vector<16x32xbf16>
    %cst_85 = arith.constant dense<0.000000e+00> : vector<16x16xf32>
    %219 = tpu.matmul %216, %217, %cst_85 {dimension_numbers = #tpu.dot_dimension_numbers<[1], [1], [0], [0], [0, 0, 1, 0], [], []>} : vector<16x32xbf16>, vector<16x32xbf16>, vector<16x16xf32> -> vector<16x16xf32>
    %220 = arith.addf %219, %7 : vector<16x16xf32>
    %cst_86 = arith.constant dense<0xFF800000> : vector<16xf32>
    %221 = vector.multi_reduction <maximumf>, %220, %cst_86 [1] : vector<16x16xf32> to vector<16xf32>
    %222 = vector.shape_cast %221 : vector<16xf32> to vector<16x1xf32>
    %223 = vector.broadcast %222 : vector<16x1xf32> to vector<16x16xf32>
    %224 = arith.subf %220, %223 : vector<16x16xf32>
    %225 = math.exp %224 : vector<16x16xf32>
    %cst_87 = arith.constant dense<0.000000e+00> : vector<16xf32>
    %226 = vector.multi_reduction <add>, %225, %cst_87 [1] : vector<16x16xf32> to vector<16xf32>
    %227 = vector.shape_cast %226 : vector<16xf32> to vector<16x1xf32>
    %228 = tpu.reciprocal %227 {approx = true} : vector<16x1xf32> -> vector<16x1xf32>
    %229 = vector.broadcast %228 : vector<16x1xf32> to vector<16x16xf32>
    %230 = arith.mulf %225, %229 : vector<16x16xf32>
    %231 = arith.truncf %230 : vector<16x16xf32> to vector<16x16xbf16>
    %cst_88 = arith.constant dense<0.000000e+00> : vector<16x32xf32>
    %232 = tpu.matmul %231, %218, %cst_88 {dimension_numbers = #tpu.dot_dimension_numbers<[1], [0], [0], [1], [0, 0, 1, 1], [], []>} : vector<16x16xbf16>, vector<16x32xbf16>, vector<16x32xf32> -> vector<16x32xf32>
    %c0_89 = arith.constant 0 : index
    %c32_90 = arith.constant 32 : index
    %233 = vector.load %arg13[%c0_89, %c32_90] : memref<16x128xf32, #tpu.memory_space<vmem>>, vector<16x32xf32>
    tpu.vector_store %arg13[%c0_89, %c32_90], %232 {strides = array<i32>} : memref<16x128xf32, #tpu.memory_space<vmem>>, vector<16x32xf32>,
    %234 = vector.extract_strided_slice %186 {offsets = [0, 64], sizes = [16, 32], strides = [1, 1]} : vector<16x128xbf16> to vector<16x32xbf16>
    %235 = vector.extract_strided_slice %195 {offsets = [0, 64], sizes = [16, 32], strides = [1, 1]} : vector<16x128xbf16> to vector<16x32xbf16>
    %236 = vector.extract_strided_slice %197 {offsets = [0, 64], sizes = [16, 32], strides = [1, 1]} : vector<16x128xbf16> to vector<16x32xbf16>
    %cst_91 = arith.constant dense<0.000000e+00> : vector<16x16xf32>
    %237 = tpu.matmul %234, %235, %cst_91 {dimension_numbers = #tpu.dot_dimension_numbers<[1], [1], [0], [0], [0, 0, 1, 0], [], []>} : vector<16x32xbf16>, vector<16x32xbf16>, vector<16x16xf32> -> vector<16x16xf32>
    %238 = arith.addf %237, %7 : vector<16x16xf32>
    %cst_92 = arith.constant dense<0xFF800000> : vector<16xf32>
    %239 = vector.multi_reduction <maximumf>, %238, %cst_92 [1] : vector<16x16xf32> to vector<16xf32>
    %240 = vector.shape_cast %239 : vector<16xf32> to vector<16x1xf32>
    %241 = vector.broadcast %240 : vector<16x1xf32> to vector<16x16xf32>
    %242 = arith.subf %238, %241 : vector<16x16xf32>
    %243 = math.exp %242 : vector<16x16xf32>
    %cst_93 = arith.constant dense<0.000000e+00> : vector<16xf32>
    %244 = vector.multi_reduction <add>, %243, %cst_93 [1] : vector<16x16xf32> to vector<16xf32>
    %245 = vector.shape_cast %244 : vector<16xf32> to vector<16x1xf32>
    %246 = tpu.reciprocal %245 {approx = true} : vector<16x1xf32> -> vector<16x1xf32>
    %247 = vector.broadcast %246 : vector<16x1xf32> to vector<16x16xf32>
    %248 = arith.mulf %243, %247 : vector<16x16xf32>
    %249 = arith.truncf %248 : vector<16x16xf32> to vector<16x16xbf16>
    %cst_94 = arith.constant dense<0.000000e+00> : vector<16x32xf32>
    %250 = tpu.matmul %249, %236, %cst_94 {dimension_numbers = #tpu.dot_dimension_numbers<[1], [0], [0], [1], [0, 0, 1, 1], [], []>} : vector<16x16xbf16>, vector<16x32xbf16>, vector<16x32xf32> -> vector<16x32xf32>
    %c0_95 = arith.constant 0 : index
    %c64_96 = arith.constant 64 : index
    %251 = vector.load %arg13[%c0_95, %c64_96] : memref<16x128xf32, #tpu.memory_space<vmem>>, vector<16x32xf32>
    tpu.vector_store %arg13[%c0_95, %c64_96], %250 {strides = array<i32>} : memref<16x128xf32, #tpu.memory_space<vmem>>, vector<16x32xf32>,
    %252 = vector.extract_strided_slice %186 {offsets = [0, 96], sizes = [16, 32], strides = [1, 1]} : vector<16x128xbf16> to vector<16x32xbf16>
    %253 = vector.extract_strided_slice %195 {offsets = [0, 96], sizes = [16, 32], strides = [1, 1]} : vector<16x128xbf16> to vector<16x32xbf16>
    %254 = vector.extract_strided_slice %197 {offsets = [0, 96], sizes = [16, 32], strides = [1, 1]} : vector<16x128xbf16> to vector<16x32xbf16>
    %cst_97 = arith.constant dense<0.000000e+00> : vector<16x16xf32>
    %255 = tpu.matmul %252, %253, %cst_97 {dimension_numbers = #tpu.dot_dimension_numbers<[1], [1], [0], [0], [0, 0, 1, 0], [], []>} : vector<16x32xbf16>, vector<16x32xbf16>, vector<16x16xf32> -> vector<16x16xf32>
    %256 = arith.addf %255, %7 : vector<16x16xf32>
    %cst_98 = arith.constant dense<0xFF800000> : vector<16xf32>
    %257 = vector.multi_reduction <maximumf>, %256, %cst_98 [1] : vector<16x16xf32> to vector<16xf32>
    %258 = vector.shape_cast %257 : vector<16xf32> to vector<16x1xf32>
    %259 = vector.broadcast %258 : vector<16x1xf32> to vector<16x16xf32>
    %260 = arith.subf %256, %259 : vector<16x16xf32>
    %261 = math.exp %260 : vector<16x16xf32>
    %cst_99 = arith.constant dense<0.000000e+00> : vector<16xf32>
    %262 = vector.multi_reduction <add>, %261, %cst_99 [1] : vector<16x16xf32> to vector<16xf32>
    %263 = vector.shape_cast %262 : vector<16xf32> to vector<16x1xf32>
    %264 = tpu.reciprocal %263 {approx = true} : vector<16x1xf32> -> vector<16x1xf32>
    %265 = vector.broadcast %264 : vector<16x1xf32> to vector<16x16xf32>
    %266 = arith.mulf %261, %265 : vector<16x16xf32>
    %267 = arith.truncf %266 : vector<16x16xf32> to vector<16x16xbf16>
    %cst_100 = arith.constant dense<0.000000e+00> : vector<16x32xf32>
    %268 = tpu.matmul %267, %254, %cst_100 {dimension_numbers = #tpu.dot_dimension_numbers<[1], [0], [0], [1], [0, 0, 1, 1], [], []>} : vector<16x16xbf16>, vector<16x32xbf16>, vector<16x32xf32> -> vector<16x32xf32>
    %c0_101 = arith.constant 0 : index
    %c96_102 = arith.constant 96 : index
    %269 = vector.load %arg13[%c0_101, %c96_102] : memref<16x128xf32, #tpu.memory_space<vmem>>, vector<16x32xf32>
    tpu.vector_store %arg13[%c0_101, %c96_102], %268 {strides = array<i32>} : memref<16x128xf32, #tpu.memory_space<vmem>>, vector<16x32xf32>,
    %c0_103 = arith.constant 0 : index
    %c0_104 = arith.constant 0 : index
    %270 = vector.load %arg13[%c0_103, %c0_104] : memref<16x128xf32, #tpu.memory_space<vmem>>, vector<16x128xf32>
    %c1_105 = arith.constant 1 : index
    %c0_106 = arith.constant 0 : index
    %c0_107 = arith.constant 0 : index
    %271 = vector.load %arg7[%c1_105, %c0_106, %c0_107] : memref<2x128x128xbf16, #tpu.memory_space<vmem>>, vector<1x128x128xbf16>
    %272 = vector.shape_cast %271 : vector<1x128x128xbf16> to vector<128x128xbf16>
    %273 = arith.truncf %270 : vector<16x128xf32> to vector<16x128xbf16>
    %cst_108 = arith.constant dense<0.000000e+00> : vector<16x128xf32>
    %274 = tpu.matmul %273, %272, %cst_108 {dimension_numbers = #tpu.dot_dimension_numbers<[1], [0], [0], [1], [0, 0, 1, 1], [], []>} : vector<16x128xbf16>, vector<128x128xbf16>, vector<16x128xf32> -> vector<16x128xf32>
    %275 = arith.addf %157, %274 : vector<16x128xf32>
    %c1_109 = arith.constant 1 : index
    %c0_110 = arith.constant 0 : index
    %c0_111 = arith.constant 0 : index
    %276 = vector.load %arg5[%c1_109, %c0_110, %c0_111] : memref<2x1x128xf32, #tpu.memory_space<vmem>>, vector<1x1x128xf32>
    %277 = vector.shape_cast %276 : vector<1x1x128xf32> to vector<1x128xf32>
    %278 = arith.mulf %275, %275 : vector<16x128xf32>
    %cst_112 = arith.constant dense<0.000000e+00> : vector<16xf32>
    %279 = vector.multi_reduction <add>, %278, %cst_112 [1] : vector<16x128xf32> to vector<16xf32>
    %280 = vector.shape_cast %279 : vector<16xf32> to vector<16x1xf32>
    %cst_113 = arith.constant 1.280000e+02 : f32
    %281 = vector.broadcast %cst_113 : f32 to vector<16x1xf32>
    %282 = arith.divf %280, %281 : vector<16x1xf32>
    %cst_114 = arith.constant 9.99999974E-6 : f32
    %283 = vector.broadcast %cst_114 : f32 to vector<16x1xf32>
    %284 = arith.addf %282, %283 : vector<16x1xf32>
    %285 = math.rsqrt %284 : vector<16x1xf32>
    %286 = vector.broadcast %285 : vector<16x1xf32> to vector<16x128xf32>
    %287 = arith.mulf %275, %286 : vector<16x128xf32>
    %288 = vector.broadcast %277 : vector<1x128xf32> to vector<16x128xf32>
    %289 = arith.mulf %287, %288 : vector<16x128xf32>
    %c1_115 = arith.constant 1 : index
    %c0_116 = arith.constant 0 : index
    %c0_117 = arith.constant 0 : index
    %290 = vector.load %arg8[%c1_115, %c0_116, %c0_117] : memref<2x128x768xbf16, #tpu.memory_space<vmem>>, vector<1x128x768xbf16>
    %291 = vector.shape_cast %290 : vector<1x128x768xbf16> to vector<128x768xbf16>
    %292 = arith.truncf %289 : vector<16x128xf32> to vector<16x128xbf16>
    %cst_118 = arith.constant dense<0.000000e+00> : vector<16x768xf32>
    %293 = tpu.matmul %292, %291, %cst_118 {dimension_numbers = #tpu.dot_dimension_numbers<[1], [0], [0], [1], [0, 0, 1, 1], [], []>} : vector<16x128xbf16>, vector<128x768xbf16>, vector<16x768xf32> -> vector<16x768xf32>
    %294 = vector.extract_strided_slice %293 {offsets = [0, 0], sizes = [16, 384], strides = [1, 1]} : vector<16x768xf32> to vector<16x384xf32>
    %295 = vector.extract_strided_slice %293 {offsets = [0, 384], sizes = [16, 384], strides = [1, 1]} : vector<16x768xf32> to vector<16x384xf32>
    %296 = arith.negf %294 : vector<16x384xf32>
    %297 = math.exp %296 : vector<16x384xf32>
    %cst_119 = arith.constant 1.000000e+00 : f32
    %298 = vector.broadcast %cst_119 : f32 to vector<16x384xf32>
    %299 = arith.addf %298, %297 : vector<16x384xf32>
    %300 = arith.divf %298, %299 : vector<16x384xf32>
    %301 = arith.mulf %294, %300 : vector<16x384xf32>
    %302 = arith.mulf %301, %295 : vector<16x384xf32>
    %c1_120 = arith.constant 1 : index
    %c0_121 = arith.constant 0 : index
    %c0_122 = arith.constant 0 : index
    %303 = vector.load %arg9[%c1_120, %c0_121, %c0_122] : memref<2x384x128xbf16, #tpu.memory_space<vmem>>, vector<1x384x128xbf16>
    %304 = vector.shape_cast %303 : vector<1x384x128xbf16> to vector<384x128xbf16>
    %305 = arith.truncf %302 : vector<16x384xf32> to vector<16x384xbf16>
    %cst_123 = arith.constant dense<0.000000e+00> : vector<16x128xf32>
    %306 = tpu.matmul %305, %304, %cst_123 {dimension_numbers = #tpu.dot_dimension_numbers<[1], [0], [0], [1], [0, 0, 1, 1], [], []>} : vector<16x384xbf16>, vector<384x128xbf16>, vector<16x128xf32> -> vector<16x128xf32>
    %307 = arith.addf %275, %306 : vector<16x128xf32>
    %c0_124 = arith.constant 0 : index
    %c0_125 = arith.constant 0 : index
    %308 = vector.load %arg10[%c0_124, %c0_125] : memref<1x128xf32, #tpu.memory_space<vmem>>, vector<1x128xf32>
    %309 = arith.mulf %307, %307 : vector<16x128xf32>
    %cst_126 = arith.constant dense<0.000000e+00> : vector<16xf32>
    %310 = vector.multi_reduction <add>, %309, %cst_126 [1] : vector<16x128xf32> to vector<16xf32>
    %311 = vector.shape_cast %310 : vector<16xf32> to vector<16x1xf32>
    %cst_127 = arith.constant 1.280000e+02 : f32
    %312 = vector.broadcast %cst_127 : f32 to vector<16x1xf32>
    %313 = arith.divf %311, %312 : vector<16x1xf32>
    %cst_128 = arith.constant 9.99999974E-6 : f32
    %314 = vector.broadcast %cst_128 : f32 to vector<16x1xf32>
    %315 = arith.addf %313, %314 : vector<16x1xf32>
    %316 = math.rsqrt %315 : vector<16x1xf32>
    %317 = vector.broadcast %316 : vector<16x1xf32> to vector<16x128xf32>
    %318 = arith.mulf %307, %317 : vector<16x128xf32>
    %319 = vector.broadcast %308 : vector<1x128xf32> to vector<16x128xf32>
    %320 = arith.mulf %318, %319 : vector<16x128xf32>
    %c0_129 = arith.constant 0 : index
    %c0_130 = arith.constant 0 : index
    %321 = vector.load %arg11[%c0_129, %c0_130] : memref<128x256xbf16, #tpu.memory_space<vmem>>, vector<128x256xbf16>
    %322 = arith.truncf %320 : vector<16x128xf32> to vector<16x128xbf16>
    %cst_131 = arith.constant dense<0.000000e+00> : vector<16x256xf32>
    %323 = tpu.matmul %322, %321, %cst_131 {dimension_numbers = #tpu.dot_dimension_numbers<[1], [0], [0], [1], [0, 0, 1, 1], [], []>} : vector<16x128xbf16>, vector<128x256xbf16>, vector<16x256xf32> -> vector<16x256xf32>
    %c0_132 = arith.constant 0 : index
    %c0_133 = arith.constant 0 : index
    %324 = vector.load %arg12[%c0_132, %c0_133] : memref<16x256xf32, #tpu.memory_space<vmem>>, vector<16x256xf32>
    tpu.vector_store %arg12[%c0_132, %c0_133], %323 {strides = array<i32>} : memref<16x256xf32, #tpu.memory_space<vmem>>, vector<16x256xf32>,
    return
  }
  func.func @transform_0(%arg0: i32) -> (i32, i32) {
    %c0_i32 = arith.constant 0 : i32
    %c0_i32_0 = arith.constant 0 : i32
    %c0_i32_1 = arith.constant 0 : i32
    return %c0_i32, %c0_i32_0 : i32, i32
  }
  func.func @transform_1(%arg0: i32) -> (i32, i32, i32) {
    %c0_i32 = arith.constant 0 : i32
    %c0_i32_0 = arith.constant 0 : i32
    %c0_i32_1 = arith.constant 0 : i32
    %c0_i32_2 = arith.constant 0 : i32
    return %c0_i32, %c0_i32_0, %c0_i32_1 : i32, i32, i32
  }
  func.func @transform_2(%arg0: i32) -> (i32, i32) {
    %c0_i32 = arith.constant 0 : i32
    %c0_i32_0 = arith.constant 0 : i32
    %c0_i32_1 = arith.constant 0 : i32
    return %c0_i32, %c0_i32_0 : i32, i32
  }
  func.func @transform_3(%arg0: i32) -> (i32, i32, i32) {
    %c0_i32 = arith.constant 0 : i32
    %c0_i32_0 = arith.constant 0 : i32
    %c0_i32_1 = arith.constant 0 : i32
    %c0_i32_2 = arith.constant 0 : i32
    return %c0_i32, %c0_i32_0, %c0_i32_1 : i32, i32, i32
  }
  func.func @transform_4(%arg0: i32) -> (i32, i32, i32) {
    %c0_i32 = arith.constant 0 : i32
    %c0_i32_0 = arith.constant 0 : i32
    %c0_i32_1 = arith.constant 0 : i32
    %c0_i32_2 = arith.constant 0 : i32
    return %c0_i32, %c0_i32_0, %c0_i32_1 : i32, i32, i32
  }
  func.func @transform_5(%arg0: i32) -> (i32, i32, i32) {
    %c0_i32 = arith.constant 0 : i32
    %c0_i32_0 = arith.constant 0 : i32
    %c0_i32_1 = arith.constant 0 : i32
    %c0_i32_2 = arith.constant 0 : i32
    return %c0_i32, %c0_i32_0, %c0_i32_1 : i32, i32, i32
  }
  func.func @transform_6(%arg0: i32) -> (i32, i32, i32) {
    %c0_i32 = arith.constant 0 : i32
    %c0_i32_0 = arith.constant 0 : i32
    %c0_i32_1 = arith.constant 0 : i32
    %c0_i32_2 = arith.constant 0 : i32
    return %c0_i32, %c0_i32_0, %c0_i32_1 : i32, i32, i32
  }
  func.func @transform_7(%arg0: i32) -> (i32, i32, i32) {
    %c0_i32 = arith.constant 0 : i32
    %c0_i32_0 = arith.constant 0 : i32
    %c0_i32_1 = arith.constant 0 : i32
    %c0_i32_2 = arith.constant 0 : i32
    return %c0_i32, %c0_i32_0, %c0_i32_1 : i32, i32, i32
  }
  func.func @transform_8(%arg0: i32) -> (i32, i32, i32) {
    %c0_i32 = arith.constant 0 : i32
    %c0_i32_0 = arith.constant 0 : i32
    %c0_i32_1 = arith.constant 0 : i32
    %c0_i32_2 = arith.constant 0 : i32
    return %c0_i32, %c0_i32_0, %c0_i32_1 : i32, i32, i32
  }
  func.func @transform_9(%arg0: i32) -> (i32, i32) {
    %c0_i32 = arith.constant 0 : i32
    %c0_i32_0 = arith.constant 0 : i32
    %c0_i32_1 = arith.constant 0 : i32
    return %c0_i32, %c0_i32_0 : i32, i32
  }
  func.func @transform_10(%arg0: i32) -> (i32, i32) {
    %c0_i32 = arith.constant 0 : i32
    %c0_i32_0 = arith.constant 0 : i32
    %c0_i32_1 = arith.constant 0 : i32
    return %c0_i32, %c0_i32_0 : i32, i32
  }
  func.func @transform_11(%arg0: i32) -> (i32, i32) {
    %c0_i32 = arith.constant 0 : i32
    %c0_i32_0 = arith.constant 0 : i32
    %c0_i32_1 = arith.constant 0 : i32
    return %c0_i32, %c0_i32_0 : i32, i32
  }
}

</mosaic_0001>

<llo_original>
// kernel: llava_forward.1
$region0: #{llava_forward.1}
  #allocation0 [shape = 'u32[]', space=smem, size = 0x4, offset = 0x4, fixed_abs, tag = 'smem constant byte address 0x4 - core index']
  #allocation1 [shape = 'u32[144,128]{1,0:T(1,128)}', space=vmem, size = 0x12000, scoped, tag = 'internal scratch']
  #allocation2 [shape = 'f32[16,128]{1,0:T(8,128)}', space=vmem, size = 0x2000, scoped, tag = 'scratch operand']
  %s0 = inlined_call_operand.vmem [shape: f32[16,128], index: 0, kind: input, shape index: {}]
  %s1 = inlined_call_operand.vmem [shape: f32[3,16,128], index: 1, kind: input, shape index: {}]
  %s2 = inlined_call_operand.vmem [shape: f32[16,16], index: 2, kind: input, shape index: {}]
  %s3 = inlined_call_operand.vmem [shape: f32[2,1,128], index: 3, kind: input, shape index: {}]
  %s4 = inlined_call_operand.vmem [shape: f32[2,1,128], index: 4, kind: input, shape index: {}]
  %s5 = inlined_call_operand.hbm [shape: bf16[2,128,384], index: 5, kind: input, shape index: {}]
  %s6 = inlined_call_operand.vmem [shape: bf16[2,128,128], index: 6, kind: input, shape index: {}]
  %s7 = inlined_call_operand.hbm [shape: bf16[2,128,768], index: 7, kind: input, shape index: {}]
  %s8 = inlined_call_operand.hbm [shape: bf16[2,384,128], index: 8, kind: input, shape index: {}]
  %s9 = inlined_call_operand.vmem [shape: f32[1,128], index: 9, kind: input, shape index: {}]
  %s10 = inlined_call_operand.hbm [shape: bf16[128,256], index: 10, kind: input, shape index: {}]
  %s11 = inlined_call_operand.hbm [shape: f32[16,256], index: 11, kind: output, shape index: {}]
  %s12 = sld [smem:[#allocation0]]
  $region70: #{llava_forward.1} parent=0
    _
  %s14 = ssub.s32 1, %s12
  %s15 = scalar_select 0, %s14, %s12
  $region1: #{llava_forward.1} parent=0
    #allocation3 [shape = 'u8[196608]{0}', space=vmem, size = 0x30000, scoped, tag = 'input window, operand 5, single buffered']
    #allocation4 [shape = 's32[1]{0}', space=sflag, size = 0x4, scoped, tag = 'scoped memory for llava_forward.1']
    #allocation5 [shape = 's32[1]{0}', space=sflag, size = 0x4, scoped, tag = 'scoped memory for llava_forward.1']
    #allocation6 [shape = 'u8[393216]{0}', space=vmem, size = 0x60000, scoped, tag = 'input window, operand 7, single buffered']
    #allocation7 [shape = 's32[1]{0}', space=sflag, size = 0x4, scoped, tag = 'scoped memory for llava_forward.1']
    #allocation8 [shape = 'u8[196608]{0}', space=vmem, size = 0x30000, scoped, tag = 'input window, operand 8, single buffered']
    #allocation9 [shape = 'u8[65536]{0}', space=vmem, size = 0x10000, scoped, tag = 'input window, operand 10, single buffered']
    #allocation10 [shape = 's32[1]{0}', space=sflag, size = 0x4, scoped, tag = 'scoped memory for llava_forward.1']
    #allocation11 [shape = 'u8[16384]{0}', space=vmem, size = 0x4000, scoped, tag = 'output window, operand 0, single buffered']
    %16 = vsyncpa [#allocation4], 0
    %17 = vsyncpa [#allocation7], 0
    %18 = vsyncpa [#allocation10], 0
    %19 = vsyncpa [#allocation5], 0
    // Predicated region
    $region2: #{llava_forward.1} parent=1 // pred_check
      _
    $region3: #{llava_forward.1} parent=1 // pred_check_branch
      %21 = sbr.rel (0) target = $region5
    $region4: #{llava_forward.1} parent=1 // pred_region
      _
    $region5: #{llava_forward.1} parent=1 // pred_fallthru
      _
    // Predicated region
    $region6: #{llava_forward.1} parent=1 // pred_check
      _
    $region7: #{llava_forward.1} parent=1 // pred_check_branch
      %23 = sbr.rel (0) target = $region9
    $region8: #{llava_forward.1} parent=1 // pred_region
      _
    $region9: #{llava_forward.1} parent=1 // pred_fallthru
      _
    // Predicated region
    $region10: #{llava_forward.1} parent=1 // pred_check
      _
    $region11: #{llava_forward.1} parent=1 // pred_check_branch
      %25 = sbr.rel (0) target = $region13
    $region12: #{llava_forward.1} parent=1 // pred_region
      _
    $region13: #{llava_forward.1} parent=1 // pred_fallthru
      _
    // Predicated region
    $region14: #{llava_forward.1} parent=1 // pred_check
      _
    $region15: #{llava_forward.1} parent=1 // pred_check_branch
      %27 = sbr.rel (0) target = $region17
    $region16: #{llava_forward.1} parent=1 // pred_region
      _
    $region17: #{llava_forward.1} parent=1 // pred_fallthru
      _
    // Predicated region
    $region18: #{llava_forward.1} parent=1 // pred_check
      _
    $region19: #{llava_forward.1} parent=1 // pred_check_branch
      %29 = sbr.rel (0) target = $region21
    $region20: #{llava_forward.1} parent=1 // pred_region
      _
    $region21: #{llava_forward.1} parent=1 // pred_fallthru
      _
    // Predicated region
    $region22: #{llava_forward.1} parent=1 // pred_check
      _
    $region23: #{llava_forward.1} parent=1 // pred_check_branch
      %31 = sbr.rel (0) target = $region25
    $region24: #{llava_forward.1} parent=1 // pred_region
      %s33 = ssub.s32 6144, 6144
      %34 = vsyncadd [#allocation4], %s33
      %s35 = sshll.u32 [#allocation3], 4
      %s36 = int_to_ptr.vmem [resolvable:$true] %s35
      %41 = dma.hbm_to_vmem [thread:$0]  %s5, 6144, %s36, [#allocation4], 192, 192, 12
    $region25: #{llava_forward.1} parent=1 // pred_fallthru
      _
    // Predicated region
    $region26: #{llava_forward.1} parent=1 // pred_check
      _
    $region27: #{llava_forward.1} parent=1 // pred_check_branch
      %43 = sbr.rel (0) target = $region29
    $region28: #{llava_forward.1} parent=1 // pred_region
      _
    $region29: #{llava_forward.1} parent=1 // pred_fallthru
      _
    // Predicated region
    $region30: #{llava_forward.1} parent=1 // pred_check
      _
    $region31: #{llava_forward.1} parent=1 // pred_check_branch
      %45 = sbr.rel (0) target = $region33
    $region32: #{llava_forward.1} parent=1 // pred_region
      %s47 = ssub.s32 12288, 12288
      %48 = vsyncadd [#allocation7], %s47
      %s49 = sshll.u32 [#allocation6], 4
      %s50 = int_to_ptr.vmem [resolvable:$true] %s49
      %55 = dma.hbm_to_vmem [thread:$0]  %s7, 12288, %s50, [#allocation7], 384, 384, 24
    $region33: #{llava_forward.1} parent=1 // pred_fallthru
      _
    // Predicated region
    $region34: #{llava_forward.1} parent=1 // pred_check
      _
    $region35: #{llava_forward.1} parent=1 // pred_check_branch
      %57 = sbr.rel (0) target = $region37
    $region36: #{llava_forward.1} parent=1 // pred_region
      %s59 = ssub.s32 6144, 6144
      %60 = vsyncadd [#allocation7], %s59
      %s61 = sshll.u32 [#allocation8], 4
      %s62 = int_to_ptr.vmem [resolvable:$true] %s61
      %67 = dma.hbm_to_vmem [thread:$0]  %s8, 6144, %s62, [#allocation7], 64, 64, 4
    $region37: #{llava_forward.1} parent=1 // pred_fallthru
      _
    // Predicated region
    $region38: #{llava_forward.1} parent=1 // pred_check
      _
    $region39: #{llava_forward.1} parent=1 // pred_check_branch
      %69 = sbr.rel (0) target = $region41
    $region40: #{llava_forward.1} parent=1 // pred_region
      _
    $region41: #{llava_forward.1} parent=1 // pred_fallthru
      _
    // Predicated region
    $region42: #{llava_forward.1} parent=1 // pred_check
      _
    $region43: #{llava_forward.1} parent=1 // pred_check_branch
      %71 = sbr.rel (0) target = $region45
    $region44: #{llava_forward.1} parent=1 // pred_region
      %s73 = ssub.s32 2048, 2048
      %74 = vsyncadd [#allocation10], %s73
      %s75 = sshll.u32 [#allocation9], 4
      %s76 = int_to_ptr.vmem [resolvable:$true] %s75
      %81 = dma.hbm_to_vmem [thread:$0]  %s10, 2048, %s76, [#allocation10], 128, 128, 8
    $region45: #{llava_forward.1} parent=1 // pred_fallthru
      _
    // Predicated region
    $region46: #{llava_forward.1} parent=1 // pred_check
      _
    $region47: #{llava_forward.1} parent=1 // pred_check_branch
      %83 = sbr.rel (0) target = $region49
    $region48: #{llava_forward.1} parent=1 // pred_region
      %84 = dma.done [#allocation4], 6144
    $region49: #{llava_forward.1} parent=1 // pred_fallthru
      _
    // Predicated region
    $region50: #{llava_forward.1} parent=1 // pred_check
      _
    $region51: #{llava_forward.1} parent=1 // pred_check_branch
      %86 = sbr.rel (0) target = $region53
    $region52: #{llava_forward.1} parent=1 // pred_region
      %87 = dma.done [#allocation7], 12288
    $region53: #{llava_forward.1} parent=1 // pred_fallthru
      _
    // Predicated region
    $region54: #{llava_forward.1} parent=1 // pred_check
      _
    $region55: #{llava_forward.1} parent=1 // pred_check_branch
      %89 = sbr.rel (0) target = $region57
    $region56: #{llava_forward.1} parent=1 // pred_region
      %90 = dma.done [#allocation7], 6144
    $region57: #{llava_forward.1} parent=1 // pred_fallthru
      _
    // Predicated region
    $region58: #{llava_forward.1} parent=1 // pred_check
      _
    $region59: #{llava_forward.1} parent=1 // pred_check_branch
      %92 = sbr.rel (0) target = $region61
    $region60: #{llava_forward.1} parent=1 // pred_region
      %93 = dma.done [#allocation10], 2048
    $region61: #{llava_forward.1} parent=1 // pred_fallthru
      _
    %v95 = vld [vmem:[%s0] sm:$0xff]
    %v96 = vld [vmem:[%s0 + $0x8] sm:$0xff]
    %v97 = vld [vmem:[%s1] sm:$0xff]
    %v98 = vld [vmem:[%s1 + $0x8] sm:$0xff]
    %s99 = scalar_lea.vmem %s1, 16
    %v100 = vld [vmem:[%s99] sm:$0xff]
    %v101 = vld [vmem:[%s99 + $0x8] sm:$0xff]
    %s102 = scalar_lea.vmem %s1, 32
    %v103 = vld [vmem:[%s102] sm:$0xff]
    %v104 = vld [vmem:[%s102 + $0x8] sm:$0xff]
    %v105 = vld [vmem:[%s2] sm:$0xff]
    %v106 = vld [vmem:[%s2 + $0x8] sm:$0xff]
    %v107 = vld [vmem:[%s3] sm:$0x1]
    %v108 = vmul.f32 %v95, %v95
    %v109 = vmul.f32 %v96, %v96
    %110 = vadd.xlane.f32.xlu0 %v108
    %v111 = vpop.xlane.xlu0 %110
    %112 = vadd.xlane.f32.xlu0 %v109
    %v113 = vpop.xlane.xlu0 %112
    %v114 = vrcp.pop 128.0
    %v115 = vmul.f32 %v111, %v114
    %v116 = vmul.f32 %v113, %v114
    %v117 = vadd.f32 %v115, 1e-05
    %v118 = vadd.f32 %v116, 1e-05
    %v119 = vrsqrt.pop %v117
    %v120 = vrsqrt.pop %v118
    %v121 = vmul.f32 %v95, %v119
    %v122 = vmul.f32 %v96, %v120
    %v124 = vlaneseq
    %v125 = vshrl.u32 %v124, 7
    %v126 = vsub.s32 0, %v125
    %v127 = vrot.slane %v107, %v126
    %v129 = vmul.f32 %v121, %v127
    %v130 = vmul.f32 %v122, %v127
    %v131 = vld [vmem:[#allocation3] sm:$0xff]
    %v132 = vld [vmem:[#allocation3 + $0x8] sm:$0xf]
    %v133 = vld [vmem:[#allocation3 + $0xc] sm:$0xff]
    %v134 = vld [vmem:[#allocation3 + $0x14] sm:$0xf]
    %v135 = vld [vmem:[#allocation3 + $0x18] sm:$0xff]
    %v136 = vld [vmem:[#allocation3 + $0x20] sm:$0xf]
    %v137 = vld [vmem:[#allocation3 + $0x24] sm:$0xff]
    %v138 = vld [vmem:[#allocation3 + $0x2c] sm:$0xf]
    %v139 = vld [vmem:[#allocation3 + $0x30] sm:$0xff]
    %v140 = vld [vmem:[#allocation3 + $0x38] sm:$0xf]
    %v141 = vld [vmem:[#allocation3 + $0x3c] sm:$0xff]
    %v142 = vld [vmem:[#allocation3 + $0x44] sm:$0xf]
    %v143 = vld [vmem:[#allocation3 + $0x48] sm:$0xff]
    %v144 = vld [vmem:[#allocation3 + $0x50] sm:$0xf]
    %v145 = vld [vmem:[#allocation3 + $0x54] sm:$0xff]
    %v146 = vld [vmem:[#allocation3 + $0x5c] sm:$0xf]
    %v147 = vld [vmem:[#allocation3 + $0x60] sm:$0xff]
    %v148 = vld [vmem:[#allocation3 + $0x68] sm:$0xf]
    %v149 = vld [vmem:[#allocation3 + $0x6c] sm:$0xff]
    %v150 = vld [vmem:[#allocation3 + $0x74] sm:$0xf]
    %v151 = vld [vmem:[#allocation3 + $0x78] sm:$0xff]
    %v152 = vld [vmem:[#allocation3 + $0x80] sm:$0xf]
    %v153 = vld [vmem:[#allocation3 + $0x84] sm:$0xff]
    %v154 = vld [vmem:[#allocation3 + $0x8c] sm:$0xf]
    %v155 = vld [vmem:[#allocation3 + $0x90] sm:$0xff]
    %v156 = vld [vmem:[#allocation3 + $0x98] sm:$0xf]
    %v157 = vld [vmem:[#allocation3 + $0x9c] sm:$0xff]
    %v158 = vld [vmem:[#allocation3 + $0xa4] sm:$0xf]
    %v159 = vld [vmem:[#allocation3 + $0xa8] sm:$0xff]
    %v160 = vld [vmem:[#allocation3 + $0xb0] sm:$0xf]
    %v161 = vld [vmem:[#allocation3 + $0xb4] sm:$0xff]
    %v162 = vld [vmem:[#allocation3 + $0xbc] sm:$0xf]
    %v163 = vpack.c.bf16 %v130, %v129
    %v196 = vunpack.c.l.b16 %v131
    %v197 = vunpack.c.h.b16 %v131
    %v198 = vunpack.c.l.b16 %v132
    %v199 = vunpack.c.l.b16 %v133
    %v200 = vunpack.c.h.b16 %v133
    %v201 = vunpack.c.l.b16 %v134
    %v202 = vunpack.c.l.b16 %v135
    %v203 = vunpack.c.h.b16 %v135
    %v204 = vunpack.c.l.b16 %v136
    %v205 = vunpack.c.l.b16 %v137
    %v206 = vunpack.c.h.b16 %v137
    %v207 = vunpack.c.l.b16 %v138
    %v208 = vunpack.c.l.b16 %v139
    %v209 = vunpack.c.h.b16 %v139
    %v210 = vunpack.c.l.b16 %v140
    %v211 = vunpack.c.l.b16 %v141
    %v212 = vunpack.c.h.b16 %v141
    %v213 = vunpack.c.l.b16 %v142
    %v214 = vunpack.c.l.b16 %v143
    %v215 = vunpack.c.h.b16 %v143
    %v216 = vunpack.c.l.b16 %v144
    %v217 = vunpack.c.l.b16 %v145
    %v218 = vunpack.c.h.b16 %v145
    %v219 = vunpack.c.l.b16 %v146
    %v220 = vunpack.c.l.b16 %v147
    %v221 = vunpack.c.h.b16 %v147
    %v222 = vunpack.c.l.b16 %v148
    %v223 = vunpack.c.l.b16 %v149
    %v224 = vunpack.c.h.b16 %v149
    %v225 = vunpack.c.l.b16 %v150
    %v226 = vunpack.c.l.b16 %v151
    %v227 = vunpack.c.h.b16 %v151
    %v228 = vunpack.c.l.b16 %v152
    %v229 = vunpack.c.l.b16 %v153
    %v230 = vunpack.c.h.b16 %v153
    %v231 = vunpack.c.l.b16 %v154
    %v232 = vunpack.c.l.b16 %v155
    %v233 = vunpack.c.h.b16 %v155
    %v234 = vunpack.c.l.b16 %v156
    %v235 = vunpack.c.l.b16 %v157
    %v236 = vunpack.c.h.b16 %v157
    %v237 = vunpack.c.l.b16 %v158
    %v238 = vunpack.c.l.b16 %v159
    %v239 = vunpack.c.h.b16 %v159
    %v240 = vunpack.c.l.b16 %v160
    %v241 = vunpack.c.l.b16 %v161
    %v242 = vunpack.c.h.b16 %v161
    %v243 = vunpack.c.l.b16 %v162
    %v244 = vpack.c.b16 %v199, %v196
    %v245 = vpack.c.b16 %v200, %v197
    %v246 = vpack.c.b16 %v201, %v198
    %v247 = vpack.c.b16 %v205, %v202
    %v248 = vpack.c.b16 %v206, %v203
    %v249 = vpack.c.b16 %v207, %v204
    %v250 = vpack.c.b16 %v211, %v208
    %v251 = vpack.c.b16 %v212, %v209
    %v252 = vpack.c.b16 %v213, %v210
    %v253 = vpack.c.b16 %v217, %v214
    %v254 = vpack.c.b16 %v218, %v215
    %v255 = vpack.c.b16 %v219, %v216
    %v256 = vpack.c.b16 %v223, %v220
    %v257 = vpack.c.b16 %v224, %v221
    %v258 = vpack.c.b16 %v225, %v222
    %v259 = vpack.c.b16 %v229, %v226
    %v260 = vpack.c.b16 %v230, %v227
    %v261 = vpack.c.b16 %v231, %v228
    %v262 = vpack.c.b16 %v235, %v232
    %v263 = vpack.c.b16 %v236, %v233
    %v264 = vpack.c.b16 %v237, %v234
    %v265 = vpack.c.b16 %v241, %v238
    %v266 = vpack.c.b16 %v242, %v239
    %v267 = vpack.c.b16 %v243, %v240
    %292 = vmatprep.subr.bf16.mxu0 %v245
    %293 = vmatpush1.bf16.msra.mxu0 %v244
    %294 = vmatprep.subr.bf16.mxu0 %v248
    %295 = vmatpush1.bf16.msra.mxu0 %v247
    %296 = vmatprep.subr.bf16.mxu0 %v251
    %297 = vmatpush1.bf16.msra.mxu0 %v250
    %298 = vmatprep.subr.bf16.mxu0 %v254
    %299 = vmatpush1.bf16.msra.mxu0 %v253
    %300 = vmatprep.subr.bf16.mxu0 %v257
    %301 = vmatpush1.bf16.msra.mxu0 %v256
    %302 = vmatprep.subr.bf16.mxu0 %v260
    %303 = vmatpush1.bf16.msra.mxu0 %v259
    %304 = vmatprep.subr.bf16.mxu0 %v263
    %305 = vmatpush1.bf16.msra.mxu0 %v262
    %306 = vmatprep.subr.bf16.mxu0 %v266
    %307 = vmatpush1.bf16.msra.mxu0 %v265
    %308 = vmatprep.subr.bf16.mxu0 0
    %309 = vmatpush1.bf16.msra.mxu0 0
    %310 = vmatprep.subr.bf16.mxu0 0
    %311 = vmatpush1.bf16.msra.mxu0 0
    %312 = vmatprep.subr.bf16.mxu0 0
    %313 = vmatpush1.bf16.msra.mxu0 0
    %314 = vmatprep.subr.bf16.mxu0 0
    %315 = vmatpush1.bf16.msra.mxu0 0
    %316 = vmatprep.subr.bf16.mxu0 0
    %317 = vmatpush1.bf16.msra.mxu0 0
    %318 = vmatprep.subr.bf16.mxu0 0
    %319 = vmatpush1.bf16.msra.mxu0 0
    %320 = vmatprep.subr.bf16.mxu0 0
    %321 = vmatpush1.bf16.msra.mxu0 0
    %322 = vmatprep.subr.bf16.mxu0 0
    %323 = vmatpush1.bf16.msra.mxu0 0
    %324 = vmatprep.mubr.bf16.mxu0 0
    %325 = vmatmul.mubr.bf16.gmra.mrb[0].mxu0 %v163
    %v326 = vpop.f32.mrb[0].mxu0
    %v327 = vadd.f32 0.0, %v326
    %v328 = vpop.f32.mrb[0].mxu0
    %v329 = vadd.f32 0.0, %v328
    %v330 = vpop.f32.mrb[0].mxu0
    %v331 = vadd.f32 0.0, %v330
    %v332 = vpop.f32.mrb[0].mxu0
    %v333 = vadd.f32 0.0, %v332
    %334 = vdwg.mxu0
    %335 = vmatprep.subr.bf16.mxu0 0
    %336 = vmatpush1.bf16.msra.mxu0 %v246
    %337 = vmatprep.subr.bf16.mxu0 0
    %338 = vmatpush1.bf16.msra.mxu0 %v249
    %339 = vmatprep.subr.bf16.mxu0 0
    %340 = vmatpush1.bf16.msra.mxu0 %v252
    %341 = vmatprep.subr.bf16.mxu0 0
    %342 = vmatpush1.bf16.msra.mxu0 %v255
    %343 = vmatprep.subr.bf16.mxu0 0
    %344 = vmatpush1.bf16.msra.mxu0 %v258
    %345 = vmatprep.subr.bf16.mxu0 0
    %346 = vmatpush1.bf16.msra.mxu0 %v261
    %347 = vmatprep.subr.bf16.mxu0 0
    %348 = vmatpush1.bf16.msra.mxu0 %v264
    %349 = vmatprep.subr.bf16.mxu0 0
    %350 = vmatpush1.bf16.msra.mxu0 %v267
    %351 = vmatprep.subr.bf16.mxu0 0
    %352 = vmatpush1.bf16.msra.mxu0 0
    %353 = vmatprep.subr.bf16.mxu0 0
    %354 = vmatpush1.bf16.msra.mxu0 0
    %355 = vmatprep.subr.bf16.mxu0 0
    %356 = vmatpush1.bf16.msra.mxu0 0
    %357 = vmatprep.subr.bf16.mxu0 0
    %358 = vmatpush1.bf16.msra.mxu0 0
    %359 = vmatprep.subr.bf16.mxu0 0
    %360 = vmatpush1.bf16.msra.mxu0 0
    %361 = vmatprep.subr.bf16.mxu0 0
    %362 = vmatpush1.bf16.msra.mxu0 0
    %363 = vmatprep.subr.bf16.mxu0 0
    %364 = vmatpush1.bf16.msra.mxu0 0
    %365 = vmatprep.subr.bf16.mxu0 0
    %366 = vmatpush1.bf16.msra.mxu0 0
    %367 = vmatprep.mubr.bf16.mxu0 0
    %368 = vmatmul.mubr.bf16.gmra.mrb[0].mxu0 %v163
    %v369 = vpop.f32.mrb[0].mxu0
    %v370 = vadd.f32 0.0, %v369
    %v371 = vpop.f32.mrb[0].mxu0
    %v372 = vpop.f32.mrb[0].mxu0
    %v373 = vadd.f32 0.0, %v372
    %v374 = vpop.f32.mrb[0].mxu0
    %375 = vdwg.mxu0
    %376 = vrot.lane.b32.xlu0 %v327, 112
    %v377 = vpop.permute.xlu0 %376
    %378 = vrot.lane.b32.xlu0 %v331, 112
    %v379 = vpop.permute.xlu0 %378
    %380 = vrot.lane.b32.xlu0 %v327, 16
    %v381 = vpop.permute.xlu0 %380
    %382 = vrot.lane.b32.xlu0 %v331, 16
    %v383 = vpop.permute.xlu0 %382
    %v384 = vmul.f32 %v327, %v97
    %v385 = vmul.f32 %v331, %v98
    %v386 = vmul.f32 %v377, %v100
    %v387 = vmul.f32 %v379, %v101
    %v388 = vadd.f32 %v384, %v386
    %v389 = vadd.f32 %v385, %v387
    %v390 = vmul.f32 %v381, %v103
    %v391 = vmul.f32 %v383, %v104
    %v392 = vadd.f32 %v388, %v390
    %v393 = vadd.f32 %v389, %v391
    %v394 = vmul.f32 %v392, 0.17677669
    %v395 = vmul.f32 %v393, 0.17677669
    %v396 = vpack.c.bf16 %v395, %v394
    %397 = vrot.lane.b32.xlu0 %v329, 112
    %v398 = vpop.permute.xlu0 %397
    %399 = vrot.lane.b32.xlu0 %v333, 112
    %v400 = vpop.permute.xlu0 %399
    %401 = vrot.lane.b32.xlu0 %v329, 16
    %v402 = vpop.permute.xlu0 %401
    %403 = vrot.lane.b32.xlu0 %v333, 16
    %v404 = vpop.permute.xlu0 %403
    %v405 = vmul.f32 %v329, %v97
    %v406 = vmul.f32 %v333, %v98
    %v407 = vmul.f32 %v398, %v100
    %v408 = vmul.f32 %v400, %v101
    %v409 = vadd.f32 %v405, %v407
    %v410 = vadd.f32 %v406, %v408
    %v411 = vmul.f32 %v402, %v103
    %v412 = vmul.f32 %v404, %v104
    %v413 = vadd.f32 %v409, %v411
    %v414 = vadd.f32 %v410, %v412
    %v415 = vpack.c.bf16 %v414, %v413
    %v416 = vpack.c.bf16 %v373, %v370
    %vm417 = vcmask 261120
    %v419 = vsel %vm417, %v396, 0
    %v422 = vsel %vm417, %v415, 0
    %424 = vmatprep.subr.bf16.mxu0 0
    %425 = vmatpush1.bf16.xpose.msra.mxu0 %v422
    %426 = vmatprep.subr.bf16.mxu0 0
    %427 = vmatpush1.bf16.xpose.msra.mxu0 0
    %428 = vmatprep.subr.bf16.mxu0 0
    %429 = vmatpush1.bf16.xpose.msra.mxu0 0
    %430 = vmatprep.subr.bf16.mxu0 0
    %431 = vmatpush1.bf16.xpose.msra.mxu0 0
    %432 = vmatprep.subr.bf16.mxu0 0
    %433 = vmatpush1.bf16.xpose.msra.mxu0 0
    %434 = vmatprep.subr.bf16.mxu0 0
    %435 = vmatpush1.bf16.xpose.msra.mxu0 0
    %436 = vmatprep.subr.bf16.mxu0 0
    %437 = vmatpush1.bf16.xpose.msra.mxu0 0
    %438 = vmatprep.subr.bf16.mxu0 0
    %439 = vmatpush1.bf16.xpose.msra.mxu0 0
    %440 = vmatprep.subr.bf16.mxu0 0
    %441 = vmatpush1.bf16.xpose.msra.mxu0 0
    %442 = vmatprep.subr.bf16.mxu0 0
    %443 = vmatpush1.bf16.xpose.msra.mxu0 0
    %444 = vmatprep.subr.bf16.mxu0 0
    %445 = vmatpush1.bf16.xpose.msra.mxu0 0
    %446 = vmatprep.subr.bf16.mxu0 0
    %447 = vmatpush1.bf16.xpose.msra.mxu0 0
    %448 = vmatprep.subr.bf16.mxu0 0
    %449 = vmatpush1.bf16.xpose.msra.mxu0 0
    %450 = vmatprep.subr.bf16.mxu0 0
    %451 = vmatpush1.bf16.xpose.msra.mxu0 0
    %452 = vmatprep.subr.bf16.mxu0 0
    %453 = vmatpush1.bf16.xpose.msra.mxu0 0
    %454 = vmatprep.subr.bf16.mxu0 0
    %455 = vmatpush1.bf16.xpose.msra.mxu0 0
    %456 = vmatprep.mubr.bf16.mxu0 0
    %457 = vmatmul.mubr.bf16.gmra.mrb[0].mxu0 %v419
    %v458 = vpop.f32.mrb[0].mxu0
    %v459 = vadd.f32 %v105, %v458
    %v460 = vpop.f32.mrb[0].mxu0
    %v461 = vpop.f32.mrb[0].mxu0
    %v462 = vadd.f32 %v106, %v461
    %v463 = vpop.f32.mrb[0].mxu0
    %464 = vdwg.mxu0
    %vm465 = vcmask 130048
    %v466 = vsel %vm465, %v459, -inf
    %467 = vmax.xlane.f32.xlu0 %v466
    %v468 = vpop.xlane.xlu0 %467
    %v469 = vsel %vm465, %v462, -inf
    %470 = vmax.xlane.f32.xlu0 %v469
    %v471 = vpop.xlane.xlu0 %470
    %v472 = vsub.f32 %v459, %v468
    %v473 = vsub.f32 %v462, %v471
    %v474 = vmul.f32 %v472, 1.442695
    %v475 = vpow.pop %v474
    %v476 = vmul.f32 %v473, 1.442695
    %v477 = vpow.pop %v476
    %v478 = vsel %vm465, %v475, 0.0
    %479 = vadd.xlane.f32.xlu0 %v478
    %v480 = vpop.xlane.xlu0 %479
    %v481 = vsel %vm465, %v477, 0.0
    %482 = vadd.xlane.f32.xlu0 %v481
    %v483 = vpop.xlane.xlu0 %482
    %v484 = vrcp.pop %v480
    %v485 = vrcp.pop %v483
    %v486 = vmul.f32 %v475, %v484
    %v487 = vmul.f32 %v477, %v485
    %v488 = vpack.c.bf16 %v487, %v486
    %v490 = vsel %vm465, %v488, 0
    %492 = vmatprep.subr.bf16.mxu0 0
    %493 = vmatpush1.bf16.msra.mxu0 %v416
    %494 = vmatprep.subr.bf16.mxu0 0
    %495 = vmatpush1.bf16.msra.mxu0 0
    %496 = vmatprep.subr.bf16.mxu0 0
    %497 = vmatpush1.bf16.msra.mxu0 0
    %498 = vmatprep.subr.bf16.mxu0 0
    %499 = vmatpush1.bf16.msra.mxu0 0
    %500 = vmatprep.subr.bf16.mxu0 0
    %501 = vmatpush1.bf16.msra.mxu0 0
    %502 = vmatprep.subr.bf16.mxu0 0
    %503 = vmatpush1.bf16.msra.mxu0 0
    %504 = vmatprep.subr.bf16.mxu0 0
    %505 = vmatpush1.bf16.msra.mxu0 0
    %506 = vmatprep.subr.bf16.mxu0 0
    %507 = vmatpush1.bf16.msra.mxu0 0
    %508 = vmatprep.subr.bf16.mxu0 0
    %509 = vmatpush1.bf16.msra.mxu0 0
    %510 = vmatprep.subr.bf16.mxu0 0
    %511 = vmatpush1.bf16.msra.mxu0 0
    %512 = vmatprep.subr.bf16.mxu0 0
    %513 = vmatpush1.bf16.msra.mxu0 0
    %514 = vmatprep.subr.bf16.mxu0 0
    %515 = vmatpush1.bf16.msra.mxu0 0
    %516 = vmatprep.subr.bf16.mxu0 0
    %517 = vmatpush1.bf16.msra.mxu0 0
    %518 = vmatprep.subr.bf16.mxu0 0
    %519 = vmatpush1.bf16.msra.mxu0 0
    %520 = vmatprep.subr.bf16.mxu0 0
    %521 = vmatpush1.bf16.msra.mxu0 0
    %522 = vmatprep.subr.bf16.mxu0 0
    %523 = vmatpush1.bf16.msra.mxu0 0
    %524 = vmatprep.mubr.bf16.mxu0 0
    %525 = vmatmul.mubr.bf16.gmra.mrb[0].mxu0 %v490
    %v526 = vpop.f32.mrb[0].mxu0
    %v527 = vadd.f32 0.0, %v526
    %v528 = vpop.f32.mrb[0].mxu0
    %v529 = vpop.f32.mrb[0].mxu0
    %v530 = vadd.f32 0.0, %v529
    %v531 = vpop.f32.mrb[0].mxu0
    %532 = vdwg.mxu0
    %533 = vst.msk [vmem:[#allocation2] sm:$0xff] %vm417, %v527
    %534 = vst.msk [vmem:[#allocation2 + $0x8] sm:$0xff] %vm417, %v530
    %536 = vrot.lane.b32.xlu0 %v396, 96
    %v537 = vpop.permute.xlu0 %536
    %539 = vrot.lane.b32.xlu0 %v415, 96
    %v540 = vpop.permute.xlu0 %539
    %v542 = vsel %vm417, %v537, 0
    %v545 = vsel %vm417, %v540, 0
    %547 = vmatprep.subr.bf16.mxu0 0
    %548 = vmatpush1.bf16.xpose.msra.mxu0 %v545
    %549 = vmatprep.subr.bf16.mxu0 0
    %550 = vmatpush1.bf16.xpose.msra.mxu0 0
    %551 = vmatprep.subr.bf16.mxu0 0
    %552 = vmatpush1.bf16.xpose.msra.mxu0 0
    %553 = vmatprep.subr.bf16.mxu0 0
    %554 = vmatpush1.bf16.xpose.msra.mxu0 0
    %555 = vmatprep.subr.bf16.mxu0 0
    %556 = vmatpush1.bf16.xpose.msra.mxu0 0
    %557 = vmatprep.subr.bf16.mxu0 0
    %558 = vmatpush1.bf16.xpose.msra.mxu0 0
    %559 = vmatprep.subr.bf16.mxu0 0
    %560 = vmatpush1.bf16.xpose.msra.mxu0 0
    %561 = vmatprep.subr.bf16.mxu0 0
    %562 = vmatpush1.bf16.xpose.msra.mxu0 0
    %563 = vmatprep.subr.bf16.mxu0 0
    %564 = vmatpush1.bf16.xpose.msra.mxu0 0
    %565 = vmatprep.subr.bf16.mxu0 0
    %566 = vmatpush1.bf16.xpose.msra.mxu0 0
    %567 = vmatprep.subr.bf16.mxu0 0
    %568 = vmatpush1.bf16.xpose.msra.mxu0 0
    %569 = vmatprep.subr.bf16.mxu0 0
    %570 = vmatpush1.bf16.xpose.msra.mxu0 0
    %571 = vmatprep.subr.bf16.mxu0 0
    %572 = vmatpush1.bf16.xpose.msra.mxu0 0
    %573 = vmatprep.subr.bf16.mxu0 0
    %574 = vmatpush1.bf16.xpose.msra.mxu0 0
    %575 = vmatprep.subr.bf16.mxu0 0
    %576 = vmatpush1.bf16.xpose.msra.mxu0 0
    %577 = vmatprep.subr.bf16.mxu0 0
    %578 = vmatpush1.bf16.xpose.msra.mxu0 0
    %579 = vmatprep.mubr.bf16.mxu0 0
    %580 = vmatmul.mubr.bf16.gmra.mrb[0].mxu0 %v542
    %v581 = vpop.f32.mrb[0].mxu0
    %v582 = vadd.f32 %v105, %v581
    %v583 = vpop.f32.mrb[0].mxu0
    %v584 = vpop.f32.mrb[0].mxu0
    %v585 = vadd.f32 %v106, %v584
    %v586 = vpop.f32.mrb[0].mxu0
    %587 = vdwg.mxu0
    %v588 = vsel %vm465, %v582, -inf
    %589 = vmax.xlane.f32.xlu0 %v588
    %v590 = vpop.xlane.xlu0 %589
    %v591 = vsel %vm465, %v585, -inf
    %592 = vmax.xlane.f32.xlu0 %v591
    %v593 = vpop.xlane.xlu0 %592
    %v594 = vsub.f32 %v582, %v590
    %v595 = vsub.f32 %v585, %v593
    %v596 = vmul.f32 %v594, 1.442695
    %v597 = vpow.pop %v596
    %v598 = vmul.f32 %v595, 1.442695
    %v599 = vpow.pop %v598
    %v600 = vsel %vm465, %v597, 0.0
    %601 = vadd.xlane.f32.xlu0 %v600
    %v602 = vpop.xlane.xlu0 %601
    %v603 = vsel %vm465, %v599, 0.0
    %604 = vadd.xlane.f32.xlu0 %v603
    %v605 = vpop.xlane.xlu0 %604
    %v606 = vrcp.pop %v602
    %v607 = vrcp.pop %v605
    %v608 = vmul.f32 %v597, %v606
    %v609 = vmul.f32 %v599, %v607
    %v610 = vpack.c.bf16 %v609, %v608
    %612 = vrot.lane.b32.xlu0 %v416, 96
    %v613 = vpop.permute.xlu0 %612
    %v616 = vsel %vm465, %v610, 0
    %618 = vmatprep.subr.bf16.mxu0 0
    %619 = vmatpush1.bf16.msra.mxu0 %v613
    %620 = vmatprep.subr.bf16.mxu0 0
    %621 = vmatpush1.bf16.msra.mxu0 0
    %622 = vmatprep.subr.bf16.mxu0 0
    %623 = vmatpush1.bf16.msra.mxu0 0
    %624 = vmatprep.subr.bf16.mxu0 0
    %625 = vmatpush1.bf16.msra.mxu0 0
    %626 = vmatprep.subr.bf16.mxu0 0
    %627 = vmatpush1.bf16.msra.mxu0 0
    %628 = vmatprep.subr.bf16.mxu0 0
    %629 = vmatpush1.bf16.msra.mxu0 0
    %630 = vmatprep.subr.bf16.mxu0 0
    %631 = vmatpush1.bf16.msra.mxu0 0
    %632 = vmatprep.subr.bf16.mxu0 0
    %633 = vmatpush1.bf16.msra.mxu0 0
    %634 = vmatprep.subr.bf16.mxu0 0
    %635 = vmatpush1.bf16.msra.mxu0 0
    %636 = vmatprep.subr.bf16.mxu0 0
    %637 = vmatpush1.bf16.msra.mxu0 0
    %638 = vmatprep.subr.bf16.mxu0 0
    %639 = vmatpush1.bf16.msra.mxu0 0
    %640 = vmatprep.subr.bf16.mxu0 0
    %641 = vmatpush1.bf16.msra.mxu0 0
    %642 = vmatprep.subr.bf16.mxu0 0
    %643 = vmatpush1.bf16.msra.mxu0 0
    %644 = vmatprep.subr.bf16.mxu0 0
    %645 = vmatpush1.bf16.msra.mxu0 0
    %646 = vmatprep.subr.bf16.mxu0 0
    %647 = vmatpush1.bf16.msra.mxu0 0
    %648 = vmatprep.subr.bf16.mxu0 0
    %649 = vmatpush1.bf16.msra.mxu0 0
    %650 = vmatprep.mubr.bf16.mxu0 0
    %651 = vmatmul.mubr.bf16.gmra.mrb[0].mxu0 %v616
    %v652 = vpop.f32.mrb[0].mxu0
    %v653 = vadd.f32 0.0, %v652
    %v654 = vpop.f32.mrb[0].mxu0
    %v655 = vpop.f32.mrb[0].mxu0
    %v656 = vadd.f32 0.0, %v655
    %v657 = vpop.f32.mrb[0].mxu0
    %658 = vdwg.mxu0
    %661 = vrot.lane.b32.xlu0 %v653, 32
    %v662 = vpop.permute.xlu0 %661
    %663 = vrot.lane.b32.xlu0 %v656, 32
    %v664 = vpop.permute.xlu0 %663
    %vm667 = vcmask 523520
    %668 = vst.msk [vmem:[#allocation2] sm:$0xff] %vm667, %v662
    %669 = vst.msk [vmem:[#allocation2 + $0x8] sm:$0xff] %vm667, %v664
    %670 = vrot.lane.b32.xlu0 %v396, 64
    %v671 = vpop.permute.xlu0 %670
    %672 = vrot.lane.b32.xlu0 %v415, 64
    %v673 = vpop.permute.xlu0 %672
    %v675 = vsel %vm417, %v671, 0
    %v678 = vsel %vm417, %v673, 0
    %680 = vmatprep.subr.bf16.mxu0 0
    %681 = vmatpush1.bf16.xpose.msra.mxu0 %v678
    %682 = vmatprep.subr.bf16.mxu0 0
    %683 = vmatpush1.bf16.xpose.msra.mxu0 0
    %684 = vmatprep.subr.bf16.mxu0 0
    %685 = vmatpush1.bf16.xpose.msra.mxu0 0
    %686 = vmatprep.subr.bf16.mxu0 0
    %687 = vmatpush1.bf16.xpose.msra.mxu0 0
    %688 = vmatprep.subr.bf16.mxu0 0
    %689 = vmatpush1.bf16.xpose.msra.mxu0 0
    %690 = vmatprep.subr.bf16.mxu0 0
    %691 = vmatpush1.bf16.xpose.msra.mxu0 0
    %692 = vmatprep.subr.bf16.mxu0 0
    %693 = vmatpush1.bf16.xpose.msra.mxu0 0
    %694 = vmatprep.subr.bf16.mxu0 0
    %695 = vmatpush1.bf16.xpose.msra.mxu0 0
    %696 = vmatprep.subr.bf16.mxu0 0
    %697 = vmatpush1.bf16.xpose.msra.mxu0 0
    %698 = vmatprep.subr.bf16.mxu0 0
    %699 = vmatpush1.bf16.xpose.msra.mxu0 0
    %700 = vmatprep.subr.bf16.mxu0 0
    %701 = vmatpush1.bf16.xpose.msra.mxu0 0
    %702 = vmatprep.subr.bf16.mxu0 0
    %703 = vmatpush1.bf16.xpose.msra.mxu0 0
    %704 = vmatprep.subr.bf16.mxu0 0
    %705 = vmatpush1.bf16.xpose.msra.mxu0 0
    %706 = vmatprep.subr.bf16.mxu0 0
    %707 = vmatpush1.bf16.xpose.msra.mxu0 0
    %708 = vmatprep.subr.bf16.mxu0 0
    %709 = vmatpush1.bf16.xpose.msra.mxu0 0
    %710 = vmatprep.subr.bf16.mxu0 0
    %711 = vmatpush1.bf16.xpose.msra.mxu0 0
    %712 = vmatprep.mubr.bf16.mxu0 0
    %713 = vmatmul.mubr.bf16.gmra.mrb[0].mxu0 %v675
    %v714 = vpop.f32.mrb[0].mxu0
    %v715 = vadd.f32 %v105, %v714
    %v716 = vpop.f32.mrb[0].mxu0
    %v717 = vpop.f32.mrb[0].mxu0
    %v718 = vadd.f32 %v106, %v717
    %v719 = vpop.f32.mrb[0].mxu0
    %720 = vdwg.mxu0
    %v721 = vsel %vm465, %v715, -inf
    %722 = vmax.xlane.f32.xlu0 %v721
    %v723 = vpop.xlane.xlu0 %722
    %v724 = vsel %vm465, %v718, -inf
    %725 = vmax.xlane.f32.xlu0 %v724
    %v726 = vpop.xlane.xlu0 %725
    %v727 = vsub.f32 %v715, %v723
    %v728 = vsub.f32 %v718, %v726
    %v729 = vmul.f32 %v727, 1.442695
    %v730 = vpow.pop %v729
    %v731 = vmul.f32 %v728, 1.442695
    %v732 = vpow.pop %v731
    %v733 = vsel %vm465, %v730, 0.0
    %734 = vadd.xlane.f32.xlu0 %v733
    %v735 = vpop.xlane.xlu0 %734
    %v736 = vsel %vm465, %v732, 0.0
    %737 = vadd.xlane.f32.xlu0 %v736
    %v738 = vpop.xlane.xlu0 %737
    %v739 = vrcp.pop %v735
    %v740 = vrcp.pop %v738
    %v741 = vmul.f32 %v730, %v739
    %v742 = vmul.f32 %v732, %v740
    %v743 = vpack.c.bf16 %v742, %v741
    %744 = vrot.lane.b32.xlu0 %v416, 64
    %v745 = vpop.permute.xlu0 %744
    %v748 = vsel %vm465, %v743, 0
    %750 = vmatprep.subr.bf16.mxu0 0
    %751 = vmatpush1.bf16.msra.mxu0 %v745
    %752 = vmatprep.subr.bf16.mxu0 0
    %753 = vmatpush1.bf16.msra.mxu0 0
    %754 = vmatprep.subr.bf16.mxu0 0
    %755 = vmatpush1.bf16.msra.mxu0 0
    %756 = vmatprep.subr.bf16.mxu0 0
    %757 = vmatpush1.bf16.msra.mxu0 0
    %758 = vmatprep.subr.bf16.mxu0 0
    %759 = vmatpush1.bf16.msra.mxu0 0
    %760 = vmatprep.subr.bf16.mxu0 0
    %761 = vmatpush1.bf16.msra.mxu0 0
    %762 = vmatprep.subr.bf16.mxu0 0
    %763 = vmatpush1.bf16.msra.mxu0 0
    %764 = vmatprep.subr.bf16.mxu0 0
    %765 = vmatpush1.bf16.msra.mxu0 0
    %766 = vmatprep.subr.bf16.mxu0 0
    %767 = vmatpush1.bf16.msra.mxu0 0
    %768 = vmatprep.subr.bf16.mxu0 0
    %769 = vmatpush1.bf16.msra.mxu0 0
    %770 = vmatprep.subr.bf16.mxu0 0
    %771 = vmatpush1.bf16.msra.mxu0 0
    %772 = vmatprep.subr.bf16.mxu0 0
    %773 = vmatpush1.bf16.msra.mxu0 0
    %774 = vmatprep.subr.bf16.mxu0 0
    %775 = vmatpush1.bf16.msra.mxu0 0
    %776 = vmatprep.subr.bf16.mxu0 0
    %777 = vmatpush1.bf16.msra.mxu0 0
    %778 = vmatprep.subr.bf16.mxu0 0
    %779 = vmatpush1.bf16.msra.mxu0 0
    %780 = vmatprep.subr.bf16.mxu0 0
    %781 = vmatpush1.bf16.msra.mxu0 0
    %782 = vmatprep.mubr.bf16.mxu0 0
    %783 = vmatmul.mubr.bf16.gmra.mrb[0].mxu0 %v748
    %v784 = vpop.f32.mrb[0].mxu0
    %v785 = vadd.f32 0.0, %v784
    %v786 = vpop.f32.mrb[0].mxu0
    %v787 = vpop.f32.mrb[0].mxu0
    %v788 = vadd.f32 0.0, %v787
    %v789 = vpop.f32.mrb[0].mxu0
    %790 = vdwg.mxu0
    %793 = vrot.lane.b32.xlu0 %v785, 64
    %v794 = vpop.permute.xlu0 %793
    %795 = vrot.lane.b32.xlu0 %v788, 64
    %v796 = vpop.permute.xlu0 %795
    %vm799 = vcmask 785920
    %800 = vst.msk [vmem:[#allocation2] sm:$0xff] %vm799, %v794
    %801 = vst.msk [vmem:[#allocation2 + $0x8] sm:$0xff] %vm799, %v796
    %802 = vrot.lane.b32.xlu0 %v396, 32
    %v803 = vpop.permute.xlu0 %802
    %804 = vrot.lane.b32.xlu0 %v415, 32
    %v805 = vpop.permute.xlu0 %804
    %v807 = vsel %vm417, %v803, 0
    %v810 = vsel %vm417, %v805, 0
    %812 = vmatprep.subr.bf16.mxu0 0
    %813 = vmatpush1.bf16.xpose.msra.mxu0 %v810
    %814 = vmatprep.subr.bf16.mxu0 0
    %815 = vmatpush1.bf16.xpose.msra.mxu0 0
    %816 = vmatprep.subr.bf16.mxu0 0
    %817 = vmatpush1.bf16.xpose.msra.mxu0 0
    %818 = vmatprep.subr.bf16.mxu0 0
    %819 = vmatpush1.bf16.xpose.msra.mxu0 0
    %820 = vmatprep.subr.bf16.mxu0 0
    %821 = vmatpush1.bf16.xpose.msra.mxu0 0
    %822 = vmatprep.subr.bf16.mxu0 0
    %823 = vmatpush1.bf16.xpose.msra.mxu0 0
    %824 = vmatprep.subr.bf16.mxu0 0
    %825 = vmatpush1.bf16.xpose.msra.mxu0 0
    %826 = vmatprep.subr.bf16.mxu0 0
    %827 = vmatpush1.bf16.xpose.msra.mxu0 0
    %828 = vmatprep.subr.bf16.mxu0 0
    %829 = vmatpush1.bf16.xpose.msra.mxu0 0
    %830 = vmatprep.subr.bf16.mxu0 0
    %831 = vmatpush1.bf16.xpose.msra.mxu0 0
    %832 = vmatprep.subr.bf16.mxu0 0
    %833 = vmatpush1.bf16.xpose.msra.mxu0 0
    %834 = vmatprep.subr.bf16.mxu0 0
    %835 = vmatpush1.bf16.xpose.msra.mxu0 0
    %836 = vmatprep.subr.bf16.mxu0 0
    %837 = vmatpush1.bf16.xpose.msra.mxu0 0
    %838 = vmatprep.subr.bf16.mxu0 0
    %839 = vmatpush1.bf16.xpose.msra.mxu0 0
    %840 = vmatprep.subr.bf16.mxu0 0
    %841 = vmatpush1.bf16.xpose.msra.mxu0 0
    %842 = vmatprep.subr.bf16.mxu0 0
    %843 = vmatpush1.bf16.xpose.msra.mxu0 0
    %844 = vmatprep.mubr.bf16.mxu0 0
    %845 = vmatmul.mubr.bf16.gmra.mrb[0].mxu0 %v807
    %v846 = vpop.f32.mrb[0].mxu0
    %v847 = vadd.f32 %v105, %v846
    %v848 = vpop.f32.mrb[0].mxu0
    %v849 = vpop.f32.mrb[0].mxu0
    %v850 = vadd.f32 %v106, %v849
    %v851 = vpop.f32.mrb[0].mxu0
    %852 = vdwg.mxu0
    %v853 = vsel %vm465, %v847, -inf
    %854 = vmax.xlane.f32.xlu0 %v853
    %v855 = vpop.xlane.xlu0 %854
    %v856 = vsel %vm465, %v850, -inf
    %857 = vmax.xlane.f32.xlu0 %v856
    %v858 = vpop.xlane.xlu0 %857
    %v859 = vsub.f32 %v847, %v855
    %v860 = vsub.f32 %v850, %v858
    %v861 = vmul.f32 %v859, 1.442695
    %v862 = vpow.pop %v861
    %v863 = vmul.f32 %v860, 1.442695
    %v864 = vpow.pop %v863
    %v865 = vsel %vm465, %v862, 0.0
    %866 = vadd.xlane.f32.xlu0 %v865
    %v867 = vpop.xlane.xlu0 %866
    %v868 = vsel %vm465, %v864, 0.0
    %869 = vadd.xlane.f32.xlu0 %v868
    %v870 = vpop.xlane.xlu0 %869
    %v871 = vrcp.pop %v867
    %v872 = vrcp.pop %v870
    %v873 = vmul.f32 %v862, %v871
    %v874 = vmul.f32 %v864, %v872
    %v875 = vpack.c.bf16 %v874, %v873
    %876 = vrot.lane.b32.xlu0 %v416, 32
    %v877 = vpop.permute.xlu0 %876
    %v880 = vsel %vm465, %v875, 0
    %882 = vmatprep.subr.bf16.mxu0 0
    %883 = vmatpush1.bf16.msra.mxu0 %v877
    %884 = vmatprep.subr.bf16.mxu0 0
    %885 = vmatpush1.bf16.msra.mxu0 0
    %886 = vmatprep.subr.bf16.mxu0 0
    %887 = vmatpush1.bf16.msra.mxu0 0
    %888 = vmatprep.subr.bf16.mxu0 0
    %889 = vmatpush1.bf16.msra.mxu0 0
    %890 = vmatprep.subr.bf16.mxu0 0
    %891 = vmatpush1.bf16.msra.mxu0 0
    %892 = vmatprep.subr.bf16.mxu0 0
    %893 = vmatpush1.bf16.msra.mxu0 0
    %894 = vmatprep.subr.bf16.mxu0 0
    %895 = vmatpush1.bf16.msra.mxu0 0
    %896 = vmatprep.subr.bf16.mxu0 0
    %897 = vmatpush1.bf16.msra.mxu0 0
    %898 = vmatprep.subr.bf16.mxu0 0
    %899 = vmatpush1.bf16.msra.mxu0 0
    %900 = vmatprep.subr.bf16.mxu0 0
    %901 = vmatpush1.bf16.msra.mxu0 0
    %902 = vmatprep.subr.bf16.mxu0 0
    %903 = vmatpush1.bf16.msra.mxu0 0
    %904 = vmatprep.subr.bf16.mxu0 0
    %905 = vmatpush1.bf16.msra.mxu0 0
    %906 = vmatprep.subr.bf16.mxu0 0
    %907 = vmatpush1.bf16.msra.mxu0 0
    %908 = vmatprep.subr.bf16.mxu0 0
    %909 = vmatpush1.bf16.msra.mxu0 0
    %910 = vmatprep.subr.bf16.mxu0 0
    %911 = vmatpush1.bf16.msra.mxu0 0
    %912 = vmatprep.subr.bf16.mxu0 0
    %913 = vmatpush1.bf16.msra.mxu0 0
    %914 = vmatprep.mubr.bf16.mxu0 0
    %915 = vmatmul.mubr.bf16.gmra.mrb[0].mxu0 %v880
    %v916 = vpop.f32.mrb[0].mxu0
    %v917 = vadd.f32 0.0, %v916
    %v918 = vpop.f32.mrb[0].mxu0
    %v919 = vpop.f32.mrb[0].mxu0
    %v920 = vadd.f32 0.0, %v919
    %v921 = vpop.f32.mrb[0].mxu0
    %922 = vdwg.mxu0
    %925 = vrot.lane.b32.xlu0 %v917, 96
    %v926 = vpop.permute.xlu0 %925
    %927 = vrot.lane.b32.xlu0 %v920, 96
    %v928 = vpop.permute.xlu0 %927
    %vm931 = vcmask 1048320
    %932 = vst.msk [vmem:[#allocation2] sm:$0xff] %vm931, %v926
    %933 = vst.msk [vmem:[#allocation2 + $0x8] sm:$0xff] %vm931, %v928
    %v934 = vld [vmem:[#allocation2] sm:$0xff]
    %v935 = vld [vmem:[#allocation2 + $0x8] sm:$0xff]
    %v936 = vld [vmem:[%s6] sm:$0xf]
    %v937 = vld [vmem:[%s6 + $0x4] sm:$0xf]
    %v938 = vld [vmem:[%s6 + $0x8] sm:$0xf]
    %v939 = vld [vmem:[%s6 + $0xc] sm:$0xf]
    %v940 = vld [vmem:[%s6 + $0x10] sm:$0xf]
    %v941 = vld [vmem:[%s6 + $0x14] sm:$0xf]
    %v942 = vld [vmem:[%s6 + $0x18] sm:$0xf]
    %v943 = vld [vmem:[%s6 + $0x1c] sm:$0xf]
    %v944 = vld [vmem:[%s6 + $0x20] sm:$0xf]
    %v945 = vld [vmem:[%s6 + $0x24] sm:$0xf]
    %v946 = vld [vmem:[%s6 + $0x28] sm:$0xf]
    %v947 = vld [vmem:[%s6 + $0x2c] sm:$0xf]
    %v948 = vld [vmem:[%s6 + $0x30] sm:$0xf]
    %v949 = vld [vmem:[%s6 + $0x34] sm:$0xf]
    %v950 = vld [vmem:[%s6 + $0x38] sm:$0xf]
    %v951 = vld [vmem:[%s6 + $0x3c] sm:$0xf]
    %v952 = vpack.c.bf16 %v935, %v934
    %v969 = vunpack.c.l.b16 %v936
    %v970 = vunpack.c.l.b16 %v937
    %v971 = vunpack.c.l.b16 %v938
    %v972 = vunpack.c.l.b16 %v939
    %v973 = vunpack.c.l.b16 %v940
    %v974 = vunpack.c.l.b16 %v941
    %v975 = vunpack.c.l.b16 %v942
    %v976 = vunpack.c.l.b16 %v943
    %v977 = vunpack.c.l.b16 %v944
    %v978 = vunpack.c.l.b16 %v945
    %v979 = vunpack.c.l.b16 %v946
    %v980 = vunpack.c.l.b16 %v947
    %v981 = vunpack.c.l.b16 %v948
    %v982 = vunpack.c.l.b16 %v949
    %v983 = vunpack.c.l.b16 %v950
    %v984 = vunpack.c.l.b16 %v951
    %v985 = vpack.c.b16 %v970, %v969
    %v986 = vpack.c.b16 %v972, %v971
    %v987 = vpack.c.b16 %v974, %v973
    %v988 = vpack.c.b16 %v976, %v975
    %v989 = vpack.c.b16 %v978, %v977
    %v990 = vpack.c.b16 %v980, %v979
    %v991 = vpack.c.b16 %v982, %v981
    %v992 = vpack.c.b16 %v984, %v983
    %1001 = vmatprep.subr.bf16.mxu0 0
    %1002 = vmatpush1.bf16.msra.mxu0 %v985
    %1003 = vmatprep.subr.bf16.mxu0 0
    %1004 = vmatpush1.bf16.msra.mxu0 %v986
    %1005 = vmatprep.subr.bf16.mxu0 0
    %1006 = vmatpush1.bf16.msra.mxu0 %v987
    %1007 = vmatprep.subr.bf16.mxu0 0
    %1008 = vmatpush1.bf16.msra.mxu0 %v988
    %1009 = vmatprep.subr.bf16.mxu0 0
    %1010 = vmatpush1.bf16.msra.mxu0 %v989
    %1011 = vmatprep.subr.bf16.mxu0 0
    %1012 = vmatpush1.bf16.msra.mxu0 %v990
    %1013 = vmatprep.subr.bf16.mxu0 0
    %1014 = vmatpush1.bf16.msra.mxu0 %v991
    %1015 = vmatprep.subr.bf16.mxu0 0
    %1016 = vmatpush1.bf16.msra.mxu0 %v992
    %1017 = vmatprep.subr.bf16.mxu0 0
    %1018 = vmatpush1.bf16.msra.mxu0 0
    %1019 = vmatprep.subr.bf16.mxu0 0
    %1020 = vmatpush1.bf16.msra.mxu0 0
    %1021 = vmatprep.subr.bf16.mxu0 0
    %1022 = vmatpush1.bf16.msra.mxu0 0
    %1023 = vmatprep.subr.bf16.mxu0 0
    %1024 = vmatpush1.bf16.msra.mxu0 0
    %1025 = vmatprep.subr.bf16.mxu0 0
    %1026 = vmatpush1.bf16.msra.mxu0 0
    %1027 = vmatprep.subr.bf16.mxu0 0
    %1028 = vmatpush1.bf16.msra.mxu0 0
    %1029 = vmatprep.subr.bf16.mxu0 0
    %1030 = vmatpush1.bf16.msra.mxu0 0
    %1031 = vmatprep.subr.bf16.mxu0 0
    %1032 = vmatpush1.bf16.msra.mxu0 0
    %1033 = vmatprep.mubr.bf16.mxu0 0
    %1034 = vmatmul.mubr.bf16.gmra.mrb[0].mxu0 %v952
    %v1035 = vpop.f32.mrb[0].mxu0
    %v1036 = vadd.f32 0.0, %v1035
    %v1037 = vpop.f32.mrb[0].mxu0
    %v1038 = vpop.f32.mrb[0].mxu0
    %v1039 = vadd.f32 0.0, %v1038
    %v1040 = vpop.f32.mrb[0].mxu0
    %1041 = vdwg.mxu0
    %v1042 = vadd.f32 %v95, %v1036
    %v1043 = vadd.f32 %v96, %v1039
    %v1044 = vld [vmem:[%s4] sm:$0x1]
    %v1045 = vmul.f32 %v1042, %v1042
    %v1046 = vmul.f32 %v1043, %v1043
    %1047 = vadd.xlane.f32.xlu0 %v1045
    %v1048 = vpop.xlane.xlu0 %1047
    %1049 = vadd.xlane.f32.xlu0 %v1046
    %v1050 = vpop.xlane.xlu0 %1049
    %v1051 = vmul.f32 %v1048, %v114
    %v1052 = vmul.f32 %v1050, %v114
    %v1053 = vadd.f32 %v1051, 1e-05
    %v1054 = vadd.f32 %v1052, 1e-05
    %v1055 = vrsqrt.pop %v1053
    %v1056 = vrsqrt.pop %v1054
    %v1057 = vmul.f32 %v1042, %v1055
    %v1058 = vmul.f32 %v1043, %v1056
    %v1060 = vlaneseq
    %v1061 = vshrl.u32 %v1060, 7
    %v1062 = vsub.s32 0, %v1061
    %v1063 = vrot.slane %v1044, %v1062
    %v1065 = vmul.f32 %v1057, %v1063
    %v1066 = vmul.f32 %v1058, %v1063
    %v1067 = vld [vmem:[#allocation6] sm:$0xff]
    %v1068 = vld [vmem:[#allocation6 + $0x8] sm:$0xff]
    %v1069 = vld [vmem:[#allocation6 + $0x10] sm:$0xff]
    %v1070 = vld [vmem:[#allocation6 + $0x18] sm:$0xff]
    %v1071 = vld [vmem:[#allocation6 + $0x20] sm:$0xff]
    %v1072 = vld [vmem:[#allocation6 + $0x28] sm:$0xff]
    %v1073 = vld [vmem:[#allocation6 + $0x30] sm:$0xff]
    %v1074 = vld [vmem:[#allocation6 + $0x38] sm:$0xff]
    %v1075 = vld [vmem:[#allocation6 + $0x40] sm:$0xff]
    %v1076 = vld [vmem:[#allocation6 + $0x48] sm:$0xff]
    %v1077 = vld [vmem:[#allocation6 + $0x50] sm:$0xff]
    %v1078 = vld [vmem:[#allocation6 + $0x58] sm:$0xff]
    %v1079 = vld [vmem:[#allocation6 + $0x60] sm:$0xff]
    %v1080 = vld [vmem:[#allocation6 + $0x68] sm:$0xff]
    %v1081 = vld [vmem:[#allocation6 + $0x70] sm:$0xff]
    %v1082 = vld [vmem:[#allocation6 + $0x78] sm:$0xff]
    %v1083 = vld [vmem:[#allocation6 + $0x80] sm:$0xff]
    %v1084 = vld [vmem:[#allocation6 + $0x88] sm:$0xff]
    %v1085 = vld [vmem:[#allocation6 + $0x90] sm:$0xff]
    %v1086 = vld [vmem:[#allocation6 + $0x98] sm:$0xff]
    %v1087 = vld [vmem:[#allocation6 + $0xa0] sm:$0xff]
    %v1088 = vld [vmem:[#allocation6 + $0xa8] sm:$0xff]
    %v1089 = vld [vmem:[#allocation6 + $0xb0] sm:$0xff]
    %v1090 = vld [vmem:[#allocation6 + $0xb8] sm:$0xff]
    %v1091 = vld [vmem:[#allocation6 + $0xc0] sm:$0xff]
    %v1092 = vld [vmem:[#allocation6 + $0xc8] sm:$0xff]
    %v1093 = vld [vmem:[#allocation6 + $0xd0] sm:$0xff]
    %v1094 = vld [vmem:[#allocation6 + $0xd8] sm:$0xff]
    %v1095 = vld [vmem:[#allocation6 + $0xe0] sm:$0xff]
    %v1096 = vld [vmem:[#allocation6 + $0xe8] sm:$0xff]
    %v1097 = vld [vmem:[#allocation6 + $0xf0] sm:$0xff]
    %v1098 = vld [vmem:[#allocation6 + $0xf8] sm:$0xff]
    %v1099 = vld [vmem:[#allocation6 + $0x100] sm:$0xff]
    %v1100 = vld [vmem:[#allocation6 + $0x108] sm:$0xff]
    %v1101 = vld [vmem:[#allocation6 + $0x110] sm:$0xff]
    %v1102 = vld [vmem:[#allocation6 + $0x118] sm:$0xff]
    %v1103 = vld [vmem:[#allocation6 + $0x120] sm:$0xff]
    %v1104 = vld [vmem:[#allocation6 + $0x128] sm:$0xff]
    %v1105 = vld [vmem:[#allocation6 + $0x130] sm:$0xff]
    %v1106 = vld [vmem:[#allocation6 + $0x138] sm:$0xff]
    %v1107 = vld [vmem:[#allocation6 + $0x140] sm:$0xff]
    %v1108 = vld [vmem:[#allocation6 + $0x148] sm:$0xff]
    %v1109 = vld [vmem:[#allocation6 + $0x150] sm:$0xff]
    %v1110 = vld [vmem:[#allocation6 + $0x158] sm:$0xff]
    %v1111 = vld [vmem:[#allocation6 + $0x160] sm:$0xff]
    %v1112 = vld [vmem:[#allocation6 + $0x168] sm:$0xff]
    %v1113 = vld [vmem:[#allocation6 + $0x170] sm:$0xff]
    %v1114 = vld [vmem:[#allocation6 + $0x178] sm:$0xff]
    %v1115 = vpack.c.bf16 %v1066, %v1065
    %v1164 = vunpack.c.l.b16 %v1067
    %v1165 = vunpack.c.h.b16 %v1067
    %v1166 = vunpack.c.l.b16 %v1068
    %v1167 = vunpack.c.h.b16 %v1068
    %v1168 = vunpack.c.l.b16 %v1069
    %v1169 = vunpack.c.h.b16 %v1069
    %v1170 = vunpack.c.l.b16 %v1070
    %v1171 = vunpack.c.h.b16 %v1070
    %v1172 = vunpack.c.l.b16 %v1071
    %v1173 = vunpack.c.h.b16 %v1071
    %v1174 = vunpack.c.l.b16 %v1072
    %v1175 = vunpack.c.h.b16 %v1072
    %v1176 = vunpack.c.l.b16 %v1073
    %v1177 = vunpack.c.h.b16 %v1073
    %v1178 = vunpack.c.l.b16 %v1074
    %v1179 = vunpack.c.h.b16 %v1074
    %v1180 = vunpack.c.l.b16 %v1075
    %v1181 = vunpack.c.h.b16 %v1075
    %v1182 = vunpack.c.l.b16 %v1076
    %v1183 = vunpack.c.h.b16 %v1076
    %v1184 = vunpack.c.l.b16 %v1077
    %v1185 = vunpack.c.h.b16 %v1077
    %v1186 = vunpack.c.l.b16 %v1078
    %v1187 = vunpack.c.h.b16 %v1078
    %v1188 = vunpack.c.l.b16 %v1079
    %v1189 = vunpack.c.h.b16 %v1079
    %v1190 = vunpack.c.l.b16 %v1080
    %v1191 = vunpack.c.h.b16 %v1080
    %v1192 = vunpack.c.l.b16 %v1081
    %v1193 = vunpack.c.h.b16 %v1081
    %v1194 = vunpack.c.l.b16 %v1082
    %v1195 = vunpack.c.h.b16 %v1082
    %v1196 = vunpack.c.l.b16 %v1083
    %v1197 = vunpack.c.h.b16 %v1083
    %v1198 = vunpack.c.l.b16 %v1084
    %v1199 = vunpack.c.h.b16 %v1084
    %v1200 = vunpack.c.l.b16 %v1085
    %v1201 = vunpack.c.h.b16 %v1085
    %v1202 = vunpack.c.l.b16 %v1086
    %v1203 = vunpack.c.h.b16 %v1086
    %v1204 = vunpack.c.l.b16 %v1087
    %v1205 = vunpack.c.h.b16 %v1087
    %v1206 = vunpack.c.l.b16 %v1088
    %v1207 = vunpack.c.h.b16 %v1088
    %v1208 = vunpack.c.l.b16 %v1089
    %v1209 = vunpack.c.h.b16 %v1089
    %v1210 = vunpack.c.l.b16 %v1090
    %v1211 = vunpack.c.h.b16 %v1090
    %v1212 = vunpack.c.l.b16 %v1091
    %v1213 = vunpack.c.h.b16 %v1091
    %v1214 = vunpack.c.l.b16 %v1092
    %v1215 = vunpack.c.h.b16 %v1092
    %v1216 = vunpack.c.l.b16 %v1093
    %v1217 = vunpack.c.h.b16 %v1093
    %v1218 = vunpack.c.l.b16 %v1094
    %v1219 = vunpack.c.h.b16 %v1094
    %v1220 = vunpack.c.l.b16 %v1095
    %v1221 = vunpack.c.h.b16 %v1095
    %v1222 = vunpack.c.l.b16 %v1096
    %v1223 = vunpack.c.h.b16 %v1096
    %v1224 = vunpack.c.l.b16 %v1097
    %v1225 = vunpack.c.h.b16 %v1097
    %v1226 = vunpack.c.l.b16 %v1098
    %v1227 = vunpack.c.h.b16 %v1098
    %v1228 = vunpack.c.l.b16 %v1099
    %v1229 = vunpack.c.h.b16 %v1099
    %v1230 = vunpack.c.l.b16 %v1100
    %v1231 = vunpack.c.h.b16 %v1100
    %v1232 = vunpack.c.l.b16 %v1101
    %v1233 = vunpack.c.h.b16 %v1101
    %v1234 = vunpack.c.l.b16 %v1102
    %v1235 = vunpack.c.h.b16 %v1102
    %v1236 = vunpack.c.l.b16 %v1103
    %v1237 = vunpack.c.h.b16 %v1103
    %v1238 = vunpack.c.l.b16 %v1104
    %v1239 = vunpack.c.h.b16 %v1104
    %v1240 = vunpack.c.l.b16 %v1105
    %v1241 = vunpack.c.h.b16 %v1105
    %v1242 = vunpack.c.l.b16 %v1106
    %v1243 = vunpack.c.h.b16 %v1106
    %v1244 = vunpack.c.l.b16 %v1107
    %v1245 = vunpack.c.h.b16 %v1107
    %v1246 = vunpack.c.l.b16 %v1108
    %v1247 = vunpack.c.h.b16 %v1108
    %v1248 = vunpack.c.l.b16 %v1109
    %v1249 = vunpack.c.h.b16 %v1109
    %v1250 = vunpack.c.l.b16 %v1110
    %v1251 = vunpack.c.h.b16 %v1110
    %v1252 = vunpack.c.l.b16 %v1111
    %v1253 = vunpack.c.h.b16 %v1111
    %v1254 = vunpack.c.l.b16 %v1112
    %v1255 = vunpack.c.h.b16 %v1112
    %v1256 = vunpack.c.l.b16 %v1113
    %v1257 = vunpack.c.h.b16 %v1113
    %v1258 = vunpack.c.l.b16 %v1114
    %v1259 = vunpack.c.h.b16 %v1114
    %v1260 = vpack.c.b16 %v1170, %v1164
    %v1261 = vpack.c.b16 %v1171, %v1165
    %v1262 = vpack.c.b16 %v1172, %v1166
    %v1263 = vpack.c.b16 %v1173, %v1167
    %v1264 = vpack.c.b16 %v1174, %v1168
    %v1265 = vpack.c.b16 %v1175, %v1169
    %v1266 = vpack.c.b16 %v1182, %v1176
    %v1267 = vpack.c.b16 %v1183, %v1177
    %v1268 = vpack.c.b16 %v1184, %v1178
    %v1269 = vpack.c.b16 %v1185, %v1179
    %v1270 = vpack.c.b16 %v1186, %v1180
    %v1271 = vpack.c.b16 %v1187, %v1181
    %v1272 = vpack.c.b16 %v1194, %v1188
    %v1273 = vpack.c.b16 %v1195, %v1189
    %v1274 = vpack.c.b16 %v1196, %v1190
    %v1275 = vpack.c.b16 %v1197, %v1191
    %v1276 = vpack.c.b16 %v1198, %v1192
    %v1277 = vpack.c.b16 %v1199, %v1193
    %v1278 = vpack.c.b16 %v1206, %v1200
    %v1279 = vpack.c.b16 %v1207, %v1201
    %v1280 = vpack.c.b16 %v1208, %v1202
    %v1281 = vpack.c.b16 %v1209, %v1203
    %v1282 = vpack.c.b16 %v1210, %v1204
    %v1283 = vpack.c.b16 %v1211, %v1205
    %v1284 = vpack.c.b16 %v1218, %v1212
    %v1285 = vpack.c.b16 %v1219, %v1213
    %v1286 = vpack.c.b16 %v1220, %v1214
    %v1287 = vpack.c.b16 %v1221, %v1215
    %v1288 = vpack.c.b16 %v1222, %v1216
    %v1289 = vpack.c.b16 %v1223, %v1217
    %v1290 = vpack.c.b16 %v1230, %v1224
    %v1291 = vpack.c.b16 %v1231, %v1225
    %v1292 = vpack.c.b16 %v1232, %v1226
    %v1293 = vpack.c.b16 %v1233, %v1227
    %v1294 = vpack.c.b16 %v1234, %v1228
    %v1295 = vpack.c.b16 %v1235, %v1229
    %v1296 = vpack.c.b16 %v1242, %v1236
    %v1297 = vpack.c.b16 %v1243, %v1237
    %v1298 = vpack.c.b16 %v1244, %v1238
    %v1299 = vpack.c.b16 %v1245, %v1239
    %v1300 = vpack.c.b16 %v1246, %v1240
    %v1301 = vpack.c.b16 %v1247, %v1241
    %v1302 = vpack.c.b16 %v1254, %v1248
    %v1303 = vpack.c.b16 %v1255, %v1249
    %v1304 = vpack.c.b16 %v1256, %v1250
    %v1305 = vpack.c.b16 %v1257, %v1251
    %v1306 = vpack.c.b16 %v1258, %v1252
    %v1307 = vpack.c.b16 %v1259, %v1253
    %1356 = vmatprep.subr.bf16.mxu0 %v1261
    %1357 = vmatpush1.bf16.msra.mxu0 %v1260
    %1358 = vmatprep.subr.bf16.mxu0 %v1267
    %1359 = vmatpush1.bf16.msra.mxu0 %v1266
    %1360 = vmatprep.subr.bf16.mxu0 %v1273
    %1361 = vmatpush1.bf16.msra.mxu0 %v1272
    %1362 = vmatprep.subr.bf16.mxu0 %v1279
    %1363 = vmatpush1.bf16.msra.mxu0 %v1278
    %1364 = vmatprep.subr.bf16.mxu0 %v1285
    %1365 = vmatpush1.bf16.msra.mxu0 %v1284
    %1366 = vmatprep.subr.bf16.mxu0 %v1291
    %1367 = vmatpush1.bf16.msra.mxu0 %v1290
    %1368 = vmatprep.subr.bf16.mxu0 %v1297
    %1369 = vmatpush1.bf16.msra.mxu0 %v1296
    %1370 = vmatprep.subr.bf16.mxu0 %v1303
    %1371 = vmatpush1.bf16.msra.mxu0 %v1302
    %1372 = vmatprep.subr.bf16.mxu0 0
    %1373 = vmatpush1.bf16.msra.mxu0 0
    %1374 = vmatprep.subr.bf16.mxu0 0
    %1375 = vmatpush1.bf16.msra.mxu0 0
    %1376 = vmatprep.subr.bf16.mxu0 0
    %1377 = vmatpush1.bf16.msra.mxu0 0
    %1378 = vmatprep.subr.bf16.mxu0 0
    %1379 = vmatpush1.bf16.msra.mxu0 0
    %1380 = vmatprep.subr.bf16.mxu0 0
    %1381 = vmatpush1.bf16.msra.mxu0 0
    %1382 = vmatprep.subr.bf16.mxu0 0
    %1383 = vmatpush1.bf16.msra.mxu0 0
    %1384 = vmatprep.subr.bf16.mxu0 0
    %1385 = vmatpush1.bf16.msra.mxu0 0
    %1386 = vmatprep.subr.bf16.mxu0 0
    %1387 = vmatpush1.bf16.msra.mxu0 0
    %1388 = vmatprep.mubr.bf16.mxu0 0
    %1389 = vmatmul.mubr.bf16.gmra.mrb[0].mxu0 %v1115
    %v1390 = vpop.f32.mrb[0].mxu0
    %v1391 = vadd.f32 0.0, %v1390
    %v1392 = vpop.f32.mrb[0].mxu0
    %v1393 = vadd.f32 0.0, %v1392
    %v1394 = vpop.f32.mrb[0].mxu0
    %v1395 = vadd.f32 0.0, %v1394
    %v1396 = vpop.f32.mrb[0].mxu0
    %v1397 = vadd.f32 0.0, %v1396
    %1398 = vdwg.mxu0
    %1399 = vmatprep.subr.bf16.mxu0 %v1263
    %1400 = vmatpush1.bf16.msra.mxu0 %v1262
    %1401 = vmatprep.subr.bf16.mxu0 %v1269
    %1402 = vmatpush1.bf16.msra.mxu0 %v1268
    %1403 = vmatprep.subr.bf16.mxu0 %v1275
    %1404 = vmatpush1.bf16.msra.mxu0 %v1274
    %1405 = vmatprep.subr.bf16.mxu0 %v1281
    %1406 = vmatpush1.bf16.msra.mxu0 %v1280
    %1407 = vmatprep.subr.bf16.mxu0 %v1287
    %1408 = vmatpush1.bf16.msra.mxu0 %v1286
    %1409 = vmatprep.subr.bf16.mxu0 %v1293
    %1410 = vmatpush1.bf16.msra.mxu0 %v1292
    %1411 = vmatprep.subr.bf16.mxu0 %v1299
    %1412 = vmatpush1.bf16.msra.mxu0 %v1298
    %1413 = vmatprep.subr.bf16.mxu0 %v1305
    %1414 = vmatpush1.bf16.msra.mxu0 %v1304
    %1415 = vmatprep.subr.bf16.mxu0 0
    %1416 = vmatpush1.bf16.msra.mxu0 0
    %1417 = vmatprep.subr.bf16.mxu0 0
    %1418 = vmatpush1.bf16.msra.mxu0 0
    %1419 = vmatprep.subr.bf16.mxu0 0
    %1420 = vmatpush1.bf16.msra.mxu0 0
    %1421 = vmatprep.subr.bf16.mxu0 0
    %1422 = vmatpush1.bf16.msra.mxu0 0
    %1423 = vmatprep.subr.bf16.mxu0 0
    %1424 = vmatpush1.bf16.msra.mxu0 0
    %1425 = vmatprep.subr.bf16.mxu0 0
    %1426 = vmatpush1.bf16.msra.mxu0 0
    %1427 = vmatprep.subr.bf16.mxu0 0
    %1428 = vmatpush1.bf16.msra.mxu0 0
    %1429 = vmatprep.subr.bf16.mxu0 0
    %1430 = vmatpush1.bf16.msra.mxu0 0
    %1431 = vmatprep.mubr.bf16.mxu0 0
    %1432 = vmatmul.mubr.bf16.gmra.mrb[0].mxu0 %v1115
    %v1433 = vpop.f32.mrb[0].mxu0
    %v1434 = vadd.f32 0.0, %v1433
    %v1435 = vpop.f32.mrb[0].mxu0
    %v1436 = vadd.f32 0.0, %v1435
    %v1437 = vpop.f32.mrb[0].mxu0
    %v1438 = vadd.f32 0.0, %v1437
    %v1439 = vpop.f32.mrb[0].mxu0
    %v1440 = vadd.f32 0.0, %v1439
    %1441 = vdwg.mxu0
    %1442 = vmatprep.subr.bf16.mxu0 %v1265
    %1443 = vmatpush1.bf16.msra.mxu0 %v1264
    %1444 = vmatprep.subr.bf16.mxu0 %v1271
    %1445 = vmatpush1.bf16.msra.mxu0 %v1270
    %1446 = vmatprep.subr.bf16.mxu0 %v1277
    %1447 = vmatpush1.bf16.msra.mxu0 %v1276
    %1448 = vmatprep.subr.bf16.mxu0 %v1283
    %1449 = vmatpush1.bf16.msra.mxu0 %v1282
    %1450 = vmatprep.subr.bf16.mxu0 %v1289
    %1451 = vmatpush1.bf16.msra.mxu0 %v1288
    %1452 = vmatprep.subr.bf16.mxu0 %v1295
    %1453 = vmatpush1.bf16.msra.mxu0 %v1294
    %1454 = vmatprep.subr.bf16.mxu0 %v1301
    %1455 = vmatpush1.bf16.msra.mxu0 %v1300
    %1456 = vmatprep.subr.bf16.mxu0 %v1307
    %1457 = vmatpush1.bf16.msra.mxu0 %v1306
    %1458 = vmatprep.subr.bf16.mxu0 0
    %1459 = vmatpush1.bf16.msra.mxu0 0
    %1460 = vmatprep.subr.bf16.mxu0 0
    %1461 = vmatpush1.bf16.msra.mxu0 0
    %1462 = vmatprep.subr.bf16.mxu0 0
    %1463 = vmatpush1.bf16.msra.mxu0 0
    %1464 = vmatprep.subr.bf16.mxu0 0
    %1465 = vmatpush1.bf16.msra.mxu0 0
    %1466 = vmatprep.subr.bf16.mxu0 0
    %1467 = vmatpush1.bf16.msra.mxu0 0
    %1468 = vmatprep.subr.bf16.mxu0 0
    %1469 = vmatpush1.bf16.msra.mxu0 0
    %1470 = vmatprep.subr.bf16.mxu0 0
    %1471 = vmatpush1.bf16.msra.mxu0 0
    %1472 = vmatprep.subr.bf16.mxu0 0
    %1473 = vmatpush1.bf16.msra.mxu0 0
    %1474 = vmatprep.mubr.bf16.mxu0 0
    %1475 = vmatmul.mubr.bf16.gmra.mrb[0].mxu0 %v1115
    %v1476 = vpop.f32.mrb[0].mxu0
    %v1477 = vadd.f32 0.0, %v1476
    %v1478 = vpop.f32.mrb[0].mxu0
    %v1479 = vadd.f32 0.0, %v1478
    %v1480 = vpop.f32.mrb[0].mxu0
    %v1481 = vadd.f32 0.0, %v1480
    %v1482 = vpop.f32.mrb[0].mxu0
    %v1483 = vadd.f32 0.0, %v1482
    %1484 = vdwg.mxu0
    %v1485 = vxor.u32 %v1391, 2147483648
    %v1486 = vxor.u32 %v1393, 2147483648
    %v1487 = vxor.u32 %v1434, 2147483648
    %v1488 = vxor.u32 %v1395, 2147483648
    %v1489 = vxor.u32 %v1397, 2147483648
    %v1490 = vxor.u32 %v1438, 2147483648
    %v1491 = vmul.f32 %v1485, 1.442695
    %v1492 = vpow.pop %v1491
    %v1493 = vmul.f32 %v1486, 1.442695
    %v1494 = vpow.pop %v1493
    %v1495 = vmul.f32 %v1487, 1.442695
    %v1496 = vpow.pop %v1495
    %v1497 = vmul.f32 %v1488, 1.442695
    %v1498 = vpow.pop %v1497
    %v1499 = vmul.f32 %v1489, 1.442695
    %v1500 = vpow.pop %v1499
    %v1501 = vmul.f32 %v1490, 1.442695
    %v1502 = vpow.pop %v1501
    %v1503 = vadd.f32 %v1492, 1.0
    %v1504 = vadd.f32 %v1494, 1.0
    %v1505 = vadd.f32 %v1496, 1.0
    %v1506 = vadd.f32 %v1498, 1.0
    %v1507 = vadd.f32 %v1500, 1.0
    %v1508 = vadd.f32 %v1502, 1.0
    %v1509 = vrcp.pop %v1503
    %v1510 = vmul.f32 1.0, %v1509
    %v1511 = vrcp.pop %v1504
    %v1512 = vmul.f32 1.0, %v1511
    %v1513 = vrcp.pop %v1505
    %v1514 = vmul.f32 1.0, %v1513
    %v1515 = vrcp.pop %v1506
    %v1516 = vmul.f32 1.0, %v1515
    %v1517 = vrcp.pop %v1507
    %v1518 = vmul.f32 1.0, %v1517
    %v1519 = vrcp.pop %v1508
    %v1520 = vmul.f32 1.0, %v1519
    %v1521 = vmul.f32 %v1391, %v1510
    %v1522 = vmul.f32 %v1393, %v1512
    %v1523 = vmul.f32 %v1434, %v1514
    %v1524 = vmul.f32 %v1395, %v1516
    %v1525 = vmul.f32 %v1397, %v1518
    %v1526 = vmul.f32 %v1438, %v1520
    %v1527 = vmul.f32 %v1521, %v1436
    %v1528 = vmul.f32 %v1522, %v1477
    %v1529 = vmul.f32 %v1523, %v1479
    %v1530 = vmul.f32 %v1524, %v1440
    %v1531 = vmul.f32 %v1525, %v1481
    %v1532 = vmul.f32 %v1526, %v1483
    %v1533 = vld [vmem:[#allocation8] sm:$0xf]
    %v1534 = vld [vmem:[#allocation8 + $0x4] sm:$0xf]
    %v1535 = vld [vmem:[#allocation8 + $0x8] sm:$0xf]
    %v1536 = vld [vmem:[#allocation8 + $0xc] sm:$0xf]
    %v1537 = vld [vmem:[#allocation8 + $0x10] sm:$0xf]
    %v1538 = vld [vmem:[#allocation8 + $0x14] sm:$0xf]
    %v1539 = vld [vmem:[#allocation8 + $0x18] sm:$0xf]
    %v1540 = vld [vmem:[#allocation8 + $0x1c] sm:$0xf]
    %v1541 = vld [vmem:[#allocation8 + $0x20] sm:$0xf]
    %v1542 = vld [vmem:[#allocation8 + $0x24] sm:$0xf]
    %v1543 = vld [vmem:[#allocation8 + $0x28] sm:$0xf]
    %v1544 = vld [vmem:[#allocation8 + $0x2c] sm:$0xf]
    %v1545 = vld [vmem:[#allocation8 + $0x30] sm:$0xf]
    %v1546 = vld [vmem:[#allocation8 + $0x34] sm:$0xf]
    %v1547 = vld [vmem:[#allocation8 + $0x38] sm:$0xf]
    %v1548 = vld [vmem:[#allocation8 + $0x3c] sm:$0xf]
    %v1549 = vld [vmem:[#allocation8 + $0x40] sm:$0xf]
    %v1550 = vld [vmem:[#allocation8 + $0x44] sm:$0xf]
    %v1551 = vld [vmem:[#allocation8 + $0x48] sm:$0xf]
    %v1552 = vld [vmem:[#allocation8 + $0x4c] sm:$0xf]
    %v1553 = vld [vmem:[#allocation8 + $0x50] sm:$0xf]
    %v1554 = vld [vmem:[#allocation8 + $0x54] sm:$0xf]
    %v1555 = vld [vmem:[#allocation8 + $0x58] sm:$0xf]
    %v1556 = vld [vmem:[#allocation8 + $0x5c] sm:$0xf]
    %v1557 = vld [vmem:[#allocation8 + $0x60] sm:$0xf]
    %v1558 = vld [vmem:[#allocation8 + $0x64] sm:$0xf]
    %v1559 = vld [vmem:[#allocation8 + $0x68] sm:$0xf]
    %v1560 = vld [vmem:[#allocation8 + $0x6c] sm:$0xf]
    %v1561 = vld [vmem:[#allocation8 + $0x70] sm:$0xf]
    %v1562 = vld [vmem:[#allocation8 + $0x74] sm:$0xf]
    %v1563 = vld [vmem:[#allocation8 + $0x78] sm:$0xf]
    %v1564 = vld [vmem:[#allocation8 + $0x7c] sm:$0xf]
    %v1565 = vld [vmem:[#allocation8 + $0x80] sm:$0xf]
    %v1566 = vld [vmem:[#allocation8 + $0x84] sm:$0xf]
    %v1567 = vld [vmem:[#allocation8 + $0x88] sm:$0xf]
    %v1568 = vld [vmem:[#allocation8 + $0x8c] sm:$0xf]
    %v1569 = vld [vmem:[#allocation8 + $0x90] sm:$0xf]
    %v1570 = vld [vmem:[#allocation8 + $0x94] sm:$0xf]
    %v1571 = vld [vmem:[#allocation8 + $0x98] sm:$0xf]
    %v1572 = vld [vmem:[#allocation8 + $0x9c] sm:$0xf]
    %v1573 = vld [vmem:[#allocation8 + $0xa0] sm:$0xf]
    %v1574 = vld [vmem:[#allocation8 + $0xa4] sm:$0xf]
    %v1575 = vld [vmem:[#allocation8 + $0xa8] sm:$0xf]
    %v1576 = vld [vmem:[#allocation8 + $0xac] sm:$0xf]
    %v1577 = vld [vmem:[#allocation8 + $0xb0] sm:$0xf]
    %v1578 = vld [vmem:[#allocation8 + $0xb4] sm:$0xf]
    %v1579 = vld [vmem:[#allocation8 + $0xb8] sm:$0xf]
    %v1580 = vld [vmem:[#allocation8 + $0xbc] sm:$0xf]
    %v1581 = vpack.c.bf16 %v1530, %v1527
    %v1582 = vpack.c.bf16 %v1531, %v1528
    %v1583 = vpack.c.bf16 %v1532, %v1529
    %v1632 = vunpack.c.l.b16 %v1533
    %v1633 = vunpack.c.l.b16 %v1534
    %v1634 = vunpack.c.l.b16 %v1535
    %v1635 = vunpack.c.l.b16 %v1536
    %v1636 = vunpack.c.l.b16 %v1537
    %v1637 = vunpack.c.l.b16 %v1538
    %v1638 = vunpack.c.l.b16 %v1539
    %v1639 = vunpack.c.l.b16 %v1540
    %v1640 = vunpack.c.l.b16 %v1541
    %v1641 = vunpack.c.l.b16 %v1542
    %v1642 = vunpack.c.l.b16 %v1543
    %v1643 = vunpack.c.l.b16 %v1544
    %v1644 = vunpack.c.l.b16 %v1545
    %v1645 = vunpack.c.l.b16 %v1546
    %v1646 = vunpack.c.l.b16 %v1547
    %v1647 = vunpack.c.l.b16 %v1548
    %v1648 = vunpack.c.l.b16 %v1549
    %v1649 = vunpack.c.l.b16 %v1550
    %v1650 = vunpack.c.l.b16 %v1551
    %v1651 = vunpack.c.l.b16 %v1552
    %v1652 = vunpack.c.l.b16 %v1553
    %v1653 = vunpack.c.l.b16 %v1554
    %v1654 = vunpack.c.l.b16 %v1555
    %v1655 = vunpack.c.l.b16 %v1556
    %v1656 = vunpack.c.l.b16 %v1557
    %v1657 = vunpack.c.l.b16 %v1558
    %v1658 = vunpack.c.l.b16 %v1559
    %v1659 = vunpack.c.l.b16 %v1560
    %v1660 = vunpack.c.l.b16 %v1561
    %v1661 = vunpack.c.l.b16 %v1562
    %v1662 = vunpack.c.l.b16 %v1563
    %v1663 = vunpack.c.l.b16 %v1564
    %v1664 = vunpack.c.l.b16 %v1565
    %v1665 = vunpack.c.l.b16 %v1566
    %v1666 = vunpack.c.l.b16 %v1567
    %v1667 = vunpack.c.l.b16 %v1568
    %v1668 = vunpack.c.l.b16 %v1569
    %v1669 = vunpack.c.l.b16 %v1570
    %v1670 = vunpack.c.l.b16 %v1571
    %v1671 = vunpack.c.l.b16 %v1572
    %v1672 = vunpack.c.l.b16 %v1573
    %v1673 = vunpack.c.l.b16 %v1574
    %v1674 = vunpack.c.l.b16 %v1575
    %v1675 = vunpack.c.l.b16 %v1576
    %v1676 = vunpack.c.l.b16 %v1577
    %v1677 = vunpack.c.l.b16 %v1578
    %v1678 = vunpack.c.l.b16 %v1579
    %v1679 = vunpack.c.l.b16 %v1580
    %v1680 = vpack.c.b16 %v1633, %v1632
    %v1681 = vpack.c.b16 %v1635, %v1634
    %v1682 = vpack.c.b16 %v1637, %v1636
    %v1683 = vpack.c.b16 %v1639, %v1638
    %v1684 = vpack.c.b16 %v1641, %v1640
    %v1685 = vpack.c.b16 %v1643, %v1642
    %v1686 = vpack.c.b16 %v1645, %v1644
    %v1687 = vpack.c.b16 %v1647, %v1646
    %v1688 = vpack.c.b16 %v1649, %v1648
    %v1689 = vpack.c.b16 %v1651, %v1650
    %v1690 = vpack.c.b16 %v1653, %v1652
    %v1691 = vpack.c.b16 %v1655, %v1654
    %v1692 = vpack.c.b16 %v1657, %v1656
    %v1693 = vpack.c.b16 %v1659, %v1658
    %v1694 = vpack.c.b16 %v1661, %v1660
    %v1695 = vpack.c.b16 %v1663, %v1662
    %v1696 = vpack.c.b16 %v1665, %v1664
    %v1697 = vpack.c.b16 %v1667, %v1666
    %v1698 = vpack.c.b16 %v1669, %v1668
    %v1699 = vpack.c.b16 %v1671, %v1670
    %v1700 = vpack.c.b16 %v1673, %v1672
    %v1701 = vpack.c.b16 %v1675, %v1674
    %v1702 = vpack.c.b16 %v1677, %v1676
    %v1703 = vpack.c.b16 %v1679, %v1678
    %1728 = vmatprep.subr.bf16.mxu0 0
    %1729 = vmatpush1.bf16.msra.mxu0 %v1680
    %1730 = vmatprep.subr.bf16.mxu0 0
    %1731 = vmatpush1.bf16.msra.mxu0 %v1681
    %1732 = vmatprep.subr.bf16.mxu0 0
    %1733 = vmatpush1.bf16.msra.mxu0 %v1682
    %1734 = vmatprep.subr.bf16.mxu0 0
    %1735 = vmatpush1.bf16.msra.mxu0 %v1683
    %1736 = vmatprep.subr.bf16.mxu0 0
    %1737 = vmatpush1.bf16.msra.mxu0 %v1684
    %1738 = vmatprep.subr.bf16.mxu0 0
    %1739 = vmatpush1.bf16.msra.mxu0 %v1685
    %1740 = vmatprep.subr.bf16.mxu0 0
    %1741 = vmatpush1.bf16.msra.mxu0 %v1686
    %1742 = vmatprep.subr.bf16.mxu0 0
    %1743 = vmatpush1.bf16.msra.mxu0 %v1687
    %1744 = vmatprep.subr.bf16.mxu0 0
    %1745 = vmatpush1.bf16.msra.mxu0 %v1688
    %1746 = vmatprep.subr.bf16.mxu0 0
    %1747 = vmatpush1.bf16.msra.mxu0 %v1689
    %1748 = vmatprep.subr.bf16.mxu0 0
    %1749 = vmatpush1.bf16.msra.mxu0 %v1690
    %1750 = vmatprep.subr.bf16.mxu0 0
    %1751 = vmatpush1.bf16.msra.mxu0 %v1691
    %1752 = vmatprep.subr.bf16.mxu0 0
    %1753 = vmatpush1.bf16.msra.mxu0 %v1692
    %1754 = vmatprep.subr.bf16.mxu0 0
    %1755 = vmatpush1.bf16.msra.mxu0 %v1693
    %1756 = vmatprep.subr.bf16.mxu0 0
    %1757 = vmatpush1.bf16.msra.mxu0 %v1694
    %1758 = vmatprep.subr.bf16.mxu0 0
    %1759 = vmatpush1.bf16.msra.mxu0 %v1695
    %1760 = vmatprep.mubr.bf16.mxu0 %v1582
    %1761 = vmatmul.mubr.bf16.gmra.mrb[0].mxu0 %v1581
    %v1762 = vpop.f32.mrb[0].mxu0
    %v1763 = vadd.f32 0.0, %v1762
    %v1764 = vpop.f32.mrb[0].mxu0
    %v1765 = vpop.f32.mrb[0].mxu0
    %v1766 = vadd.f32 0.0, %v1765
    %v1767 = vpop.f32.mrb[0].mxu0
    %1768 = vdwg.mxu0
    %1769 = vmatprep.subr.bf16.mxu0 0
    %1770 = vmatpush1.bf16.msra.mxu0 %v1696
    %1771 = vmatprep.subr.bf16.mxu0 0
    %1772 = vmatpush1.bf16.msra.mxu0 %v1697
    %1773 = vmatprep.subr.bf16.mxu0 0
    %1774 = vmatpush1.bf16.msra.mxu0 %v1698
    %1775 = vmatprep.subr.bf16.mxu0 0
    %1776 = vmatpush1.bf16.msra.mxu0 %v1699
    %1777 = vmatprep.subr.bf16.mxu0 0
    %1778 = vmatpush1.bf16.msra.mxu0 %v1700
    %1779 = vmatprep.subr.bf16.mxu0 0
    %1780 = vmatpush1.bf16.msra.mxu0 %v1701
    %1781 = vmatprep.subr.bf16.mxu0 0
    %1782 = vmatpush1.bf16.msra.mxu0 %v1702
    %1783 = vmatprep.subr.bf16.mxu0 0
    %1784 = vmatpush1.bf16.msra.mxu0 %v1703
    %1785 = vmatprep.subr.bf16.mxu0 0
    %1786 = vmatpush1.bf16.msra.mxu0 0
    %1787 = vmatprep.subr.bf16.mxu0 0
    %1788 = vmatpush1.bf16.msra.mxu0 0
    %1789 = vmatprep.subr.bf16.mxu0 0
    %1790 = vmatpush1.bf16.msra.mxu0 0
    %1791 = vmatprep.subr.bf16.mxu0 0
    %1792 = vmatpush1.bf16.msra.mxu0 0
    %1793 = vmatprep.subr.bf16.mxu0 0
    %1794 = vmatpush1.bf16.msra.mxu0 0
    %1795 = vmatprep.subr.bf16.mxu0 0
    %1796 = vmatpush1.bf16.msra.mxu0 0
    %1797 = vmatprep.subr.bf16.mxu0 0
    %1798 = vmatpush1.bf16.msra.mxu0 0
    %1799 = vmatprep.subr.bf16.mxu0 0
    %1800 = vmatpush1.bf16.msra.mxu0 0
    %1801 = vmatprep.mubr.bf16.mxu0 0
    %1802 = vmatmul.mubr.bf16.gmra.mrb[0].mxu0 %v1583
    %v1803 = vpop.f32.mrb[0].mxu0
    %v1804 = vadd.f32 %v1763, %v1803
    %v1805 = vpop.f32.mrb[0].mxu0
    %v1806 = vpop.f32.mrb[0].mxu0
    %v1807 = vadd.f32 %v1766, %v1806
    %v1808 = vpop.f32.mrb[0].mxu0
    %1809 = vdwg.mxu0
    %v1810 = vadd.f32 %v1042, %v1804
    %v1811 = vadd.f32 %v1043, %v1807
    %s1812 = scalar_lea.vmem %s3, 1
    %v1813 = vld [vmem:[%s1812] sm:$0x1]
    %v1814 = vmul.f32 %v1810, %v1810
    %v1815 = vmul.f32 %v1811, %v1811
    %1816 = vadd.xlane.f32.xlu0 %v1814
    %v1817 = vpop.xlane.xlu0 %1816
    %1818 = vadd.xlane.f32.xlu0 %v1815
    %v1819 = vpop.xlane.xlu0 %1818
    %v1820 = vmul.f32 %v1817, %v114
    %v1821 = vmul.f32 %v1819, %v114
    %v1822 = vadd.f32 %v1820, 1e-05
    %v1823 = vadd.f32 %v1821, 1e-05
    %v1824 = vrsqrt.pop %v1822
    %v1825 = vrsqrt.pop %v1823
    %v1826 = vmul.f32 %v1810, %v1824
    %v1827 = vmul.f32 %v1811, %v1825
    %v1829 = vlaneseq
    %v1830 = vshrl.u32 %v1829, 7
    %v1831 = vsub.s32 0, %v1830
    %v1832 = vrot.slane %v1813, %v1831
    %v1834 = vmul.f32 %v1826, %v1832
    %v1835 = vmul.f32 %v1827, %v1832
    %s1836 = scalar_lea.vmem [#allocation3], 192
    %v1837 = vld [vmem:[%s1836] sm:$0xff]
    %v1838 = vld [vmem:[%s1836 + $0x8] sm:$0xf]
    %v1839 = vld [vmem:[%s1836 + $0xc] sm:$0xff]
    %v1840 = vld [vmem:[%s1836 + $0x14] sm:$0xf]
    %v1841 = vld [vmem:[%s1836 + $0x18] sm:$0xff]
    %v1842 = vld [vmem:[%s1836 + $0x20] sm:$0xf]
    %v1843 = vld [vmem:[%s1836 + $0x24] sm:$0xff]
    %v1844 = vld [vmem:[%s1836 + $0x2c] sm:$0xf]
    %v1845 = vld [vmem:[%s1836 + $0x30] sm:$0xff]
    %v1846 = vld [vmem:[%s1836 + $0x38] sm:$0xf]
    %v1847 = vld [vmem:[%s1836 + $0x3c] sm:$0xff]
    %v1848 = vld [vmem:[%s1836 + $0x44] sm:$0xf]
    %v1849 = vld [vmem:[%s1836 + $0x48] sm:$0xff]
    %v1850 = vld [vmem:[%s1836 + $0x50] sm:$0xf]
    %v1851 = vld [vmem:[%s1836 + $0x54] sm:$0xff]
    %v1852 = vld [vmem:[%s1836 + $0x5c] sm:$0xf]
    %v1853 = vld [vmem:[%s1836 + $0x60] sm:$0xff]
    %v1854 = vld [vmem:[%s1836 + $0x68] sm:$0xf]
    %v1855 = vld [vmem:[%s1836 + $0x6c] sm:$0xff]
    %v1856 = vld [vmem:[%s1836 + $0x74] sm:$0xf]
    %v1857 = vld [vmem:[%s1836 + $0x78] sm:$0xff]
    %v1858 = vld [vmem:[%s1836 + $0x80] sm:$0xf]
    %v1859 = vld [vmem:[%s1836 + $0x84] sm:$0xff]
    %v1860 = vld [vmem:[%s1836 + $0x8c] sm:$0xf]
    %v1861 = vld [vmem:[%s1836 + $0x90] sm:$0xff]
    %v1862 = vld [vmem:[%s1836 + $0x98] sm:$0xf]
    %v1863 = vld [vmem:[%s1836 + $0x9c] sm:$0xff]
    %v1864 = vld [vmem:[%s1836 + $0xa4] sm:$0xf]
    %v1865 = vld [vmem:[%s1836 + $0xa8] sm:$0xff]
    %v1866 = vld [vmem:[%s1836 + $0xb0] sm:$0xf]
    %v1867 = vld [vmem:[%s1836 + $0xb4] sm:$0xff]
    %v1868 = vld [vmem:[%s1836 + $0xbc] sm:$0xf]
    %v1869 = vpack.c.bf16 %v1835, %v1834
    %v1902 = vunpack.c.l.b16 %v1837
    %v1903 = vunpack.c.h.b16 %v1837
    %v1904 = vunpack.c.l.b16 %v1838
    %v1905 = vunpack.c.l.b16 %v1839
    %v1906 = vunpack.c.h.b16 %v1839
    %v1907 = vunpack.c.l.b16 %v1840
    %v1908 = vunpack.c.l.b16 %v1841
    %v1909 = vunpack.c.h.b16 %v1841
    %v1910 = vunpack.c.l.b16 %v1842
    %v1911 = vunpack.c.l.b16 %v1843
    %v1912 = vunpack.c.h.b16 %v1843
    %v1913 = vunpack.c.l.b16 %v1844
    %v1914 = vunpack.c.l.b16 %v1845
    %v1915 = vunpack.c.h.b16 %v1845
    %v1916 = vunpack.c.l.b16 %v1846
    %v1917 = vunpack.c.l.b16 %v1847
    %v1918 = vunpack.c.h.b16 %v1847
    %v1919 = vunpack.c.l.b16 %v1848
    %v1920 = vunpack.c.l.b16 %v1849
    %v1921 = vunpack.c.h.b16 %v1849
    %v1922 = vunpack.c.l.b16 %v1850
    %v1923 = vunpack.c.l.b16 %v1851
    %v1924 = vunpack.c.h.b16 %v1851
    %v1925 = vunpack.c.l.b16 %v1852
    %v1926 = vunpack.c.l.b16 %v1853
    %v1927 = vunpack.c.h.b16 %v1853
    %v1928 = vunpack.c.l.b16 %v1854
    %v1929 = vunpack.c.l.b16 %v1855
    %v1930 = vunpack.c.h.b16 %v1855
    %v1931 = vunpack.c.l.b16 %v1856
    %v1932 = vunpack.c.l.b16 %v1857
    %v1933 = vunpack.c.h.b16 %v1857
    %v1934 = vunpack.c.l.b16 %v1858
    %v1935 = vunpack.c.l.b16 %v1859
    %v1936 = vunpack.c.h.b16 %v1859
    %v1937 = vunpack.c.l.b16 %v1860
    %v1938 = vunpack.c.l.b16 %v1861
    %v1939 = vunpack.c.h.b16 %v1861
    %v1940 = vunpack.c.l.b16 %v1862
    %v1941 = vunpack.c.l.b16 %v1863
    %v1942 = vunpack.c.h.b16 %v1863
    %v1943 = vunpack.c.l.b16 %v1864
    %v1944 = vunpack.c.l.b16 %v1865
    %v1945 = vunpack.c.h.b16 %v1865
    %v1946 = vunpack.c.l.b16 %v1866
    %v1947 = vunpack.c.l.b16 %v1867
    %v1948 = vunpack.c.h.b16 %v1867
    %v1949 = vunpack.c.l.b16 %v1868
    %v1950 = vpack.c.b16 %v1905, %v1902
    %v1951 = vpack.c.b16 %v1906, %v1903
    %v1952 = vpack.c.b16 %v1907, %v1904
    %v1953 = vpack.c.b16 %v1911, %v1908
    %v1954 = vpack.c.b16 %v1912, %v1909
    %v1955 = vpack.c.b16 %v1913, %v1910
    %v1956 = vpack.c.b16 %v1917, %v1914
    %v1957 = vpack.c.b16 %v1918, %v1915
    %v1958 = vpack.c.b16 %v1919, %v1916
    %v1959 = vpack.c.b16 %v1923, %v1920
    %v1960 = vpack.c.b16 %v1924, %v1921
    %v1961 = vpack.c.b16 %v1925, %v1922
    %v1962 = vpack.c.b16 %v1929, %v1926
    %v1963 = vpack.c.b16 %v1930, %v1927
    %v1964 = vpack.c.b16 %v1931, %v1928
    %v1965 = vpack.c.b16 %v1935, %v1932
    %v1966 = vpack.c.b16 %v1936, %v1933
    %v1967 = vpack.c.b16 %v1937, %v1934
    %v1968 = vpack.c.b16 %v1941, %v1938
    %v1969 = vpack.c.b16 %v1942, %v1939
    %v1970 = vpack.c.b16 %v1943, %v1940
    %v1971 = vpack.c.b16 %v1947, %v1944
    %v1972 = vpack.c.b16 %v1948, %v1945
    %v1973 = vpack.c.b16 %v1949, %v1946
    %1998 = vmatprep.subr.bf16.mxu0 %v1951
    %1999 = vmatpush1.bf16.msra.mxu0 %v1950
    %2000 = vmatprep.subr.bf16.mxu0 %v1954
    %2001 = vmatpush1.bf16.msra.mxu0 %v1953
    %2002 = vmatprep.subr.bf16.mxu0 %v1957
    %2003 = vmatpush1.bf16.msra.mxu0 %v1956
    %2004 = vmatprep.subr.bf16.mxu0 %v1960
    %2005 = vmatpush1.bf16.msra.mxu0 %v1959
    %2006 = vmatprep.subr.bf16.mxu0 %v1963
    %2007 = vmatpush1.bf16.msra.mxu0 %v1962
    %2008 = vmatprep.subr.bf16.mxu0 %v1966
    %2009 = vmatpush1.bf16.msra.mxu0 %v1965
    %2010 = vmatprep.subr.bf16.mxu0 %v1969
    %2011 = vmatpush1.bf16.msra.mxu0 %v1968
    %2012 = vmatprep.subr.bf16.mxu0 %v1972
    %2013 = vmatpush1.bf16.msra.mxu0 %v1971
    %2014 = vmatprep.subr.bf16.mxu0 0
    %2015 = vmatpush1.bf16.msra.mxu0 0
    %2016 = vmatprep.subr.bf16.mxu0 0
    %2017 = vmatpush1.bf16.msra.mxu0 0
    %2018 = vmatprep.subr.bf16.mxu0 0
    %2019 = vmatpush1.bf16.msra.mxu0 0
    %2020 = vmatprep.subr.bf16.mxu0 0
    %2021 = vmatpush1.bf16.msra.mxu0 0
    %2022 = vmatprep.subr.bf16.mxu0 0
    %2023 = vmatpush1.bf16.msra.mxu0 0
    %2024 = vmatprep.subr.bf16.mxu0 0
    %2025 = vmatpush1.bf16.msra.mxu0 0
    %2026 = vmatprep.subr.bf16.mxu0 0
    %2027 = vmatpush1.bf16.msra.mxu0 0
    %2028 = vmatprep.subr.bf16.mxu0 0
    %2029 = vmatpush1.bf16.msra.mxu0 0
    %2030 = vmatprep.mubr.bf16.mxu0 0
    %2031 = vmatmul.mubr.bf16.gmra.mrb[0].mxu0 %v1869
    %v2032 = vpop.f32.mrb[0].mxu0
    %v2033 = vadd.f32 0.0, %v2032
    %v2034 = vpop.f32.mrb[0].mxu0
    %v2035 = vadd.f32 0.0, %v2034
    %v2036 = vpop.f32.mrb[0].mxu0
    %v2037 = vadd.f32 0.0, %v2036
    %v2038 = vpop.f32.mrb[0].mxu0
    %v2039 = vadd.f32 0.0, %v2038
    %2040 = vdwg.mxu0
    %2041 = vmatprep.subr.bf16.mxu0 0
    %2042 = vmatpush1.bf16.msra.mxu0 %v1952
    %2043 = vmatprep.subr.bf16.mxu0 0
    %2044 = vmatpush1.bf16.msra.mxu0 %v1955
    %2045 = vmatprep.subr.bf16.mxu0 0
    %2046 = vmatpush1.bf16.msra.mxu0 %v1958
    %2047 = vmatprep.subr.bf16.mxu0 0
    %2048 = vmatpush1.bf16.msra.mxu0 %v1961
    %2049 = vmatprep.subr.bf16.mxu0 0
    %2050 = vmatpush1.bf16.msra.mxu0 %v1964
    %2051 = vmatprep.subr.bf16.mxu0 0
    %2052 = vmatpush1.bf16.msra.mxu0 %v1967
    %2053 = vmatprep.subr.bf16.mxu0 0
    %2054 = vmatpush1.bf16.msra.mxu0 %v1970
    %2055 = vmatprep.subr.bf16.mxu0 0
    %2056 = vmatpush1.bf16.msra.mxu0 %v1973
    %2057 = vmatprep.subr.bf16.mxu0 0
    %2058 = vmatpush1.bf16.msra.mxu0 0
    %2059 = vmatprep.subr.bf16.mxu0 0
    %2060 = vmatpush1.bf16.msra.mxu0 0
    %2061 = vmatprep.subr.bf16.mxu0 0
    %2062 = vmatpush1.bf16.msra.mxu0 0
    %2063 = vmatprep.subr.bf16.mxu0 0
    %2064 = vmatpush1.bf16.msra.mxu0 0
    %2065 = vmatprep.subr.bf16.mxu0 0
    %2066 = vmatpush1.bf16.msra.mxu0 0
    %2067 = vmatprep.subr.bf16.mxu0 0
    %2068 = vmatpush1.bf16.msra.mxu0 0
    %2069 = vmatprep.subr.bf16.mxu0 0
    %2070 = vmatpush1.bf16.msra.mxu0 0
    %2071 = vmatprep.subr.bf16.mxu0 0
    %2072 = vmatpush1.bf16.msra.mxu0 0
    %2073 = vmatprep.mubr.bf16.mxu0 0
    %2074 = vmatmul.mubr.bf16.gmra.mrb[0].mxu0 %v1869
    %v2075 = vpop.f32.mrb[0].mxu0
    %v2076 = vadd.f32 0.0, %v2075
    %v2077 = vpop.f32.mrb[0].mxu0
    %v2078 = vpop.f32.mrb[0].mxu0
    %v2079 = vadd.f32 0.0, %v2078
    %v2080 = vpop.f32.mrb[0].mxu0
    %2081 = vdwg.mxu0
    %2082 = vrot.lane.b32.xlu0 %v2033, 112
    %v2083 = vpop.permute.xlu0 %2082
    %2084 = vrot.lane.b32.xlu0 %v2037, 112
    %v2085 = vpop.permute.xlu0 %2084
    %2086 = vrot.lane.b32.xlu0 %v2033, 16
    %v2087 = vpop.permute.xlu0 %2086
    %2088 = vrot.lane.b32.xlu0 %v2037, 16
    %v2089 = vpop.permute.xlu0 %2088
    %v2090 = vmul.f32 %v2033, %v97
    %v2091 = vmul.f32 %v2037, %v98
    %v2092 = vmul.f32 %v2083, %v100
    %v2093 = vmul.f32 %v2085, %v101
    %v2094 = vadd.f32 %v2090, %v2092
    %v2095 = vadd.f32 %v2091, %v2093
    %v2096 = vmul.f32 %v2087, %v103
    %v2097 = vmul.f32 %v2089, %v104
    %v2098 = vadd.f32 %v2094, %v2096
    %v2099 = vadd.f32 %v2095, %v2097
    %v2100 = vmul.f32 %v2098, 0.17677669
    %v2101 = vmul.f32 %v2099, 0.17677669
    %v2102 = vpack.c.bf16 %v2101, %v2100
    %2103 = vrot.lane.b32.xlu0 %v2035, 112
    %v2104 = vpop.permute.xlu0 %2103
    %2105 = vrot.lane.b32.xlu0 %v2039, 112
    %v2106 = vpop.permute.xlu0 %2105
    %2107 = vrot.lane.b32.xlu0 %v2035, 16
    %v2108 = vpop.permute.xlu0 %2107
    %2109 = vrot.lane.b32.xlu0 %v2039, 16
    %v2110 = vpop.permute.xlu0 %2109
    %v2111 = vmul.f32 %v2035, %v97
    %v2112 = vmul.f32 %v2039, %v98
    %v2113 = vmul.f32 %v2104, %v100
    %v2114 = vmul.f32 %v2106, %v101
    %v2115 = vadd.f32 %v2111, %v2113
    %v2116 = vadd.f32 %v2112, %v2114
    %v2117 = vmul.f32 %v2108, %v103
    %v2118 = vmul.f32 %v2110, %v104
    %v2119 = vadd.f32 %v2115, %v2117
    %v2120 = vadd.f32 %v2116, %v2118
    %v2121 = vpack.c.bf16 %v2120, %v2119
    %v2122 = vpack.c.bf16 %v2079, %v2076
    %v2124 = vsel %vm417, %v2102, 0
    %v2127 = vsel %vm417, %v2121, 0
    %2129 = vmatprep.subr.bf16.mxu0 0
    %2130 = vmatpush1.bf16.xpose.msra.mxu0 %v2127
    %2131 = vmatprep.subr.bf16.mxu0 0
    %2132 = vmatpush1.bf16.xpose.msra.mxu0 0
    %2133 = vmatprep.subr.bf16.mxu0 0
    %2134 = vmatpush1.bf16.xpose.msra.mxu0 0
    %2135 = vmatprep.subr.bf16.mxu0 0
    %2136 = vmatpush1.bf16.xpose.msra.mxu0 0
    %2137 = vmatprep.subr.bf16.mxu0 0
    %2138 = vmatpush1.bf16.xpose.msra.mxu0 0
    %2139 = vmatprep.subr.bf16.mxu0 0
    %2140 = vmatpush1.bf16.xpose.msra.mxu0 0
    %2141 = vmatprep.subr.bf16.mxu0 0
    %2142 = vmatpush1.bf16.xpose.msra.mxu0 0
    %2143 = vmatprep.subr.bf16.mxu0 0
    %2144 = vmatpush1.bf16.xpose.msra.mxu0 0
    %2145 = vmatprep.subr.bf16.mxu0 0
    %2146 = vmatpush1.bf16.xpose.msra.mxu0 0
    %2147 = vmatprep.subr.bf16.mxu0 0
    %2148 = vmatpush1.bf16.xpose.msra.mxu0 0
    %2149 = vmatprep.subr.bf16.mxu0 0
    %2150 = vmatpush1.bf16.xpose.msra.mxu0 0
    %2151 = vmatprep.subr.bf16.mxu0 0
    %2152 = vmatpush1.bf16.xpose.msra.mxu0 0
    %2153 = vmatprep.subr.bf16.mxu0 0
    %2154 = vmatpush1.bf16.xpose.msra.mxu0 0
    %2155 = vmatprep.subr.bf16.mxu0 0
    %2156 = vmatpush1.bf16.xpose.msra.mxu0 0
    %2157 = vmatprep.subr.bf16.mxu0 0
    %2158 = vmatpush1.bf16.xpose.msra.mxu0 0
    %2159 = vmatprep.subr.bf16.mxu0 0
    %2160 = vmatpush1.bf16.xpose.msra.mxu0 0
    %2161 = vmatprep.mubr.bf16.mxu0 0
    %2162 = vmatmul.mubr.bf16.gmra.mrb[0].mxu0 %v2124
    %v2163 = vpop.f32.mrb[0].mxu0
    %v2164 = vadd.f32 %v105, %v2163
    %v2165 = vpop.f32.mrb[0].mxu0
    %v2166 = vpop.f32.mrb[0].mxu0
    %v2167 = vadd.f32 %v106, %v2166
    %v2168 = vpop.f32.mrb[0].mxu0
    %2169 = vdwg.mxu0
    %v2170 = vsel %vm465, %v2164, -inf
    %2171 = vmax.xlane.f32.xlu0 %v2170
    %v2172 = vpop.xlane.xlu0 %2171
    %v2173 = vsel %vm465, %v2167, -inf
    %2174 = vmax.xlane.f32.xlu0 %v2173
    %v2175 = vpop.xlane.xlu0 %2174
    %v2176 = vsub.f32 %v2164, %v2172
    %v2177 = vsub.f32 %v2167, %v2175
    %v2178 = vmul.f32 %v2176, 1.442695
    %v2179 = vpow.pop %v2178
    %v2180 = vmul.f32 %v2177, 1.442695
    %v2181 = vpow.pop %v2180
    %v2182 = vsel %vm465, %v2179, 0.0
    %2183 = vadd.xlane.f32.xlu0 %v2182
    %v2184 = vpop.xlane.xlu0 %2183
    %v2185 = vsel %vm465, %v2181, 0.0
    %2186 = vadd.xlane.f32.xlu0 %v2185
    %v2187 = vpop.xlane.xlu0 %2186
    %v2188 = vrcp.pop %v2184
    %v2189 = vrcp.pop %v2187
    %v2190 = vmul.f32 %v2179, %v2188
    %v2191 = vmul.f32 %v2181, %v2189
    %v2192 = vpack.c.bf16 %v2191, %v2190
    %v2194 = vsel %vm465, %v2192, 0
    %2196 = vmatprep.subr.bf16.mxu0 0
    %2197 = vmatpush1.bf16.msra.mxu0 %v2122
    %2198 = vmatprep.subr.bf16.mxu0 0
    %2199 = vmatpush1.bf16.msra.mxu0 0
    %2200 = vmatprep.subr.bf16.mxu0 0
    %2201 = vmatpush1.bf16.msra.mxu0 0
    %2202 = vmatprep.subr.bf16.mxu0 0
    %2203 = vmatpush1.bf16.msra.mxu0 0
    %2204 = vmatprep.subr.bf16.mxu0 0
    %2205 = vmatpush1.bf16.msra.mxu0 0
    %2206 = vmatprep.subr.bf16.mxu0 0
    %2207 = vmatpush1.bf16.msra.mxu0 0
    %2208 = vmatprep.subr.bf16.mxu0 0
    %2209 = vmatpush1.bf16.msra.mxu0 0
    %2210 = vmatprep.subr.bf16.mxu0 0
    %2211 = vmatpush1.bf16.msra.mxu0 0
    %2212 = vmatprep.subr.bf16.mxu0 0
    %2213 = vmatpush1.bf16.msra.mxu0 0
    %2214 = vmatprep.subr.bf16.mxu0 0
    %2215 = vmatpush1.bf16.msra.mxu0 0
    %2216 = vmatprep.subr.bf16.mxu0 0
    %2217 = vmatpush1.bf16.msra.mxu0 0
    %2218 = vmatprep.subr.bf16.mxu0 0
    %2219 = vmatpush1.bf16.msra.mxu0 0
    %2220 = vmatprep.subr.bf16.mxu0 0
    %2221 = vmatpush1.bf16.msra.mxu0 0
    %2222 = vmatprep.subr.bf16.mxu0 0
    %2223 = vmatpush1.bf16.msra.mxu0 0
    %2224 = vmatprep.subr.bf16.mxu0 0
    %2225 = vmatpush1.bf16.msra.mxu0 0
    %2226 = vmatprep.subr.bf16.mxu0 0
    %2227 = vmatpush1.bf16.msra.mxu0 0
    %2228 = vmatprep.mubr.bf16.mxu0 0
    %2229 = vmatmul.mubr.bf16.gmra.mrb[0].mxu0 %v2194
    %v2230 = vpop.f32.mrb[0].mxu0
    %v2231 = vadd.f32 0.0, %v2230
    %v2232 = vpop.f32.mrb[0].mxu0
    %v2233 = vpop.f32.mrb[0].mxu0
    %v2234 = vadd.f32 0.0, %v2233
    %v2235 = vpop.f32.mrb[0].mxu0
    %2236 = vdwg.mxu0
    %2237 = vst.msk [vmem:[#allocation2] sm:$0xff] %vm417, %v2231
    %2238 = vst.msk [vmem:[#allocation2 + $0x8] sm:$0xff] %vm417, %v2234
    %2240 = vrot.lane.b32.xlu0 %v2102, 96
    %v2241 = vpop.permute.xlu0 %2240
    %2243 = vrot.lane.b32.xlu0 %v2121, 96
    %v2244 = vpop.permute.xlu0 %2243
    %v2246 = vsel %vm417, %v2241, 0
    %v2249 = vsel %vm417, %v2244, 0
    %2251 = vmatprep.subr.bf16.mxu0 0
    %2252 = vmatpush1.bf16.xpose.msra.mxu0 %v2249
    %2253 = vmatprep.subr.bf16.mxu0 0
    %2254 = vmatpush1.bf16.xpose.msra.mxu0 0
    %2255 = vmatprep.subr.bf16.mxu0 0
    %2256 = vmatpush1.bf16.xpose.msra.mxu0 0
    %2257 = vmatprep.subr.bf16.mxu0 0
    %2258 = vmatpush1.bf16.xpose.msra.mxu0 0
    %2259 = vmatprep.subr.bf16.mxu0 0
    %2260 = vmatpush1.bf16.xpose.msra.mxu0 0
    %2261 = vmatprep.subr.bf16.mxu0 0
    %2262 = vmatpush1.bf16.xpose.msra.mxu0 0
    %2263 = vmatprep.subr.bf16.mxu0 0
    %2264 = vmatpush1.bf16.xpose.msra.mxu0 0
    %2265 = vmatprep.subr.bf16.mxu0 0
    %2266 = vmatpush1.bf16.xpose.msra.mxu0 0
    %2267 = vmatprep.subr.bf16.mxu0 0
    %2268 = vmatpush1.bf16.xpose.msra.mxu0 0
    %2269 = vmatprep.subr.bf16.mxu0 0
    %2270 = vmatpush1.bf16.xpose.msra.mxu0 0
    %2271 = vmatprep.subr.bf16.mxu0 0
    %2272 = vmatpush1.bf16.xpose.msra.mxu0 0
    %2273 = vmatprep.subr.bf16.mxu0 0
    %2274 = vmatpush1.bf16.xpose.msra.mxu0 0
    %2275 = vmatprep.subr.bf16.mxu0 0
    %2276 = vmatpush1.bf16.xpose.msra.mxu0 0
    %2277 = vmatprep.subr.bf16.mxu0 0
    %2278 = vmatpush1.bf16.xpose.msra.mxu0 0
    %2279 = vmatprep.subr.bf16.mxu0 0
    %2280 = vmatpush1.bf16.xpose.msra.mxu0 0
    %2281 = vmatprep.subr.bf16.mxu0 0
    %2282 = vmatpush1.bf16.xpose.msra.mxu0 0
    %2283 = vmatprep.mubr.bf16.mxu0 0
    %2284 = vmatmul.mubr.bf16.gmra.mrb[0].mxu0 %v2246
    %v2285 = vpop.f32.mrb[0].mxu0
    %v2286 = vadd.f32 %v105, %v2285
    %v2287 = vpop.f32.mrb[0].mxu0
    %v2288 = vpop.f32.mrb[0].mxu0
    %v2289 = vadd.f32 %v106, %v2288
    %v2290 = vpop.f32.mrb[0].mxu0
    %2291 = vdwg.mxu0
    %v2292 = vsel %vm465, %v2286, -inf
    %2293 = vmax.xlane.f32.xlu0 %v2292
    %v2294 = vpop.xlane.xlu0 %2293
    %v2295 = vsel %vm465, %v2289, -inf
    %2296 = vmax.xlane.f32.xlu0 %v2295
    %v2297 = vpop.xlane.xlu0 %2296
    %v2298 = vsub.f32 %v2286, %v2294
    %v2299 = vsub.f32 %v2289, %v2297
    %v2300 = vmul.f32 %v2298, 1.442695
    %v2301 = vpow.pop %v2300
    %v2302 = vmul.f32 %v2299, 1.442695
    %v2303 = vpow.pop %v2302
    %v2304 = vsel %vm465, %v2301, 0.0
    %2305 = vadd.xlane.f32.xlu0 %v2304
    %v2306 = vpop.xlane.xlu0 %2305
    %v2307 = vsel %vm465, %v2303, 0.0
    %2308 = vadd.xlane.f32.xlu0 %v2307
    %v2309 = vpop.xlane.xlu0 %2308
    %v2310 = vrcp.pop %v2306
    %v2311 = vrcp.pop %v2309
    %v2312 = vmul.f32 %v2301, %v2310
    %v2313 = vmul.f32 %v2303, %v2311
    %v2314 = vpack.c.bf16 %v2313, %v2312
    %2316 = vrot.lane.b32.xlu0 %v2122, 96
    %v2317 = vpop.permute.xlu0 %2316
    %v2320 = vsel %vm465, %v2314, 0
    %2322 = vmatprep.subr.bf16.mxu0 0
    %2323 = vmatpush1.bf16.msra.mxu0 %v2317
    %2324 = vmatprep.subr.bf16.mxu0 0
    %2325 = vmatpush1.bf16.msra.mxu0 0
    %2326 = vmatprep.subr.bf16.mxu0 0
    %2327 = vmatpush1.bf16.msra.mxu0 0
    %2328 = vmatprep.subr.bf16.mxu0 0
    %2329 = vmatpush1.bf16.msra.mxu0 0
    %2330 = vmatprep.subr.bf16.mxu0 0
    %2331 = vmatpush1.bf16.msra.mxu0 0
    %2332 = vmatprep.subr.bf16.mxu0 0
    %2333 = vmatpush1.bf16.msra.mxu0 0
    %2334 = vmatprep.subr.bf16.mxu0 0
    %2335 = vmatpush1.bf16.msra.mxu0 0
    %2336 = vmatprep.subr.bf16.mxu0 0
    %2337 = vmatpush1.bf16.msra.mxu0 0
    %2338 = vmatprep.subr.bf16.mxu0 0
    %2339 = vmatpush1.bf16.msra.mxu0 0
    %2340 = vmatprep.subr.bf16.mxu0 0
    %2341 = vmatpush1.bf16.msra.mxu0 0
    %2342 = vmatprep.subr.bf16.mxu0 0
    %2343 = vmatpush1.bf16.msra.mxu0 0
    %2344 = vmatprep.subr.bf16.mxu0 0
    %2345 = vmatpush1.bf16.msra.mxu0 0
    %2346 = vmatprep.subr.bf16.mxu0 0
    %2347 = vmatpush1.bf16.msra.mxu0 0
    %2348 = vmatprep.subr.bf16.mxu0 0
    %2349 = vmatpush1.bf16.msra.mxu0 0
    %2350 = vmatprep.subr.bf16.mxu0 0
    %2351 = vmatpush1.bf16.msra.mxu0 0
    %2352 = vmatprep.subr.bf16.mxu0 0
    %2353 = vmatpush1.bf16.msra.mxu0 0
    %2354 = vmatprep.mubr.bf16.mxu0 0
    %2355 = vmatmul.mubr.bf16.gmra.mrb[0].mxu0 %v2320
    %v2356 = vpop.f32.mrb[0].mxu0
    %v2357 = vadd.f32 0.0, %v2356
    %v2358 = vpop.f32.mrb[0].mxu0
    %v2359 = vpop.f32.mrb[0].mxu0
    %v2360 = vadd.f32 0.0, %v2359
    %v2361 = vpop.f32.mrb[0].mxu0
    %2362 = vdwg.mxu0
    %2365 = vrot.lane.b32.xlu0 %v2357, 32
    %v2366 = vpop.permute.xlu0 %2365
    %2367 = vrot.lane.b32.xlu0 %v2360, 32
    %v2368 = vpop.permute.xlu0 %2367
    %2371 = vst.msk [vmem:[#allocation2] sm:$0xff] %vm667, %v2366
    %2372 = vst.msk [vmem:[#allocation2 + $0x8] sm:$0xff] %vm667, %v2368
    %2373 = vrot.lane.b32.xlu0 %v2102, 64
    %v2374 = vpop.permute.xlu0 %2373
    %2375 = vrot.lane.b32.xlu0 %v2121, 64
    %v2376 = vpop.permute.xlu0 %2375
    %v2378 = vsel %vm417, %v2374, 0
    %v2381 = vsel %vm417, %v2376, 0
    %2383 = vmatprep.subr.bf16.mxu0 0
    %2384 = vmatpush1.bf16.xpose.msra.mxu0 %v2381
    %2385 = vmatprep.subr.bf16.mxu0 0
    %2386 = vmatpush1.bf16.xpose.msra.mxu0 0
    %2387 = vmatprep.subr.bf16.mxu0 0
    %2388 = vmatpush1.bf16.xpose.msra.mxu0 0
    %2389 = vmatprep.subr.bf16.mxu0 0
    %2390 = vmatpush1.bf16.xpose.msra.mxu0 0
    %2391 = vmatprep.subr.bf16.mxu0 0
    %2392 = vmatpush1.bf16.xpose.msra.mxu0 0
    %2393 = vmatprep.subr.bf16.mxu0 0
    %2394 = vmatpush1.bf16.xpose.msra.mxu0 0
    %2395 = vmatprep.subr.bf16.mxu0 0
    %2396 = vmatpush1.bf16.xpose.msra.mxu0 0
    %2397 = vmatprep.subr.bf16.mxu0 0
    %2398 = vmatpush1.bf16.xpose.msra.mxu0 0
    %2399 = vmatprep.subr.bf16.mxu0 0
    %2400 = vmatpush1.bf16.xpose.msra.mxu0 0
    %2401 = vmatprep.subr.bf16.mxu0 0
    %2402 = vmatpush1.bf16.xpose.msra.mxu0 0
    %2403 = vmatprep.subr.bf16.mxu0 0
    %2404 = vmatpush1.bf16.xpose.msra.mxu0 0
    %2405 = vmatprep.subr.bf16.mxu0 0
    %2406 = vmatpush1.bf16.xpose.msra.mxu0 0
    %2407 = vmatprep.subr.bf16.mxu0 0
    %2408 = vmatpush1.bf16.xpose.msra.mxu0 0
    %2409 = vmatprep.subr.bf16.mxu0 0
    %2410 = vmatpush1.bf16.xpose.msra.mxu0 0
    %2411 = vmatprep.subr.bf16.mxu0 0
    %2412 = vmatpush1.bf16.xpose.msra.mxu0 0
    %2413 = vmatprep.subr.bf16.mxu0 0
    %2414 = vmatpush1.bf16.xpose.msra.mxu0 0
    %2415 = vmatprep.mubr.bf16.mxu0 0
    %2416 = vmatmul.mubr.bf16.gmra.mrb[0].mxu0 %v2378
    %v2417 = vpop.f32.mrb[0].mxu0
    %v2418 = vadd.f32 %v105, %v2417
    %v2419 = vpop.f32.mrb[0].mxu0
    %v2420 = vpop.f32.mrb[0].mxu0
    %v2421 = vadd.f32 %v106, %v2420
    %v2422 = vpop.f32.mrb[0].mxu0
    %2423 = vdwg.mxu0
    %v2424 = vsel %vm465, %v2418, -inf
    %2425 = vmax.xlane.f32.xlu0 %v2424
    %v2426 = vpop.xlane.xlu0 %2425
    %v2427 = vsel %vm465, %v2421, -inf
    %2428 = vmax.xlane.f32.xlu0 %v2427
    %v2429 = vpop.xlane.xlu0 %2428
    %v2430 = vsub.f32 %v2418, %v2426
    %v2431 = vsub.f32 %v2421, %v2429
    %v2432 = vmul.f32 %v2430, 1.442695
    %v2433 = vpow.pop %v2432
    %v2434 = vmul.f32 %v2431, 1.442695
    %v2435 = vpow.pop %v2434
    %v2436 = vsel %vm465, %v2433, 0.0
    %2437 = vadd.xlane.f32.xlu0 %v2436
    %v2438 = vpop.xlane.xlu0 %2437
    %v2439 = vsel %vm465, %v2435, 0.0
    %2440 = vadd.xlane.f32.xlu0 %v2439
    %v2441 = vpop.xlane.xlu0 %2440
    %v2442 = vrcp.pop %v2438
    %v2443 = vrcp.pop %v2441
    %v2444 = vmul.f32 %v2433, %v2442
    %v2445 = vmul.f32 %v2435, %v2443
    %v2446 = vpack.c.bf16 %v2445, %v2444
    %2447 = vrot.lane.b32.xlu0 %v2122, 64
    %v2448 = vpop.permute.xlu0 %2447
    %v2451 = vsel %vm465, %v2446, 0
    %2453 = vmatprep.subr.bf16.mxu0 0
    %2454 = vmatpush1.bf16.msra.mxu0 %v2448
    %2455 = vmatprep.subr.bf16.mxu0 0
    %2456 = vmatpush1.bf16.msra.mxu0 0
    %2457 = vmatprep.subr.bf16.mxu0 0
    %2458 = vmatpush1.bf16.msra.mxu0 0
    %2459 = vmatprep.subr.bf16.mxu0 0
    %2460 = vmatpush1.bf16.msra.mxu0 0
    %2461 = vmatprep.subr.bf16.mxu0 0
    %2462 = vmatpush1.bf16.msra.mxu0 0
    %2463 = vmatprep.subr.bf16.mxu0 0
    %2464 = vmatpush1.bf16.msra.mxu0 0
    %2465 = vmatprep.subr.bf16.mxu0 0
    %2466 = vmatpush1.bf16.msra.mxu0 0
    %2467 = vmatprep.subr.bf16.mxu0 0
    %2468 = vmatpush1.bf16.msra.mxu0 0
    %2469 = vmatprep.subr.bf16.mxu0 0
    %2470 = vmatpush1.bf16.msra.mxu0 0
    %2471 = vmatprep.subr.bf16.mxu0 0
    %2472 = vmatpush1.bf16.msra.mxu0 0
    %2473 = vmatprep.subr.bf16.mxu0 0
    %2474 = vmatpush1.bf16.msra.mxu0 0
    %2475 = vmatprep.subr.bf16.mxu0 0
    %2476 = vmatpush1.bf16.msra.mxu0 0
    %2477 = vmatprep.subr.bf16.mxu0 0
    %2478 = vmatpush1.bf16.msra.mxu0 0
    %2479 = vmatprep.subr.bf16.mxu0 0
    %2480 = vmatpush1.bf16.msra.mxu0 0
    %2481 = vmatprep.subr.bf16.mxu0 0
    %2482 = vmatpush1.bf16.msra.mxu0 0
    %2483 = vmatprep.subr.bf16.mxu0 0
    %2484 = vmatpush1.bf16.msra.mxu0 0
    %2485 = vmatprep.mubr.bf16.mxu0 0
    %2486 = vmatmul.mubr.bf16.gmra.mrb[0].mxu0 %v2451
    %v2487 = vpop.f32.mrb[0].mxu0
    %v2488 = vadd.f32 0.0, %v2487
    %v2489 = vpop.f32.mrb[0].mxu0
    %v2490 = vpop.f32.mrb[0].mxu0
    %v2491 = vadd.f32 0.0, %v2490
    %v2492 = vpop.f32.mrb[0].mxu0
    %2493 = vdwg.mxu0
    %2496 = vrot.lane.b32.xlu0 %v2488, 64
    %v2497 = vpop.permute.xlu0 %2496
    %2498 = vrot.lane.b32.xlu0 %v2491, 64
    %v2499 = vpop.permute.xlu0 %2498
    %2502 = vst.msk [vmem:[#allocation2] sm:$0xff] %vm799, %v2497
    %2503 = vst.msk [vmem:[#allocation2 + $0x8] sm:$0xff] %vm799, %v2499
    %2504 = vrot.lane.b32.xlu0 %v2102, 32
    %v2505 = vpop.permute.xlu0 %2504
    %2506 = vrot.lane.b32.xlu0 %v2121, 32
    %v2507 = vpop.permute.xlu0 %2506
    %v2509 = vsel %vm417, %v2505, 0
    %v2512 = vsel %vm417, %v2507, 0
    %2514 = vmatprep.subr.bf16.mxu0 0
    %2515 = vmatpush1.bf16.xpose.msra.mxu0 %v2512
    %2516 = vmatprep.subr.bf16.mxu0 0
    %2517 = vmatpush1.bf16.xpose.msra.mxu0 0
    %2518 = vmatprep.subr.bf16.mxu0 0
    %2519 = vmatpush1.bf16.xpose.msra.mxu0 0
    %2520 = vmatprep.subr.bf16.mxu0 0
    %2521 = vmatpush1.bf16.xpose.msra.mxu0 0
    %2522 = vmatprep.subr.bf16.mxu0 0
    %2523 = vmatpush1.bf16.xpose.msra.mxu0 0
    %2524 = vmatprep.subr.bf16.mxu0 0
    %2525 = vmatpush1.bf16.xpose.msra.mxu0 0
    %2526 = vmatprep.subr.bf16.mxu0 0
    %2527 = vmatpush1.bf16.xpose.msra.mxu0 0
    %2528 = vmatprep.subr.bf16.mxu0 0
    %2529 = vmatpush1.bf16.xpose.msra.mxu0 0
    %2530 = vmatprep.subr.bf16.mxu0 0
    %2531 = vmatpush1.bf16.xpose.msra.mxu0 0
    %2532 = vmatprep.subr.bf16.mxu0 0
    %2533 = vmatpush1.bf16.xpose.msra.mxu0 0
    %2534 = vmatprep.subr.bf16.mxu0 0
    %2535 = vmatpush1.bf16.xpose.msra.mxu0 0
    %2536 = vmatprep.subr.bf16.mxu0 0
    %2537 = vmatpush1.bf16.xpose.msra.mxu0 0
    %2538 = vmatprep.subr.bf16.mxu0 0
    %2539 = vmatpush1.bf16.xpose.msra.mxu0 0
    %2540 = vmatprep.subr.bf16.mxu0 0
    %2541 = vmatpush1.bf16.xpose.msra.mxu0 0
    %2542 = vmatprep.subr.bf16.mxu0 0
    %2543 = vmatpush1.bf16.xpose.msra.mxu0 0
    %2544 = vmatprep.subr.bf16.mxu0 0
    %2545 = vmatpush1.bf16.xpose.msra.mxu0 0
    %2546 = vmatprep.mubr.bf16.mxu0 0
    %2547 = vmatmul.mubr.bf16.gmra.mrb[0].mxu0 %v2509
    %v2548 = vpop.f32.mrb[0].mxu0
    %v2549 = vadd.f32 %v105, %v2548
    %v2550 = vpop.f32.mrb[0].mxu0
    %v2551 = vpop.f32.mrb[0].mxu0
    %v2552 = vadd.f32 %v106, %v2551
    %v2553 = vpop.f32.mrb[0].mxu0
    %2554 = vdwg.mxu0
    %v2555 = vsel %vm465, %v2549, -inf
    %2556 = vmax.xlane.f32.xlu0 %v2555
    %v2557 = vpop.xlane.xlu0 %2556
    %v2558 = vsel %vm465, %v2552, -inf
    %2559 = vmax.xlane.f32.xlu0 %v2558
    %v2560 = vpop.xlane.xlu0 %2559
    %v2561 = vsub.f32 %v2549, %v2557
    %v2562 = vsub.f32 %v2552, %v2560
    %v2563 = vmul.f32 %v2561, 1.442695
    %v2564 = vpow.pop %v2563
    %v2565 = vmul.f32 %v2562, 1.442695
    %v2566 = vpow.pop %v2565
    %v2567 = vsel %vm465, %v2564, 0.0
    %2568 = vadd.xlane.f32.xlu0 %v2567
    %v2569 = vpop.xlane.xlu0 %2568
    %v2570 = vsel %vm465, %v2566, 0.0
    %2571 = vadd.xlane.f32.xlu0 %v2570
    %v2572 = vpop.xlane.xlu0 %2571
    %v2573 = vrcp.pop %v2569
    %v2574 = vrcp.pop %v2572
    %v2575 = vmul.f32 %v2564, %v2573
    %v2576 = vmul.f32 %v2566, %v2574
    %v2577 = vpack.c.bf16 %v2576, %v2575
    %2578 = vrot.lane.b32.xlu0 %v2122, 32
    %v2579 = vpop.permute.xlu0 %2578
    %v2582 = vsel %vm465, %v2577, 0
    %2584 = vmatprep.subr.bf16.mxu0 0
    %2585 = vmatpush1.bf16.msra.mxu0 %v2579
    %2586 = vmatprep.subr.bf16.mxu0 0
    %2587 = vmatpush1.bf16.msra.mxu0 0
    %2588 = vmatprep.subr.bf16.mxu0 0
    %2589 = vmatpush1.bf16.msra.mxu0 0
    %2590 = vmatprep.subr.bf16.mxu0 0
    %2591 = vmatpush1.bf16.msra.mxu0 0
    %2592 = vmatprep.subr.bf16.mxu0 0
    %2593 = vmatpush1.bf16.msra.mxu0 0
    %2594 = vmatprep.subr.bf16.mxu0 0
    %2595 = vmatpush1.bf16.msra.mxu0 0
    %2596 = vmatprep.subr.bf16.mxu0 0
    %2597 = vmatpush1.bf16.msra.mxu0 0
    %2598 = vmatprep.subr.bf16.mxu0 0
    %2599 = vmatpush1.bf16.msra.mxu0 0
    %2600 = vmatprep.subr.bf16.mxu0 0
    %2601 = vmatpush1.bf16.msra.mxu0 0
    %2602 = vmatprep.subr.bf16.mxu0 0
    %2603 = vmatpush1.bf16.msra.mxu0 0
    %2604 = vmatprep.subr.bf16.mxu0 0
    %2605 = vmatpush1.bf16.msra.mxu0 0
    %2606 = vmatprep.subr.bf16.mxu0 0
    %2607 = vmatpush1.bf16.msra.mxu0 0
    %2608 = vmatprep.subr.bf16.mxu0 0
    %2609 = vmatpush1.bf16.msra.mxu0 0
    %2610 = vmatprep.subr.bf16.mxu0 0
    %2611 = vmatpush1.bf16.msra.mxu0 0
    %2612 = vmatprep.subr.bf16.mxu0 0
    %2613 = vmatpush1.bf16.msra.mxu0 0
    %2614 = vmatprep.subr.bf16.mxu0 0
    %2615 = vmatpush1.bf16.msra.mxu0 0
    %2616 = vmatprep.mubr.bf16.mxu0 0
    %2617 = vmatmul.mubr.bf16.gmra.mrb[0].mxu0 %v2582
    %v2618 = vpop.f32.mrb[0].mxu0
    %v2619 = vadd.f32 0.0, %v2618
    %v2620 = vpop.f32.mrb[0].mxu0
    %v2621 = vpop.f32.mrb[0].mxu0
    %v2622 = vadd.f32 0.0, %v2621
    %v2623 = vpop.f32.mrb[0].mxu0
    %2624 = vdwg.mxu0
    %2627 = vrot.lane.b32.xlu0 %v2619, 96
    %v2628 = vpop.permute.xlu0 %2627
    %2629 = vrot.lane.b32.xlu0 %v2622, 96
    %v2630 = vpop.permute.xlu0 %2629
    %2633 = vst.msk [vmem:[#allocation2] sm:$0xff] %vm931, %v2628
    %2634 = vst.msk [vmem:[#allocation2 + $0x8] sm:$0xff] %vm931, %v2630
    %v2635 = vld [vmem:[#allocation2] sm:$0xff]
    %v2636 = vld [vmem:[#allocation2 + $0x8] sm:$0xff]
    %s2637 = scalar_lea.vmem %s6, 64
    %v2638 = vld [vmem:[%s2637] sm:$0xf]
    %v2639 = vld [vmem:[%s2637 + $0x4] sm:$0xf]
    %v2640 = vld [vmem:[%s2637 + $0x8] sm:$0xf]
    %v2641 = vld [vmem:[%s2637 + $0xc] sm:$0xf]
    %v2642 = vld [vmem:[%s2637 + $0x10] sm:$0xf]
    %v2643 = vld [vmem:[%s2637 + $0x14] sm:$0xf]
    %v2644 = vld [vmem:[%s2637 + $0x18] sm:$0xf]
    %v2645 = vld [vmem:[%s2637 + $0x1c] sm:$0xf]
    %v2646 = vld [vmem:[%s2637 + $0x20] sm:$0xf]
    %v2647 = vld [vmem:[%s2637 + $0x24] sm:$0xf]
    %v2648 = vld [vmem:[%s2637 + $0x28] sm:$0xf]
    %v2649 = vld [vmem:[%s2637 + $0x2c] sm:$0xf]
    %v2650 = vld [vmem:[%s2637 + $0x30] sm:$0xf]
    %v2651 = vld [vmem:[%s2637 + $0x34] sm:$0xf]
    %v2652 = vld [vmem:[%s2637 + $0x38] sm:$0xf]
    %v2653 = vld [vmem:[%s2637 + $0x3c] sm:$0xf]
    %v2654 = vpack.c.bf16 %v2636, %v2635
    %v2671 = vunpack.c.l.b16 %v2638
    %v2672 = vunpack.c.l.b16 %v2639
    %v2673 = vunpack.c.l.b16 %v2640
    %v2674 = vunpack.c.l.b16 %v2641
    %v2675 = vunpack.c.l.b16 %v2642
    %v2676 = vunpack.c.l.b16 %v2643
    %v2677 = vunpack.c.l.b16 %v2644
    %v2678 = vunpack.c.l.b16 %v2645
    %v2679 = vunpack.c.l.b16 %v2646
    %v2680 = vunpack.c.l.b16 %v2647
    %v2681 = vunpack.c.l.b16 %v2648
    %v2682 = vunpack.c.l.b16 %v2649
    %v2683 = vunpack.c.l.b16 %v2650
    %v2684 = vunpack.c.l.b16 %v2651
    %v2685 = vunpack.c.l.b16 %v2652
    %v2686 = vunpack.c.l.b16 %v2653
    %v2687 = vpack.c.b16 %v2672, %v2671
    %v2688 = vpack.c.b16 %v2674, %v2673
    %v2689 = vpack.c.b16 %v2676, %v2675
    %v2690 = vpack.c.b16 %v2678, %v2677
    %v2691 = vpack.c.b16 %v2680, %v2679
    %v2692 = vpack.c.b16 %v2682, %v2681
    %v2693 = vpack.c.b16 %v2684, %v2683
    %v2694 = vpack.c.b16 %v2686, %v2685
    %2703 = vmatprep.subr.bf16.mxu0 0
    %2704 = vmatpush1.bf16.msra.mxu0 %v2687
    %2705 = vmatprep.subr.bf16.mxu0 0
    %2706 = vmatpush1.bf16.msra.mxu0 %v2688
    %2707 = vmatprep.subr.bf16.mxu0 0
    %2708 = vmatpush1.bf16.msra.mxu0 %v2689
    %2709 = vmatprep.subr.bf16.mxu0 0
    %2710 = vmatpush1.bf16.msra.mxu0 %v2690
    %2711 = vmatprep.subr.bf16.mxu0 0
    %2712 = vmatpush1.bf16.msra.mxu0 %v2691
    %2713 = vmatprep.subr.bf16.mxu0 0
    %2714 = vmatpush1.bf16.msra.mxu0 %v2692
    %2715 = vmatprep.subr.bf16.mxu0 0
    %2716 = vmatpush1.bf16.msra.mxu0 %v2693
    %2717 = vmatprep.subr.bf16.mxu0 0
    %2718 = vmatpush1.bf16.msra.mxu0 %v2694
    %2719 = vmatprep.subr.bf16.mxu0 0
    %2720 = vmatpush1.bf16.msra.mxu0 0
    %2721 = vmatprep.subr.bf16.mxu0 0
    %2722 = vmatpush1.bf16.msra.mxu0 0
    %2723 = vmatprep.subr.bf16.mxu0 0
    %2724 = vmatpush1.bf16.msra.mxu0 0
    %2725 = vmatprep.subr.bf16.mxu0 0
    %2726 = vmatpush1.bf16.msra.mxu0 0
    %2727 = vmatprep.subr.bf16.mxu0 0
    %2728 = vmatpush1.bf16.msra.mxu0 0
    %2729 = vmatprep.subr.bf16.mxu0 0
    %2730 = vmatpush1.bf16.msra.mxu0 0
    %2731 = vmatprep.subr.bf16.mxu0 0
    %2732 = vmatpush1.bf16.msra.mxu0 0
    %2733 = vmatprep.subr.bf16.mxu0 0
    %2734 = vmatpush1.bf16.msra.mxu0 0
    %2735 = vmatprep.mubr.bf16.mxu0 0
    %2736 = vmatmul.mubr.bf16.gmra.mrb[0].mxu0 %v2654
    %v2737 = vpop.f32.mrb[0].mxu0
    %v2738 = vadd.f32 0.0, %v2737
    %v2739 = vpop.f32.mrb[0].mxu0
    %v2740 = vpop.f32.mrb[0].mxu0
    %v2741 = vadd.f32 0.0, %v2740
    %v2742 = vpop.f32.mrb[0].mxu0
    %2743 = vdwg.mxu0
    %v2744 = vadd.f32 %v1810, %v2738
    %v2745 = vadd.f32 %v1811, %v2741
    %s2746 = scalar_lea.vmem %s4, 1
    %v2747 = vld [vmem:[%s2746] sm:$0x1]
    %v2748 = vmul.f32 %v2744, %v2744
    %v2749 = vmul.f32 %v2745, %v2745
    %2750 = vadd.xlane.f32.xlu0 %v2748
    %v2751 = vpop.xlane.xlu0 %2750
    %2752 = vadd.xlane.f32.xlu0 %v2749
    %v2753 = vpop.xlane.xlu0 %2752
    %v2754 = vmul.f32 %v2751, %v114
    %v2755 = vmul.f32 %v2753, %v114
    %v2756 = vadd.f32 %v2754, 1e-05
    %v2757 = vadd.f32 %v2755, 1e-05
    %v2758 = vrsqrt.pop %v2756
    %v2759 = vrsqrt.pop %v2757
    %v2760 = vmul.f32 %v2744, %v2758
    %v2761 = vmul.f32 %v2745, %v2759
    %v2763 = vlaneseq
    %v2764 = vshrl.u32 %v2763, 7
    %v2765 = vsub.s32 0, %v2764
    %v2766 = vrot.slane %v2747, %v2765
    %v2768 = vmul.f32 %v2760, %v2766
    %v2769 = vmul.f32 %v2761, %v2766
    %s2770 = scalar_lea.vmem [#allocation6], 384
    %v2771 = vld [vmem:[%s2770] sm:$0xff]
    %v2772 = vld [vmem:[%s2770 + $0x8] sm:$0xff]
    %v2773 = vld [vmem:[%s2770 + $0x10] sm:$0xff]
    %v2774 = vld [vmem:[%s2770 + $0x18] sm:$0xff]
    %v2775 = vld [vmem:[%s2770 + $0x20] sm:$0xff]
    %v2776 = vld [vmem:[%s2770 + $0x28] sm:$0xff]
    %v2777 = vld [vmem:[%s2770 + $0x30] sm:$0xff]
    %v2778 = vld [vmem:[%s2770 + $0x38] sm:$0xff]
    %v2779 = vld [vmem:[%s2770 + $0x40] sm:$0xff]
    %v2780 = vld [vmem:[%s2770 + $0x48] sm:$0xff]
    %v2781 = vld [vmem:[%s2770 + $0x50] sm:$0xff]
    %v2782 = vld [vmem:[%s2770 + $0x58] sm:$0xff]
    %v2783 = vld [vmem:[%s2770 + $0x60] sm:$0xff]
    %v2784 = vld [vmem:[%s2770 + $0x68] sm:$0xff]
    %v2785 = vld [vmem:[%s2770 + $0x70] sm:$0xff]
    %v2786 = vld [vmem:[%s2770 + $0x78] sm:$0xff]
    %v2787 = vld [vmem:[%s2770 + $0x80] sm:$0xff]
    %v2788 = vld [vmem:[%s2770 + $0x88] sm:$0xff]
    %v2789 = vld [vmem:[%s2770 + $0x90] sm:$0xff]
    %v2790 = vld [vmem:[%s2770 + $0x98] sm:$0xff]
    %v2791 = vld [vmem:[%s2770 + $0xa0] sm:$0xff]
    %v2792 = vld [vmem:[%s2770 + $0xa8] sm:$0xff]
    %v2793 = vld [vmem:[%s2770 + $0xb0] sm:$0xff]
    %v2794 = vld [vmem:[%s2770 + $0xb8] sm:$0xff]
    %v2795 = vld [vmem:[%s2770 + $0xc0] sm:$0xff]
    %v2796 = vld [vmem:[%s2770 + $0xc8] sm:$0xff]
    %v2797 = vld [vmem:[%s2770 + $0xd0] sm:$0xff]
    %v2798 = vld [vmem:[%s2770 + $0xd8] sm:$0xff]
    %v2799 = vld [vmem:[%s2770 + $0xe0] sm:$0xff]
    %v2800 = vld [vmem:[%s2770 + $0xe8] sm:$0xff]
    %v2801 = vld [vmem:[%s2770 + $0xf0] sm:$0xff]
    %v2802 = vld [vmem:[%s2770 + $0xf8] sm:$0xff]
    %v2803 = vld [vmem:[%s2770 + $0x100] sm:$0xff]
    %v2804 = vld [vmem:[%s2770 + $0x108] sm:$0xff]
    %v2805 = vld [vmem:[%s2770 + $0x110] sm:$0xff]
    %v2806 = vld [vmem:[%s2770 + $0x118] sm:$0xff]
    %v2807 = vld [vmem:[%s2770 + $0x120] sm:$0xff]
    %v2808 = vld [vmem:[%s2770 + $0x128] sm:$0xff]
    %v2809 = vld [vmem:[%s2770 + $0x130] sm:$0xff]
    %v2810 = vld [vmem:[%s2770 + $0x138] sm:$0xff]
    %v2811 = vld [vmem:[%s2770 + $0x140] sm:$0xff]
    %v2812 = vld [vmem:[%s2770 + $0x148] sm:$0xff]
    %v2813 = vld [vmem:[%s2770 + $0x150] sm:$0xff]
    %v2814 = vld [vmem:[%s2770 + $0x158] sm:$0xff]
    %v2815 = vld [vmem:[%s2770 + $0x160] sm:$0xff]
    %v2816 = vld [vmem:[%s2770 + $0x168] sm:$0xff]
    %v2817 = vld [vmem:[%s2770 + $0x170] sm:$0xff]
    %v2818 = vld [vmem:[%s2770 + $0x178] sm:$0xff]
    %v2819 = vpack.c.bf16 %v2769, %v2768
    %v2868 = vunpack.c.l.b16 %v2771
    %v2869 = vunpack.c.h.b16 %v2771
    %v2870 = vunpack.c.l.b16 %v2772
    %v2871 = vunpack.c.h.b16 %v2772
    %v2872 = vunpack.c.l.b16 %v2773
    %v2873 = vunpack.c.h.b16 %v2773
    %v2874 = vunpack.c.l.b16 %v2774
    %v2875 = vunpack.c.h.b16 %v2774
    %v2876 = vunpack.c.l.b16 %v2775
    %v2877 = vunpack.c.h.b16 %v2775
    %v2878 = vunpack.c.l.b16 %v2776
    %v2879 = vunpack.c.h.b16 %v2776
    %v2880 = vunpack.c.l.b16 %v2777
    %v2881 = vunpack.c.h.b16 %v2777
    %v2882 = vunpack.c.l.b16 %v2778
    %v2883 = vunpack.c.h.b16 %v2778
    %v2884 = vunpack.c.l.b16 %v2779
    %v2885 = vunpack.c.h.b16 %v2779
    %v2886 = vunpack.c.l.b16 %v2780
    %v2887 = vunpack.c.h.b16 %v2780
    %v2888 = vunpack.c.l.b16 %v2781
    %v2889 = vunpack.c.h.b16 %v2781
    %v2890 = vunpack.c.l.b16 %v2782
    %v2891 = vunpack.c.h.b16 %v2782
    %v2892 = vunpack.c.l.b16 %v2783
    %v2893 = vunpack.c.h.b16 %v2783
    %v2894 = vunpack.c.l.b16 %v2784
    %v2895 = vunpack.c.h.b16 %v2784
    %v2896 = vunpack.c.l.b16 %v2785
    %v2897 = vunpack.c.h.b16 %v2785
    %v2898 = vunpack.c.l.b16 %v2786
    %v2899 = vunpack.c.h.b16 %v2786
    %v2900 = vunpack.c.l.b16 %v2787
    %v2901 = vunpack.c.h.b16 %v2787
    %v2902 = vunpack.c.l.b16 %v2788
    %v2903 = vunpack.c.h.b16 %v2788
    %v2904 = vunpack.c.l.b16 %v2789
    %v2905 = vunpack.c.h.b16 %v2789
    %v2906 = vunpack.c.l.b16 %v2790
    %v2907 = vunpack.c.h.b16 %v2790
    %v2908 = vunpack.c.l.b16 %v2791
    %v2909 = vunpack.c.h.b16 %v2791
    %v2910 = vunpack.c.l.b16 %v2792
    %v2911 = vunpack.c.h.b16 %v2792
    %v2912 = vunpack.c.l.b16 %v2793
    %v2913 = vunpack.c.h.b16 %v2793
    %v2914 = vunpack.c.l.b16 %v2794
    %v2915 = vunpack.c.h.b16 %v2794
    %v2916 = vunpack.c.l.b16 %v2795
    %v2917 = vunpack.c.h.b16 %v2795
    %v2918 = vunpack.c.l.b16 %v2796
    %v2919 = vunpack.c.h.b16 %v2796
    %v2920 = vunpack.c.l.b16 %v2797
    %v2921 = vunpack.c.h.b16 %v2797
    %v2922 = vunpack.c.l.b16 %v2798
    %v2923 = vunpack.c.h.b16 %v2798
    %v2924 = vunpack.c.l.b16 %v2799
    %v2925 = vunpack.c.h.b16 %v2799
    %v2926 = vunpack.c.l.b16 %v2800
    %v2927 = vunpack.c.h.b16 %v2800
    %v2928 = vunpack.c.l.b16 %v2801
    %v2929 = vunpack.c.h.b16 %v2801
    %v2930 = vunpack.c.l.b16 %v2802
    %v2931 = vunpack.c.h.b16 %v2802
    %v2932 = vunpack.c.l.b16 %v2803
    %v2933 = vunpack.c.h.b16 %v2803
    %v2934 = vunpack.c.l.b16 %v2804
    %v2935 = vunpack.c.h.b16 %v2804
    %v2936 = vunpack.c.l.b16 %v2805
    %v2937 = vunpack.c.h.b16 %v2805
    %v2938 = vunpack.c.l.b16 %v2806
    %v2939 = vunpack.c.h.b16 %v2806
    %v2940 = vunpack.c.l.b16 %v2807
    %v2941 = vunpack.c.h.b16 %v2807
    %v2942 = vunpack.c.l.b16 %v2808
    %v2943 = vunpack.c.h.b16 %v2808
    %v2944 = vunpack.c.l.b16 %v2809
    %v2945 = vunpack.c.h.b16 %v2809
    %v2946 = vunpack.c.l.b16 %v2810
    %v2947 = vunpack.c.h.b16 %v2810
    %v2948 = vunpack.c.l.b16 %v2811
    %v2949 = vunpack.c.h.b16 %v2811
    %v2950 = vunpack.c.l.b16 %v2812
    %v2951 = vunpack.c.h.b16 %v2812
    %v2952 = vunpack.c.l.b16 %v2813
    %v2953 = vunpack.c.h.b16 %v2813
    %v2954 = vunpack.c.l.b16 %v2814
    %v2955 = vunpack.c.h.b16 %v2814
    %v2956 = vunpack.c.l.b16 %v2815
    %v2957 = vunpack.c.h.b16 %v2815
    %v2958 = vunpack.c.l.b16 %v2816
    %v2959 = vunpack.c.h.b16 %v2816
    %v2960 = vunpack.c.l.b16 %v2817
    %v2961 = vunpack.c.h.b16 %v2817
    %v2962 = vunpack.c.l.b16 %v2818
    %v2963 = vunpack.c.h.b16 %v2818
    %v2964 = vpack.c.b16 %v2874, %v2868
    %v2965 = vpack.c.b16 %v2875, %v2869
    %v2966 = vpack.c.b16 %v2876, %v2870
    %v2967 = vpack.c.b16 %v2877, %v2871
    %v2968 = vpack.c.b16 %v2878, %v2872
    %v2969 = vpack.c.b16 %v2879, %v2873
    %v2970 = vpack.c.b16 %v2886, %v2880
    %v2971 = vpack.c.b16 %v2887, %v2881
    %v2972 = vpack.c.b16 %v2888, %v2882
    %v2973 = vpack.c.b16 %v2889, %v2883
    %v2974 = vpack.c.b16 %v2890, %v2884
    %v2975 = vpack.c.b16 %v2891, %v2885
    %v2976 = vpack.c.b16 %v2898, %v2892
    %v2977 = vpack.c.b16 %v2899, %v2893
    %v2978 = vpack.c.b16 %v2900, %v2894
    %v2979 = vpack.c.b16 %v2901, %v2895
    %v2980 = vpack.c.b16 %v2902, %v2896
    %v2981 = vpack.c.b16 %v2903, %v2897
    %v2982 = vpack.c.b16 %v2910, %v2904
    %v2983 = vpack.c.b16 %v2911, %v2905
    %v2984 = vpack.c.b16 %v2912, %v2906
    %v2985 = vpack.c.b16 %v2913, %v2907
    %v2986 = vpack.c.b16 %v2914, %v2908
    %v2987 = vpack.c.b16 %v2915, %v2909
    %v2988 = vpack.c.b16 %v2922, %v2916
    %v2989 = vpack.c.b16 %v2923, %v2917
    %v2990 = vpack.c.b16 %v2924, %v2918
    %v2991 = vpack.c.b16 %v2925, %v2919
    %v2992 = vpack.c.b16 %v2926, %v2920
    %v2993 = vpack.c.b16 %v2927, %v2921
    %v2994 = vpack.c.b16 %v2934, %v2928
    %v2995 = vpack.c.b16 %v2935, %v2929
    %v2996 = vpack.c.b16 %v2936, %v2930
    %v2997 = vpack.c.b16 %v2937, %v2931
    %v2998 = vpack.c.b16 %v2938, %v2932
    %v2999 = vpack.c.b16 %v2939, %v2933
    %v3000 = vpack.c.b16 %v2946, %v2940
    %v3001 = vpack.c.b16 %v2947, %v2941
    %v3002 = vpack.c.b16 %v2948, %v2942
    %v3003 = vpack.c.b16 %v2949, %v2943
    %v3004 = vpack.c.b16 %v2950, %v2944
    %v3005 = vpack.c.b16 %v2951, %v2945
    %v3006 = vpack.c.b16 %v2958, %v2952
    %v3007 = vpack.c.b16 %v2959, %v2953
    %v3008 = vpack.c.b16 %v2960, %v2954
    %v3009 = vpack.c.b16 %v2961, %v2955
    %v3010 = vpack.c.b16 %v2962, %v2956
    %v3011 = vpack.c.b16 %v2963, %v2957
    %3060 = vmatprep.subr.bf16.mxu0 %v2965
    %3061 = vmatpush1.bf16.msra.mxu0 %v2964
    %3062 = vmatprep.subr.bf16.mxu0 %v2971
    %3063 = vmatpush1.bf16.msra.mxu0 %v2970
    %3064 = vmatprep.subr.bf16.mxu0 %v2977
    %3065 = vmatpush1.bf16.msra.mxu0 %v2976
    %3066 = vmatprep.subr.bf16.mxu0 %v2983
    %3067 = vmatpush1.bf16.msra.mxu0 %v2982
    %3068 = vmatprep.subr.bf16.mxu0 %v2989
    %3069 = vmatpush1.bf16.msra.mxu0 %v2988
    %3070 = vmatprep.subr.bf16.mxu0 %v2995
    %3071 = vmatpush1.bf16.msra.mxu0 %v2994
    %3072 = vmatprep.subr.bf16.mxu0 %v3001
    %3073 = vmatpush1.bf16.msra.mxu0 %v3000
    %3074 = vmatprep.subr.bf16.mxu0 %v3007
    %3075 = vmatpush1.bf16.msra.mxu0 %v3006
    %3076 = vmatprep.subr.bf16.mxu0 0
    %3077 = vmatpush1.bf16.msra.mxu0 0
    %3078 = vmatprep.subr.bf16.mxu0 0
    %3079 = vmatpush1.bf16.msra.mxu0 0
    %3080 = vmatprep.subr.bf16.mxu0 0
    %3081 = vmatpush1.bf16.msra.mxu0 0
    %3082 = vmatprep.subr.bf16.mxu0 0
    %3083 = vmatpush1.bf16.msra.mxu0 0
    %3084 = vmatprep.subr.bf16.mxu0 0
    %3085 = vmatpush1.bf16.msra.mxu0 0
    %3086 = vmatprep.subr.bf16.mxu0 0
    %3087 = vmatpush1.bf16.msra.mxu0 0
    %3088 = vmatprep.subr.bf16.mxu0 0
    %3089 = vmatpush1.bf16.msra.mxu0 0
    %3090 = vmatprep.subr.bf16.mxu0 0
    %3091 = vmatpush1.bf16.msra.mxu0 0
    %3092 = vmatprep.mubr.bf16.mxu0 0
    %3093 = vmatmul.mubr.bf16.gmra.mrb[0].mxu0 %v2819
    %v3094 = vpop.f32.mrb[0].mxu0
    %v3095 = vadd.f32 0.0, %v3094
    %v3096 = vpop.f32.mrb[0].mxu0
    %v3097 = vadd.f32 0.0, %v3096
    %v3098 = vpop.f32.mrb[0].mxu0
    %v3099 = vadd.f32 0.0, %v3098
    %v3100 = vpop.f32.mrb[0].mxu0
    %v3101 = vadd.f32 0.0, %v3100
    %3102 = vdwg.mxu0
    %3103 = vmatprep.subr.bf16.mxu0 %v2967
    %3104 = vmatpush1.bf16.msra.mxu0 %v2966
    %3105 = vmatprep.subr.bf16.mxu0 %v2973
    %3106 = vmatpush1.bf16.msra.mxu0 %v2972
    %3107 = vmatprep.subr.bf16.mxu0 %v2979
    %3108 = vmatpush1.bf16.msra.mxu0 %v2978
    %3109 = vmatprep.subr.bf16.mxu0 %v2985
    %3110 = vmatpush1.bf16.msra.mxu0 %v2984
    %3111 = vmatprep.subr.bf16.mxu0 %v2991
    %3112 = vmatpush1.bf16.msra.mxu0 %v2990
    %3113 = vmatprep.subr.bf16.mxu0 %v2997
    %3114 = vmatpush1.bf16.msra.mxu0 %v2996
    %3115 = vmatprep.subr.bf16.mxu0 %v3003
    %3116 = vmatpush1.bf16.msra.mxu0 %v3002
    %3117 = vmatprep.subr.bf16.mxu0 %v3009
    %3118 = vmatpush1.bf16.msra.mxu0 %v3008
    %3119 = vmatprep.subr.bf16.mxu0 0
    %3120 = vmatpush1.bf16.msra.mxu0 0
    %3121 = vmatprep.subr.bf16.mxu0 0
    %3122 = vmatpush1.bf16.msra.mxu0 0
    %3123 = vmatprep.subr.bf16.mxu0 0
    %3124 = vmatpush1.bf16.msra.mxu0 0
    %3125 = vmatprep.subr.bf16.mxu0 0
    %3126 = vmatpush1.bf16.msra.mxu0 0
    %3127 = vmatprep.subr.bf16.mxu0 0
    %3128 = vmatpush1.bf16.msra.mxu0 0
    %3129 = vmatprep.subr.bf16.mxu0 0
    %3130 = vmatpush1.bf16.msra.mxu0 0
    %3131 = vmatprep.subr.bf16.mxu0 0
    %3132 = vmatpush1.bf16.msra.mxu0 0
    %3133 = vmatprep.subr.bf16.mxu0 0
    %3134 = vmatpush1.bf16.msra.mxu0 0
    %3135 = vmatprep.mubr.bf16.mxu0 0
    %3136 = vmatmul.mubr.bf16.gmra.mrb[0].mxu0 %v2819
    %v3137 = vpop.f32.mrb[0].mxu0
    %v3138 = vadd.f32 0.0, %v3137
    %v3139 = vpop.f32.mrb[0].mxu0
    %v3140 = vadd.f32 0.0, %v3139
    %v3141 = vpop.f32.mrb[0].mxu0
    %v3142 = vadd.f32 0.0, %v3141
    %v3143 = vpop.f32.mrb[0].mxu0
    %v3144 = vadd.f32 0.0, %v3143
    %3145 = vdwg.mxu0
    %3146 = vmatprep.subr.bf16.mxu0 %v2969
    %3147 = vmatpush1.bf16.msra.mxu0 %v2968
    %3148 = vmatprep.subr.bf16.mxu0 %v2975
    %3149 = vmatpush1.bf16.msra.mxu0 %v2974
    %3150 = vmatprep.subr.bf16.mxu0 %v2981
    %3151 = vmatpush1.bf16.msra.mxu0 %v2980
    %3152 = vmatprep.subr.bf16.mxu0 %v2987
    %3153 = vmatpush1.bf16.msra.mxu0 %v2986
    %3154 = vmatprep.subr.bf16.mxu0 %v2993
    %3155 = vmatpush1.bf16.msra.mxu0 %v2992
    %3156 = vmatprep.subr.bf16.mxu0 %v2999
    %3157 = vmatpush1.bf16.msra.mxu0 %v2998
    %3158 = vmatprep.subr.bf16.mxu0 %v3005
    %3159 = vmatpush1.bf16.msra.mxu0 %v3004
    %3160 = vmatprep.subr.bf16.mxu0 %v3011
    %3161 = vmatpush1.bf16.msra.mxu0 %v3010
    %3162 = vmatprep.subr.bf16.mxu0 0
    %3163 = vmatpush1.bf16.msra.mxu0 0
    %3164 = vmatprep.subr.bf16.mxu0 0
    %3165 = vmatpush1.bf16.msra.mxu0 0
    %3166 = vmatprep.subr.bf16.mxu0 0
    %3167 = vmatpush1.bf16.msra.mxu0 0
    %3168 = vmatprep.subr.bf16.mxu0 0
    %3169 = vmatpush1.bf16.msra.mxu0 0
    %3170 = vmatprep.subr.bf16.mxu0 0
    %3171 = vmatpush1.bf16.msra.mxu0 0
    %3172 = vmatprep.subr.bf16.mxu0 0
    %3173 = vmatpush1.bf16.msra.mxu0 0
    %3174 = vmatprep.subr.bf16.mxu0 0
    %3175 = vmatpush1.bf16.msra.mxu0 0
    %3176 = vmatprep.subr.bf16.mxu0 0
    %3177 = vmatpush1.bf16.msra.mxu0 0
    %3178 = vmatprep.mubr.bf16.mxu0 0
    %3179 = vmatmul.mubr.bf16.gmra.mrb[0].mxu0 %v2819
    %v3180 = vpop.f32.mrb[0].mxu0
    %v3181 = vadd.f32 0.0, %v3180
    %v3182 = vpop.f32.mrb[0].mxu0
    %v3183 = vadd.f32 0.0, %v3182
    %v3184 = vpop.f32.mrb[0].mxu0
    %v3185 = vadd.f32 0.0, %v3184
    %v3186 = vpop.f32.mrb[0].mxu0
    %v3187 = vadd.f32 0.0, %v3186
    %3188 = vdwg.mxu0
    %v3189 = vxor.u32 %v3095, 2147483648
    %v3190 = vxor.u32 %v3097, 2147483648
    %v3191 = vxor.u32 %v3138, 2147483648
    %v3192 = vxor.u32 %v3099, 2147483648
    %v3193 = vxor.u32 %v3101, 2147483648
    %v3194 = vxor.u32 %v3142, 2147483648
    %v3195 = vmul.f32 %v3189, 1.442695
    %v3196 = vpow.pop %v3195
    %v3197 = vmul.f32 %v3190, 1.442695
    %v3198 = vpow.pop %v3197
    %v3199 = vmul.f32 %v3191, 1.442695
    %v3200 = vpow.pop %v3199
    %v3201 = vmul.f32 %v3192, 1.442695
    %v3202 = vpow.pop %v3201
    %v3203 = vmul.f32 %v3193, 1.442695
    %v3204 = vpow.pop %v3203
    %v3205 = vmul.f32 %v3194, 1.442695
    %v3206 = vpow.pop %v3205
    %v3207 = vadd.f32 %v3196, 1.0
    %v3208 = vadd.f32 %v3198, 1.0
    %v3209 = vadd.f32 %v3200, 1.0
    %v3210 = vadd.f32 %v3202, 1.0
    %v3211 = vadd.f32 %v3204, 1.0
    %v3212 = vadd.f32 %v3206, 1.0
    %v3213 = vrcp.pop %v3207
    %v3214 = vmul.f32 1.0, %v3213
    %v3215 = vrcp.pop %v3208
    %v3216 = vmul.f32 1.0, %v3215
    %v3217 = vrcp.pop %v3209
    %v3218 = vmul.f32 1.0, %v3217
    %v3219 = vrcp.pop %v3210
    %v3220 = vmul.f32 1.0, %v3219
    %v3221 = vrcp.pop %v3211
    %v3222 = vmul.f32 1.0, %v3221
    %v3223 = vrcp.pop %v3212
    %v3224 = vmul.f32 1.0, %v3223
    %v3225 = vmul.f32 %v3095, %v3214
    %v3226 = vmul.f32 %v3097, %v3216
    %v3227 = vmul.f32 %v3138, %v3218
    %v3228 = vmul.f32 %v3099, %v3220
    %v3229 = vmul.f32 %v3101, %v3222
    %v3230 = vmul.f32 %v3142, %v3224
    %v3231 = vmul.f32 %v3225, %v3140
    %v3232 = vmul.f32 %v3226, %v3181
    %v3233 = vmul.f32 %v3227, %v3183
    %v3234 = vmul.f32 %v3228, %v3144
    %v3235 = vmul.f32 %v3229, %v3185
    %v3236 = vmul.f32 %v3230, %v3187
    %s3237 = scalar_lea.vmem [#allocation8], 192
    %v3238 = vld [vmem:[%s3237] sm:$0xf]
    %v3239 = vld [vmem:[%s3237 + $0x4] sm:$0xf]
    %v3240 = vld [vmem:[%s3237 + $0x8] sm:$0xf]
    %v3241 = vld [vmem:[%s3237 + $0xc] sm:$0xf]
    %v3242 = vld [vmem:[%s3237 + $0x10] sm:$0xf]
    %v3243 = vld [vmem:[%s3237 + $0x14] sm:$0xf]
    %v3244 = vld [vmem:[%s3237 + $0x18] sm:$0xf]
    %v3245 = vld [vmem:[%s3237 + $0x1c] sm:$0xf]
    %v3246 = vld [vmem:[%s3237 + $0x20] sm:$0xf]
    %v3247 = vld [vmem:[%s3237 + $0x24] sm:$0xf]
    %v3248 = vld [vmem:[%s3237 + $0x28] sm:$0xf]
    %v3249 = vld [vmem:[%s3237 + $0x2c] sm:$0xf]
    %v3250 = vld [vmem:[%s3237 + $0x30] sm:$0xf]
    %v3251 = vld [vmem:[%s3237 + $0x34] sm:$0xf]
    %v3252 = vld [vmem:[%s3237 + $0x38] sm:$0xf]
    %v3253 = vld [vmem:[%s3237 + $0x3c] sm:$0xf]
    %v3254 = vld [vmem:[%s3237 + $0x40] sm:$0xf]
    %v3255 = vld [vmem:[%s3237 + $0x44] sm:$0xf]
    %v3256 = vld [vmem:[%s3237 + $0x48] sm:$0xf]
    %v3257 = vld [vmem:[%s3237 + $0x4c] sm:$0xf]
    %v3258 = vld [vmem:[%s3237 + $0x50] sm:$0xf]
    %v3259 = vld [vmem:[%s3237 + $0x54] sm:$0xf]
    %v3260 = vld [vmem:[%s3237 + $0x58] sm:$0xf]
    %v3261 = vld [vmem:[%s3237 + $0x5c] sm:$0xf]
    %v3262 = vld [vmem:[%s3237 + $0x60] sm:$0xf]
    %v3263 = vld [vmem:[%s3237 + $0x64] sm:$0xf]
    %v3264 = vld [vmem:[%s3237 + $0x68] sm:$0xf]
    %v3265 = vld [vmem:[%s3237 + $0x6c] sm:$0xf]
    %v3266 = vld [vmem:[%s3237 + $0x70] sm:$0xf]
    %v3267 = vld [vmem:[%s3237 + $0x74] sm:$0xf]
    %v3268 = vld [vmem:[%s3237 + $0x78] sm:$0xf]
    %v3269 = vld [vmem:[%s3237 + $0x7c] sm:$0xf]
    %v3270 = vld [vmem:[%s3237 + $0x80] sm:$0xf]
    %v3271 = vld [vmem:[%s3237 + $0x84] sm:$0xf]
    %v3272 = vld [vmem:[%s3237 + $0x88] sm:$0xf]
    %v3273 = vld [vmem:[%s3237 + $0x8c] sm:$0xf]
    %v3274 = vld [vmem:[%s3237 + $0x90] sm:$0xf]
    %v3275 = vld [vmem:[%s3237 + $0x94] sm:$0xf]
    %v3276 = vld [vmem:[%s3237 + $0x98] sm:$0xf]
    %v3277 = vld [vmem:[%s3237 + $0x9c] sm:$0xf]
    %v3278 = vld [vmem:[%s3237 + $0xa0] sm:$0xf]
    %v3279 = vld [vmem:[%s3237 + $0xa4] sm:$0xf]
    %v3280 = vld [vmem:[%s3237 + $0xa8] sm:$0xf]
    %v3281 = vld [vmem:[%s3237 + $0xac] sm:$0xf]
    %v3282 = vld [vmem:[%s3237 + $0xb0] sm:$0xf]
    %v3283 = vld [vmem:[%s3237 + $0xb4] sm:$0xf]
    %v3284 = vld [vmem:[%s3237 + $0xb8] sm:$0xf]
    %v3285 = vld [vmem:[%s3237 + $0xbc] sm:$0xf]
    %v3286 = vpack.c.bf16 %v3234, %v3231
    %v3287 = vpack.c.bf16 %v3235, %v3232
    %v3288 = vpack.c.bf16 %v3236, %v3233
    %v3337 = vunpack.c.l.b16 %v3238
    %v3338 = vunpack.c.l.b16 %v3239
    %v3339 = vunpack.c.l.b16 %v3240
    %v3340 = vunpack.c.l.b16 %v3241
    %v3341 = vunpack.c.l.b16 %v3242
    %v3342 = vunpack.c.l.b16 %v3243
    %v3343 = vunpack.c.l.b16 %v3244
    %v3344 = vunpack.c.l.b16 %v3245
    %v3345 = vunpack.c.l.b16 %v3246
    %v3346 = vunpack.c.l.b16 %v3247
    %v3347 = vunpack.c.l.b16 %v3248
    %v3348 = vunpack.c.l.b16 %v3249
    %v3349 = vunpack.c.l.b16 %v3250
    %v3350 = vunpack.c.l.b16 %v3251
    %v3351 = vunpack.c.l.b16 %v3252
    %v3352 = vunpack.c.l.b16 %v3253
    %v3353 = vunpack.c.l.b16 %v3254
    %v3354 = vunpack.c.l.b16 %v3255
    %v3355 = vunpack.c.l.b16 %v3256
    %v3356 = vunpack.c.l.b16 %v3257
    %v3357 = vunpack.c.l.b16 %v3258
    %v3358 = vunpack.c.l.b16 %v3259
    %v3359 = vunpack.c.l.b16 %v3260
    %v3360 = vunpack.c.l.b16 %v3261
    %v3361 = vunpack.c.l.b16 %v3262
    %v3362 = vunpack.c.l.b16 %v3263
    %v3363 = vunpack.c.l.b16 %v3264
    %v3364 = vunpack.c.l.b16 %v3265
    %v3365 = vunpack.c.l.b16 %v3266
    %v3366 = vunpack.c.l.b16 %v3267
    %v3367 = vunpack.c.l.b16 %v3268
    %v3368 = vunpack.c.l.b16 %v3269
    %v3369 = vunpack.c.l.b16 %v3270
    %v3370 = vunpack.c.l.b16 %v3271
    %v3371 = vunpack.c.l.b16 %v3272
    %v3372 = vunpack.c.l.b16 %v3273
    %v3373 = vunpack.c.l.b16 %v3274
    %v3374 = vunpack.c.l.b16 %v3275
    %v3375 = vunpack.c.l.b16 %v3276
    %v3376 = vunpack.c.l.b16 %v3277
    %v3377 = vunpack.c.l.b16 %v3278
    %v3378 = vunpack.c.l.b16 %v3279
    %v3379 = vunpack.c.l.b16 %v3280
    %v3380 = vunpack.c.l.b16 %v3281
    %v3381 = vunpack.c.l.b16 %v3282
    %v3382 = vunpack.c.l.b16 %v3283
    %v3383 = vunpack.c.l.b16 %v3284
    %v3384 = vunpack.c.l.b16 %v3285
    %v3385 = vpack.c.b16 %v3338, %v3337
    %v3386 = vpack.c.b16 %v3340, %v3339
    %v3387 = vpack.c.b16 %v3342, %v3341
    %v3388 = vpack.c.b16 %v3344, %v3343
    %v3389 = vpack.c.b16 %v3346, %v3345
    %v3390 = vpack.c.b16 %v3348, %v3347
    %v3391 = vpack.c.b16 %v3350, %v3349
    %v3392 = vpack.c.b16 %v3352, %v3351
    %v3393 = vpack.c.b16 %v3354, %v3353
    %v3394 = vpack.c.b16 %v3356, %v3355
    %v3395 = vpack.c.b16 %v3358, %v3357
    %v3396 = vpack.c.b16 %v3360, %v3359
    %v3397 = vpack.c.b16 %v3362, %v3361
    %v3398 = vpack.c.b16 %v3364, %v3363
    %v3399 = vpack.c.b16 %v3366, %v3365
    %v3400 = vpack.c.b16 %v3368, %v3367
    %v3401 = vpack.c.b16 %v3370, %v3369
    %v3402 = vpack.c.b16 %v3372, %v3371
    %v3403 = vpack.c.b16 %v3374, %v3373
    %v3404 = vpack.c.b16 %v3376, %v3375
    %v3405 = vpack.c.b16 %v3378, %v3377
    %v3406 = vpack.c.b16 %v3380, %v3379
    %v3407 = vpack.c.b16 %v3382, %v3381
    %v3408 = vpack.c.b16 %v3384, %v3383
    %3433 = vmatprep.subr.bf16.mxu0 0
    %3434 = vmatpush1.bf16.msra.mxu0 %v3385
    %3435 = vmatprep.subr.bf16.mxu0 0
    %3436 = vmatpush1.bf16.msra.mxu0 %v3386
    %3437 = vmatprep.subr.bf16.mxu0 0
    %3438 = vmatpush1.bf16.msra.mxu0 %v3387
    %3439 = vmatprep.subr.bf16.mxu0 0
    %3440 = vmatpush1.bf16.msra.mxu0 %v3388
    %3441 = vmatprep.subr.bf16.mxu0 0
    %3442 = vmatpush1.bf16.msra.mxu0 %v3389
    %3443 = vmatprep.subr.bf16.mxu0 0
    %3444 = vmatpush1.bf16.msra.mxu0 %v3390
    %3445 = vmatprep.subr.bf16.mxu0 0
    %3446 = vmatpush1.bf16.msra.mxu0 %v3391
    %3447 = vmatprep.subr.bf16.mxu0 0
    %3448 = vmatpush1.bf16.msra.mxu0 %v3392
    %3449 = vmatprep.subr.bf16.mxu0 0
    %3450 = vmatpush1.bf16.msra.mxu0 %v3393
    %3451 = vmatprep.subr.bf16.mxu0 0
    %3452 = vmatpush1.bf16.msra.mxu0 %v3394
    %3453 = vmatprep.subr.bf16.mxu0 0
    %3454 = vmatpush1.bf16.msra.mxu0 %v3395
    %3455 = vmatprep.subr.bf16.mxu0 0
    %3456 = vmatpush1.bf16.msra.mxu0 %v3396
    %3457 = vmatprep.subr.bf16.mxu0 0
    %3458 = vmatpush1.bf16.msra.mxu0 %v3397
    %3459 = vmatprep.subr.bf16.mxu0 0
    %3460 = vmatpush1.bf16.msra.mxu0 %v3398
    %3461 = vmatprep.subr.bf16.mxu0 0
    %3462 = vmatpush1.bf16.msra.mxu0 %v3399
    %3463 = vmatprep.subr.bf16.mxu0 0
    %3464 = vmatpush1.bf16.msra.mxu0 %v3400
    %3465 = vmatprep.mubr.bf16.mxu0 %v3287
    %3466 = vmatmul.mubr.bf16.gmra.mrb[0].mxu0 %v3286
    %v3467 = vpop.f32.mrb[0].mxu0
    %v3468 = vadd.f32 0.0, %v3467
    %v3469 = vpop.f32.mrb[0].mxu0
    %v3470 = vpop.f32.mrb[0].mxu0
    %v3471 = vadd.f32 0.0, %v3470
    %v3472 = vpop.f32.mrb[0].mxu0
    %3473 = vdwg.mxu0
    %3474 = vmatprep.subr.bf16.mxu0 0
    %3475 = vmatpush1.bf16.msra.mxu0 %v3401
    %3476 = vmatprep.subr.bf16.mxu0 0
    %3477 = vmatpush1.bf16.msra.mxu0 %v3402
    %3478 = vmatprep.subr.bf16.mxu0 0
    %3479 = vmatpush1.bf16.msra.mxu0 %v3403
    %3480 = vmatprep.subr.bf16.mxu0 0
    %3481 = vmatpush1.bf16.msra.mxu0 %v3404
    %3482 = vmatprep.subr.bf16.mxu0 0
    %3483 = vmatpush1.bf16.msra.mxu0 %v3405
    %3484 = vmatprep.subr.bf16.mxu0 0
    %3485 = vmatpush1.bf16.msra.mxu0 %v3406
    %3486 = vmatprep.subr.bf16.mxu0 0
    %3487 = vmatpush1.bf16.msra.mxu0 %v3407
    %3488 = vmatprep.subr.bf16.mxu0 0
    %3489 = vmatpush1.bf16.msra.mxu0 %v3408
    %3490 = vmatprep.subr.bf16.mxu0 0
    %3491 = vmatpush1.bf16.msra.mxu0 0
    %3492 = vmatprep.subr.bf16.mxu0 0
    %3493 = vmatpush1.bf16.msra.mxu0 0
    %3494 = vmatprep.subr.bf16.mxu0 0
    %3495 = vmatpush1.bf16.msra.mxu0 0
    %3496 = vmatprep.subr.bf16.mxu0 0
    %3497 = vmatpush1.bf16.msra.mxu0 0
    %3498 = vmatprep.subr.bf16.mxu0 0
    %3499 = vmatpush1.bf16.msra.mxu0 0
    %3500 = vmatprep.subr.bf16.mxu0 0
    %3501 = vmatpush1.bf16.msra.mxu0 0
    %3502 = vmatprep.subr.bf16.mxu0 0
    %3503 = vmatpush1.bf16.msra.mxu0 0
    %3504 = vmatprep.subr.bf16.mxu0 0
    %3505 = vmatpush1.bf16.msra.mxu0 0
    %3506 = vmatprep.mubr.bf16.mxu0 0
    %3507 = vmatmul.mubr.bf16.gmra.mrb[0].mxu0 %v3288
    %v3508 = vpop.f32.mrb[0].mxu0
    %v3509 = vadd.f32 %v3468, %v3508
    %v3510 = vpop.f32.mrb[0].mxu0
    %v3511 = vpop.f32.mrb[0].mxu0
    %v3512 = vadd.f32 %v3471, %v3511
    %v3513 = vpop.f32.mrb[0].mxu0
    %3514 = vdwg.mxu0
    %v3515 = vadd.f32 %v2744, %v3509
    %v3516 = vadd.f32 %v2745, %v3512
    %v3517 = vld [vmem:[%s9] sm:$0x1]
    %v3518 = vmul.f32 %v3515, %v3515
    %v3519 = vmul.f32 %v3516, %v3516
    %3520 = vadd.xlane.f32.xlu0 %v3518
    %v3521 = vpop.xlane.xlu0 %3520
    %3522 = vadd.xlane.f32.xlu0 %v3519
    %v3523 = vpop.xlane.xlu0 %3522
    %v3524 = vmul.f32 %v3521, %v114
    %v3525 = vmul.f32 %v3523, %v114
    %v3526 = vadd.f32 %v3524, 1e-05
    %v3527 = vadd.f32 %v3525, 1e-05
    %v3528 = vrsqrt.pop %v3526
    %v3529 = vrsqrt.pop %v3527
    %v3530 = vmul.f32 %v3515, %v3528
    %v3531 = vmul.f32 %v3516, %v3529
    %v3533 = vlaneseq
    %v3534 = vshrl.u32 %v3533, 7
    %v3535 = vsub.s32 0, %v3534
    %v3536 = vrot.slane %v3517, %v3535
    %v3538 = vmul.f32 %v3530, %v3536
    %v3539 = vmul.f32 %v3531, %v3536
    %v3540 = vld [vmem:[#allocation9] sm:$0xff]
    %v3541 = vld [vmem:[#allocation9 + $0x8] sm:$0xff]
    %v3542 = vld [vmem:[#allocation9 + $0x10] sm:$0xff]
    %v3543 = vld [vmem:[#allocation9 + $0x18] sm:$0xff]
    %v3544 = vld [vmem:[#allocation9 + $0x20] sm:$0xff]
    %v3545 = vld [vmem:[#allocation9 + $0x28] sm:$0xff]
    %v3546 = vld [vmem:[#allocation9 + $0x30] sm:$0xff]
    %v3547 = vld [vmem:[#allocation9 + $0x38] sm:$0xff]
    %v3548 = vld [vmem:[#allocation9 + $0x40] sm:$0xff]
    %v3549 = vld [vmem:[#allocation9 + $0x48] sm:$0xff]
    %v3550 = vld [vmem:[#allocation9 + $0x50] sm:$0xff]
    %v3551 = vld [vmem:[#allocation9 + $0x58] sm:$0xff]
    %v3552 = vld [vmem:[#allocation9 + $0x60] sm:$0xff]
    %v3553 = vld [vmem:[#allocation9 + $0x68] sm:$0xff]
    %v3554 = vld [vmem:[#allocation9 + $0x70] sm:$0xff]
    %v3555 = vld [vmem:[#allocation9 + $0x78] sm:$0xff]
    %v3556 = vpack.c.bf16 %v3539, %v3538
    %v3573 = vunpack.c.l.b16 %v3540
    %v3574 = vunpack.c.h.b16 %v3540
    %v3575 = vunpack.c.l.b16 %v3541
    %v3576 = vunpack.c.h.b16 %v3541
    %v3577 = vunpack.c.l.b16 %v3542
    %v3578 = vunpack.c.h.b16 %v3542
    %v3579 = vunpack.c.l.b16 %v3543
    %v3580 = vunpack.c.h.b16 %v3543
    %v3581 = vunpack.c.l.b16 %v3544
    %v3582 = vunpack.c.h.b16 %v3544
    %v3583 = vunpack.c.l.b16 %v3545
    %v3584 = vunpack.c.h.b16 %v3545
    %v3585 = vunpack.c.l.b16 %v3546
    %v3586 = vunpack.c.h.b16 %v3546
    %v3587 = vunpack.c.l.b16 %v3547
    %v3588 = vunpack.c.h.b16 %v3547
    %v3589 = vunpack.c.l.b16 %v3548
    %v3590 = vunpack.c.h.b16 %v3548
    %v3591 = vunpack.c.l.b16 %v3549
    %v3592 = vunpack.c.h.b16 %v3549
    %v3593 = vunpack.c.l.b16 %v3550
    %v3594 = vunpack.c.h.b16 %v3550
    %v3595 = vunpack.c.l.b16 %v3551
    %v3596 = vunpack.c.h.b16 %v3551
    %v3597 = vunpack.c.l.b16 %v3552
    %v3598 = vunpack.c.h.b16 %v3552
    %v3599 = vunpack.c.l.b16 %v3553
    %v3600 = vunpack.c.h.b16 %v3553
    %v3601 = vunpack.c.l.b16 %v3554
    %v3602 = vunpack.c.h.b16 %v3554
    %v3603 = vunpack.c.l.b16 %v3555
    %v3604 = vunpack.c.h.b16 %v3555
    %v3605 = vpack.c.b16 %v3575, %v3573
    %v3606 = vpack.c.b16 %v3576, %v3574
    %v3607 = vpack.c.b16 %v3579, %v3577
    %v3608 = vpack.c.b16 %v3580, %v3578
    %v3609 = vpack.c.b16 %v3583, %v3581
    %v3610 = vpack.c.b16 %v3584, %v3582
    %v3611 = vpack.c.b16 %v3587, %v3585
    %v3612 = vpack.c.b16 %v3588, %v3586
    %v3613 = vpack.c.b16 %v3591, %v3589
    %v3614 = vpack.c.b16 %v3592, %v3590
    %v3615 = vpack.c.b16 %v3595, %v3593
    %v3616 = vpack.c.b16 %v3596, %v3594
    %v3617 = vpack.c.b16 %v3599, %v3597
    %v3618 = vpack.c.b16 %v3600, %v3598
    %v3619 = vpack.c.b16 %v3603, %v3601
    %v3620 = vpack.c.b16 %v3604, %v3602
    %3637 = vmatprep.subr.bf16.mxu0 %v3606
    %3638 = vmatpush1.bf16.msra.mxu0 %v3605
    %3639 = vmatprep.subr.bf16.mxu0 %v3608
    %3640 = vmatpush1.bf16.msra.mxu0 %v3607
    %3641 = vmatprep.subr.bf16.mxu0 %v3610
    %3642 = vmatpush1.bf16.msra.mxu0 %v3609
    %3643 = vmatprep.subr.bf16.mxu0 %v3612
    %3644 = vmatpush1.bf16.msra.mxu0 %v3611
    %3645 = vmatprep.subr.bf16.mxu0 %v3614
    %3646 = vmatpush1.bf16.msra.mxu0 %v3613
    %3647 = vmatprep.subr.bf16.mxu0 %v3616
    %3648 = vmatpush1.bf16.msra.mxu0 %v3615
    %3649 = vmatprep.subr.bf16.mxu0 %v3618
    %3650 = vmatpush1.bf16.msra.mxu0 %v3617
    %3651 = vmatprep.subr.bf16.mxu0 %v3620
    %3652 = vmatpush1.bf16.msra.mxu0 %v3619
    %3653 = vmatprep.subr.bf16.mxu0 0
    %3654 = vmatpush1.bf16.msra.mxu0 0
    %3655 = vmatprep.subr.bf16.mxu0 0
    %3656 = vmatpush1.bf16.msra.mxu0 0
    %3657 = vmatprep.subr.bf16.mxu0 0
    %3658 = vmatpush1.bf16.msra.mxu0 0
    %3659 = vmatprep.subr.bf16.mxu0 0
    %3660 = vmatpush1.bf16.msra.mxu0 0
    %3661 = vmatprep.subr.bf16.mxu0 0
    %3662 = vmatpush1.bf16.msra.mxu0 0
    %3663 = vmatprep.subr.bf16.mxu0 0
    %3664 = vmatpush1.bf16.msra.mxu0 0
    %3665 = vmatprep.subr.bf16.mxu0 0
    %3666 = vmatpush1.bf16.msra.mxu0 0
    %3667 = vmatprep.subr.bf16.mxu0 0
    %3668 = vmatpush1.bf16.msra.mxu0 0
    %3669 = vmatprep.mubr.bf16.mxu0 0
    %3670 = vmatmul.mubr.bf16.gmra.mrb[0].mxu0 %v3556
    %v3671 = vpop.f32.mrb[0].mxu0
    %v3672 = vadd.f32 0.0, %v3671
    %v3673 = vpop.f32.mrb[0].mxu0
    %v3674 = vadd.f32 0.0, %v3673
    %v3675 = vpop.f32.mrb[0].mxu0
    %v3676 = vadd.f32 0.0, %v3675
    %v3677 = vpop.f32.mrb[0].mxu0
    %v3678 = vadd.f32 0.0, %v3677
    %3679 = vdwg.mxu0
    %3680 = vst [vmem:[#allocation11] sm:$0xff] %v3672
    %3681 = vst [vmem:[#allocation11 + $0x8] sm:$0xff] %v3674
    %3682 = vst [vmem:[#allocation11 + $0x10] sm:$0xff] %v3676
    %3683 = vst [vmem:[#allocation11 + $0x18] sm:$0xff] %v3678
    // Predicated region
    $region62: #{llava_forward.1} parent=1 // pred_check
      _
    $region63: #{llava_forward.1} parent=1 // pred_check_branch
      %3685 = sbr.rel (0) target = $region65
    $region64: #{llava_forward.1} parent=1 // pred_region
      %s3687 = ssub.s32 512, 512
      %3688 = vsyncadd [#allocation5], %s3687
      %s3689 = sshll.u32 [#allocation11], 4
      %s3690 = int_to_ptr.vmem [resolvable:$true] %s3689
      %3695 = dma.vmem_to_hbm [thread:$0]  %s3690, 512, %s11, [#allocation5], 256, 256, 16
    $region65: #{llava_forward.1} parent=1 // pred_fallthru
      _
    // Predicated region
    $region66: #{llava_forward.1} parent=1 // pred_check
      _
    $region67: #{llava_forward.1} parent=1 // pred_check_branch
      %3697 = sbr.rel (0) target = $region69
    $region68: #{llava_forward.1} parent=1 // pred_region
      %3698 = dma.done [#allocation5], 512
    $region69: #{llava_forward.1} parent=1 // pred_fallthru
      _
    %3699 = vsyncpa [#allocation4], 1
    %3700 = vsyncpa [#allocation7], 1
    %3701 = vsyncpa [#allocation10], 1
    %3702 = vsyncpa [#allocation5], 1

</llo_original>
